<compile_context>
chip_gen: v5e
topology: v5e:2x2
jax: 0.10.0
libtpu: 0.0.40
codegen_flags: <defaults>
</compile_context>

<pallas_src>
import functools

import jax
import jax.numpy as jnp
from jax.experimental import pallas as pl
from jax.experimental.pallas import tpu as pltpu


def _round_up(x, m):
    return (x + m - 1) // m * m


# ---------------------------------------------------------------------------
# Pallas kernel 1: fused (X @ W + b) -> ReLU/identity, tiled over rows (M).
#   X tile   : (TM, K)  f32 (cast to bf16 in-kernel for the MXU)
#   W        : (K,  N)  bf16 (pre-packed, resident for all M tiles)
#   b        : (1,  N)  f32
# ---------------------------------------------------------------------------
def _mm_bias_act_kernel(x_ref, w_ref, b_ref, o_ref, *, act):
    x = x_ref[...].astype(jnp.bfloat16)
    acc = jnp.dot(x, w_ref[...], preferred_element_type=jnp.float32)
    acc = acc + b_ref[...]  # (1, N) broadcasts over rows
    if act == "relu":
        acc = jnp.maximum(acc, 0.0)
    elif act == "sigmoid":
        acc = jax.nn.sigmoid(acc)
    o_ref[...] = acc.astype(o_ref.dtype)


def pallas_linear(x, w_bf16, b_f32, act, *, tm=512):
    """x: [M, K] f32, w: [K, N] bf16, b: [1, N] f32 -> act(x @ w + b): [M, N] f32."""
    M, K = x.shape
    Kw, N = w_bf16.shape
    assert K == Kw, (K, Kw)
    TM = min(tm, _round_up(M, 16))  # multiple of 16: safe for f32 and bf16 tiling
    grid = (pl.cdiv(M, TM),)
    return pl.pallas_call(
        functools.partial(_mm_bias_act_kernel, act=act),
        out_shape=jax.ShapeDtypeStruct((M, N), jnp.float32),
        grid=grid,
        in_specs=[
            pl.BlockSpec((TM, K), lambda i: (i, 0)),
            pl.BlockSpec((K, N), lambda i: (0, 0)),
            pl.BlockSpec((1, N), lambda i: (0, 0)),
        ],
        out_specs=pl.BlockSpec((TM, N), lambda i: (i, 0)),
        compiler_params=pltpu.CompilerParams(
            dimension_semantics=("parallel",)
        ),
    )(x, w_bf16, b_f32)


# ---------------------------------------------------------------------------
# Pallas kernel 2: fused FC head  sigmoid(relu(X @ W1 + b1) @ W2 + b2)
# ---------------------------------------------------------------------------
def _fc_head_kernel(x_ref, w1_ref, b1_ref, w2_ref, b2_ref, o_ref):
    h = jnp.dot(x_ref[...].astype(jnp.bfloat16), w1_ref[...],
                preferred_element_type=jnp.float32)
    h = jnp.maximum(h + b1_ref[...], 0.0)                      # fc1 + ReLU (f32)
    y = jnp.dot(h.astype(jnp.bfloat16), w2_ref[...],
                preferred_element_type=jnp.float32)
    o_ref[...] = jax.nn.sigmoid(y + b2_ref[...]).astype(o_ref.dtype)


def pallas_fc_head(x, w1_bf16, b1_f32, w2_bf16, b2_f32, *, tm=256):
    """x: [B, K] f32 -> sigmoid(relu(x @ w1 + b1) @ w2 + b2): [B, 1] f32."""
    M, K = x.shape
    K1, H = w1_bf16.shape
    H2, N = w2_bf16.shape
    assert K == K1 and H == H2, (K, K1, H, H2)
    TM = min(tm, _round_up(M, 16))
    grid = (pl.cdiv(M, TM),)
    return pl.pallas_call(
        _fc_head_kernel,
        out_shape=jax.ShapeDtypeStruct((M, N), jnp.float32),
        grid=grid,
        in_specs=[
            pl.BlockSpec((TM, K), lambda i: (i, 0)),
            pl.BlockSpec((K, H), lambda i: (0, 0)),
            pl.BlockSpec((1, H), lambda i: (0, 0)),
            pl.BlockSpec((H, N), lambda i: (0, 0)),
            pl.BlockSpec((1, N), lambda i: (0, 0)),
        ],
        out_specs=pl.BlockSpec((TM, N), lambda i: (i, 0)),
        compiler_params=pltpu.CompilerParams(
            dimension_semantics=("parallel",)
        ),
    )(x, w1_bf16, b1_f32, w2_bf16, b2_f32)


# ---------------------------------------------------------------------------
# im2col (glue: strided slicing only, no arithmetic)
# ---------------------------------------------------------------------------
def _im2col(x_nhwc, kh, kw, stride):
    B, H, W, C = x_nhwc.shape
    Ho = (H - kh) // stride + 1
    Wo = (W - kw) // stride + 1
    cols = []
    for i in range(kh):
        for j in range(kw):
            cols.append(
                x_nhwc[:, i : i + Ho * stride : stride, j : j + Wo * stride : stride, :]
            )  # [B, Ho, Wo, C]
    patches = jnp.concatenate(cols, axis=-1)  # [B, Ho, Wo, kh*kw*C], (i, j, c) order
    return patches.reshape(B * Ho * Wo, kh * kw * C), Ho, Wo


def conv2d_relu(x_nhwc, w_mat_bf16, b_f32, kh, kw, stride):
    """Conv (weights pre-packed as [(i,j,cin), cout] bf16) + bias + ReLU."""
    patches, Ho, Wo = _im2col(x_nhwc, kh, kw, stride)
    y = pallas_linear(patches, w_mat_bf16, b_f32, act="relu")  # [B*Ho*Wo, Cout]
    B = x_nhwc.shape[0]
    Cout = w_mat_bf16.shape[1]
    return y.reshape(B, Ho, Wo, Cout)


# ---------------------------------------------------------------------------
# Parameter init (PyTorch layout) and one-time packing (Pallas layout)
# ---------------------------------------------------------------------------
def init_params(key):
    ks = jax.random.split(key, 10)
    scale = 0.05
    return {
        "conv1_w": jax.random.normal(ks[0], (32, 2, 4, 4), jnp.float32) * scale,
        "conv1_b": jax.random.normal(ks[1], (32,), jnp.float32) * scale,
        "conv2_w": jax.random.normal(ks[2], (64, 32, 4, 4), jnp.float32) * scale,
        "conv2_b": jax.random.normal(ks[3], (64,), jnp.float32) * scale,
        "conv3_w": jax.random.normal(ks[4], (64, 64, 3, 3), jnp.float32) * scale,
        "conv3_b": jax.random.normal(ks[5], (64,), jnp.float32) * scale,
        "fc1_w": jax.random.normal(ks[6], (128, 7 * 7 * 64), jnp.float32) * scale,
        "fc1_b": jax.random.normal(ks[7], (128,), jnp.float32) * scale,
        "fc2_w": jax.random.normal(ks[8], (1, 128), jnp.float32) * scale,
        "fc2_b": jax.random.normal(ks[9], (1,), jnp.float32) * scale,
    }


def pack_params(params):
    """One-time repack: matmul-ready layouts, bf16 weights, f32 biases."""
    def conv_pack(w_oihw):
        Cout, Cin, KH, KW = w_oihw.shape
        # [(i, j, cin), cout] matches im2col patch ordering
        return jnp.transpose(w_oihw, (2, 3, 1, 0)).reshape(KH * KW * Cin, Cout)

    # fc1 operates on PyTorch's NCHW flatten of the [B,64,7,7] activation.
    # Re-order its rows ONCE so it consumes the NHWC flatten directly
    # (no per-forward activation transpose).
    fc1_w = params["fc1_w"].reshape(128, 64, 7, 7)          # [n, c, h, w]
    fc1_w = jnp.transpose(fc1_w, (2, 3, 1, 0)).reshape(7 * 7 * 64, 128)  # [(h,w,c), n]

    return {
        "conv1_w": conv_pack(params["conv1_w"]).astype(jnp.bfloat16),
        "conv1_b": params["conv1_b"].reshape(1, -1).astype(jnp.float32),
        "conv2_w": conv_pack(params["conv2_w"]).astype(jnp.bfloat16),
        "conv2_b": params["conv2_b"].reshape(1, -1).astype(jnp.float32),
        "conv3_w": conv_pack(params["conv3_w"]).astype(jnp.bfloat16),
        "conv3_b": params["conv3_b"].reshape(1, -1).astype(jnp.float32),
        "fc1_w": fc1_w.astype(jnp.bfloat16),
        "fc1_b": params["fc1_b"].reshape(1, -1).astype(jnp.float32),
        "fc2_w": params["fc2_w"].T.astype(jnp.bfloat16),     # [128, 1]
        "fc2_b": params["fc2_b"].reshape(1, -1).astype(jnp.float32),
    }


# ---------------------------------------------------------------------------
# PolicyNetwork forward (Pallas) and pure-JAX f32 reference
# ---------------------------------------------------------------------------
def policy_network_forward(packed, x_nchw):
    """x_nchw: [B, 2, 84, 84] float32 -> [B, 1] sigmoid probability."""
    B = x_nchw.shape[0]
    x = jnp.transpose(x_nchw, (0, 2, 3, 1))  # -> NHWC

    x = conv2d_relu(x, packed["conv1_w"], packed["conv1_b"], 4, 4, stride=4)  # [B,21,21,32]
    x = conv2d_relu(x, packed["conv2_w"], packed["conv2_b"], 4, 4, stride=2)  # [B, 9, 9,64]
    x = conv2d_relu(x, packed["conv3_w"], packed["conv3_b"], 3, 3, stride=1)  # [B, 7, 7,64]

    # NHWC flatten (fc1 weights were re-ordered at pack time to match).
    x = x.reshape(B, 7 * 7 * 64)

    # Fused fc1 -> ReLU -> fc2 -> sigmoid in a single Pallas kernel.
    return pallas_fc_head(x, packed["fc1_w"], packed["fc1_b"],
                          packed["fc2_w"], packed["fc2_b"])


def reference_forward(params, x_nchw):
    """Pure-JAX f32 reference matching the PyTorch module."""
    def conv(x, w, b, s):
        y = jax.lax.conv_general_dilated(
            x, w, window_strides=(s, s), padding="VALID",
            dimension_numbers=("NCHW", "OIHW", "NCHW"))
        return jnp.maximum(y + b[None, :, None, None], 0.0)

    B = x_nchw.shape[0]
    y = conv(x_nchw, params["conv1_w"], params["conv1_b"], 4)
    y = conv(y, params["conv2_w"], params["conv2_b"], 2)
    y = conv(y, params["conv3_w"], params["conv3_b"], 1)
    y = y.reshape(B, -1)                                   # NCHW flatten
    y = jnp.maximum(y @ params["fc1_w"].T + params["fc1_b"], 0.0)
    return jax.nn.sigmoid(y @ params["fc2_w"].T + params["fc2_b"])


if __name__ == "__main__":
    key = jax.random.PRNGKey(0)
    pkey, xkey = jax.random.split(key)
    params = init_params(pkey)
    packed = pack_params(params)

    # Input: batch=2, 2 stacked 84x84 frames (NCHW, as the PyTorch module expects).
    x = jax.random.uniform(xkey, (2, 2, 84, 84), jnp.float32)

    fwd = jax.jit(policy_network_forward)
    out = jax.block_until_ready(fwd(packed, x))

    assert out.shape == (2, 1), out.shape
    assert bool(jnp.all((out >= 0.0) & (out <= 1.0))), "sigmoid output out of range"

    ref = reference_forward(params, x)
    max_err = float(jnp.max(jnp.abs(out - ref)))
    assert max_err < 3e-2, f"mismatch vs f32 reference: {max_err}"

    print("KERNEL_OK")
</pallas_src>

<mosaic_0001>
module attributes {stable_mosaic.version = 11 : i64} {
  func.func @_mm_bias_act_kernel(%arg0: i32, %arg1: memref<512x32xf32, #tpu.memory_space<vmem>>, %arg2: memref<32x32xbf16, #tpu.memory_space<vmem>>, %arg3: memref<1x32xf32, #tpu.memory_space<vmem>>, %arg4: memref<512x32xf32, #tpu.memory_space<vmem>>) attributes {dimension_semantics = [#tpu.dimension_semantics<parallel>], iteration_bounds = array<i64: 2>, scalar_prefetch = 0 : i64, scratch_operands = 0 : i64, tpu.core_type = #tpu.core_type<tc>, window_params = [{transform_indices = @transform_0, window_bounds = array<i64: 512, 32>}, {pipeline_mode = #tpu.pipeline_mode<synchronous>, transform_indices = @transform_1, window_bounds = array<i64: 32, 32>}, {pipeline_mode = #tpu.pipeline_mode<synchronous>, transform_indices = @transform_2, window_bounds = array<i64: 1, 32>}, {transform_indices = @transform_3, window_bounds = array<i64: 512, 32>}]} {
    %c0 = arith.constant 0 : index
    %c0_0 = arith.constant 0 : index
    %0 = vector.load %arg1[%c0, %c0_0] : memref<512x32xf32, #tpu.memory_space<vmem>>, vector<512x32xf32>
    %1 = arith.truncf %0 : vector<512x32xf32> to vector<512x32xbf16>
    %c0_1 = arith.constant 0 : index
    %c0_2 = arith.constant 0 : index
    %2 = vector.load %arg2[%c0_1, %c0_2] : memref<32x32xbf16, #tpu.memory_space<vmem>>, vector<32x32xbf16>
    %cst = arith.constant dense<0.000000e+00> : vector<512x32xf32>
    %3 = tpu.matmul %1, %2, %cst {dimension_numbers = #tpu.dot_dimension_numbers<[1], [0], [0], [1], [0, 0, 1, 1], [], []>} : vector<512x32xbf16>, vector<32x32xbf16>, vector<512x32xf32> -> vector<512x32xf32>
    %c0_3 = arith.constant 0 : index
    %c0_4 = arith.constant 0 : index
    %4 = vector.load %arg3[%c0_3, %c0_4] : memref<1x32xf32, #tpu.memory_space<vmem>>, vector<1x32xf32>
    %5 = vector.broadcast %4 : vector<1x32xf32> to vector<512x32xf32>
    %6 = arith.addf %3, %5 : vector<512x32xf32>
    %cst_5 = arith.constant 0.000000e+00 : f32
    %7 = vector.broadcast %cst_5 : f32 to vector<512x32xf32>
    %8 = arith.maximumf %6, %7 : vector<512x32xf32>
    %c0_6 = arith.constant 0 : index
    %c0_7 = arith.constant 0 : index
    %9 = vector.load %arg4[%c0_6, %c0_7] : memref<512x32xf32, #tpu.memory_space<vmem>>, vector<512x32xf32>
    tpu.vector_store %arg4[%c0_6, %c0_7], %8 {strides = array<i32>} : memref<512x32xf32, #tpu.memory_space<vmem>>, vector<512x32xf32>,
    return
  }
  func.func @transform_0(%arg0: i32) -> (i32, i32) {
    %c0_i32 = arith.constant 0 : i32
    %c0_i32_0 = arith.constant 0 : i32
    return %arg0, %c0_i32 : i32, i32
  }
  func.func @transform_1(%arg0: i32) -> (i32, i32) {
    %c0_i32 = arith.constant 0 : i32
    %c0_i32_0 = arith.constant 0 : i32
    %c0_i32_1 = arith.constant 0 : i32
    return %c0_i32, %c0_i32_0 : i32, i32
  }
  func.func @transform_2(%arg0: i32) -> (i32, i32) {
    %c0_i32 = arith.constant 0 : i32
    %c0_i32_0 = arith.constant 0 : i32
    %c0_i32_1 = arith.constant 0 : i32
    return %c0_i32, %c0_i32_0 : i32, i32
  }
  func.func @transform_3(%arg0: i32) -> (i32, i32) {
    %c0_i32 = arith.constant 0 : i32
    %c0_i32_0 = arith.constant 0 : i32
    return %arg0, %c0_i32 : i32, i32
  }
}

module attributes {stable_mosaic.version = 11 : i64} {
  func.func @_mm_bias_act_kernel(%arg0: i32, %arg1: memref<176x512xf32, #tpu.memory_space<vmem>>, %arg2: memref<512x64xbf16, #tpu.memory_space<vmem>>, %arg3: memref<1x64xf32, #tpu.memory_space<vmem>>, %arg4: memref<176x64xf32, #tpu.memory_space<vmem>>) attributes {dimension_semantics = [#tpu.dimension_semantics<parallel>], iteration_bounds = array<i64: 1>, scalar_prefetch = 0 : i64, scratch_operands = 0 : i64, tpu.core_type = #tpu.core_type<tc>, window_params = [{transform_indices = @transform_0, window_bounds = array<i64: 176, 512>}, {pipeline_mode = #tpu.pipeline_mode<synchronous>, transform_indices = @transform_1, window_bounds = array<i64: 512, 64>}, {pipeline_mode = #tpu.pipeline_mode<synchronous>, transform_indices = @transform_2, window_bounds = array<i64: 1, 64>}, {transform_indices = @transform_3, window_bounds = array<i64: 176, 64>}]} {
    %c0 = arith.constant 0 : index
    %c0_0 = arith.constant 0 : index
    %0 = vector.load %arg1[%c0, %c0_0] : memref<176x512xf32, #tpu.memory_space<vmem>>, vector<176x512xf32>
    %1 = arith.truncf %0 : vector<176x512xf32> to vector<176x512xbf16>
    %c0_1 = arith.constant 0 : index
    %c0_2 = arith.constant 0 : index
    %2 = vector.load %arg2[%c0_1, %c0_2] : memref<512x64xbf16, #tpu.memory_space<vmem>>, vector<512x64xbf16>
    %cst = arith.constant dense<0.000000e+00> : vector<176x64xf32>
    %3 = tpu.matmul %1, %2, %cst {dimension_numbers = #tpu.dot_dimension_numbers<[1], [0], [0], [1], [0, 0, 1, 1], [], []>} : vector<176x512xbf16>, vector<512x64xbf16>, vector<176x64xf32> -> vector<176x64xf32>
    %c0_3 = arith.constant 0 : index
    %c0_4 = arith.constant 0 : index
    %4 = vector.load %arg3[%c0_3, %c0_4] : memref<1x64xf32, #tpu.memory_space<vmem>>, vector<1x64xf32>
    %5 = vector.broadcast %4 : vector<1x64xf32> to vector<176x64xf32>
    %6 = arith.addf %3, %5 : vector<176x64xf32>
    %cst_5 = arith.constant 0.000000e+00 : f32
    %7 = vector.broadcast %cst_5 : f32 to vector<176x64xf32>
    %8 = arith.maximumf %6, %7 : vector<176x64xf32>
    %c0_6 = arith.constant 0 : index
    %c0_7 = arith.constant 0 : index
    %9 = vector.load %arg4[%c0_6, %c0_7] : memref<176x64xf32, #tpu.memory_space<vmem>>, vector<176x64xf32>
    tpu.vector_store %arg4[%c0_6, %c0_7], %8 {strides = array<i32>} : memref<176x64xf32, #tpu.memory_space<vmem>>, vector<176x64xf32>,
    return
  }
  func.func @transform_0(%arg0: i32) -> (i32, i32) {
    %c0_i32 = arith.constant 0 : i32
    %c0_i32_0 = arith.constant 0 : i32
    return %arg0, %c0_i32 : i32, i32
  }
  func.func @transform_1(%arg0: i32) -> (i32, i32) {
    %c0_i32 = arith.constant 0 : i32
    %c0_i32_0 = arith.constant 0 : i32
    %c0_i32_1 = arith.constant 0 : i32
    return %c0_i32, %c0_i32_0 : i32, i32
  }
  func.func @transform_2(%arg0: i32) -> (i32, i32) {
    %c0_i32 = arith.constant 0 : i32
    %c0_i32_0 = arith.constant 0 : i32
    %c0_i32_1 = arith.constant 0 : i32
    return %c0_i32, %c0_i32_0 : i32, i32
  }
  func.func @transform_3(%arg0: i32) -> (i32, i32) {
    %c0_i32 = arith.constant 0 : i32
    %c0_i32_0 = arith.constant 0 : i32
    return %arg0, %c0_i32 : i32, i32
  }
}

module attributes {stable_mosaic.version = 11 : i64} {
  func.func @_mm_bias_act_kernel(%arg0: i32, %arg1: memref<112x576xf32, #tpu.memory_space<vmem>>, %arg2: memref<576x64xbf16, #tpu.memory_space<vmem>>, %arg3: memref<1x64xf32, #tpu.memory_space<vmem>>, %arg4: memref<112x64xf32, #tpu.memory_space<vmem>>) attributes {dimension_semantics = [#tpu.dimension_semantics<parallel>], iteration_bounds = array<i64: 1>, scalar_prefetch = 0 : i64, scratch_operands = 0 : i64, tpu.core_type = #tpu.core_type<tc>, window_params = [{transform_indices = @transform_0, window_bounds = array<i64: 112, 576>}, {pipeline_mode = #tpu.pipeline_mode<synchronous>, transform_indices = @transform_1, window_bounds = array<i64: 576, 64>}, {pipeline_mode = #tpu.pipeline_mode<synchronous>, transform_indices = @transform_2, window_bounds = array<i64: 1, 64>}, {transform_indices = @transform_3, window_bounds = array<i64: 112, 64>}]} {
    %c0 = arith.constant 0 : index
    %c0_0 = arith.constant 0 : index
    %0 = vector.load %arg1[%c0, %c0_0] : memref<112x576xf32, #tpu.memory_space<vmem>>, vector<112x576xf32>
    %1 = arith.truncf %0 : vector<112x576xf32> to vector<112x576xbf16>
    %c0_1 = arith.constant 0 : index
    %c0_2 = arith.constant 0 : index
    %2 = vector.load %arg2[%c0_1, %c0_2] : memref<576x64xbf16, #tpu.memory_space<vmem>>, vector<576x64xbf16>
    %cst = arith.constant dense<0.000000e+00> : vector<112x64xf32>
    %3 = tpu.matmul %1, %2, %cst {dimension_numbers = #tpu.dot_dimension_numbers<[1], [0], [0], [1], [0, 0, 1, 1], [], []>} : vector<112x576xbf16>, vector<576x64xbf16>, vector<112x64xf32> -> vector<112x64xf32>
    %c0_3 = arith.constant 0 : index
    %c0_4 = arith.constant 0 : index
    %4 = vector.load %arg3[%c0_3, %c0_4] : memref<1x64xf32, #tpu.memory_space<vmem>>, vector<1x64xf32>
    %5 = vector.broadcast %4 : vector<1x64xf32> to vector<112x64xf32>
    %6 = arith.addf %3, %5 : vector<112x64xf32>
    %cst_5 = arith.constant 0.000000e+00 : f32
    %7 = vector.broadcast %cst_5 : f32 to vector<112x64xf32>
    %8 = arith.maximumf %6, %7 : vector<112x64xf32>
    %c0_6 = arith.constant 0 : index
    %c0_7 = arith.constant 0 : index
    %9 = vector.load %arg4[%c0_6, %c0_7] : memref<112x64xf32, #tpu.memory_space<vmem>>, vector<112x64xf32>
    tpu.vector_store %arg4[%c0_6, %c0_7], %8 {strides = array<i32>} : memref<112x64xf32, #tpu.memory_space<vmem>>, vector<112x64xf32>,
    return
  }
  func.func @transform_0(%arg0: i32) -> (i32, i32) {
    %c0_i32 = arith.constant 0 : i32
    %c0_i32_0 = arith.constant 0 : i32
    return %arg0, %c0_i32 : i32, i32
  }
  func.func @transform_1(%arg0: i32) -> (i32, i32) {
    %c0_i32 = arith.constant 0 : i32
    %c0_i32_0 = arith.constant 0 : i32
    %c0_i32_1 = arith.constant 0 : i32
    return %c0_i32, %c0_i32_0 : i32, i32
  }
  func.func @transform_2(%arg0: i32) -> (i32, i32) {
    %c0_i32 = arith.constant 0 : i32
    %c0_i32_0 = arith.constant 0 : i32
    %c0_i32_1 = arith.constant 0 : i32
    return %c0_i32, %c0_i32_0 : i32, i32
  }
  func.func @transform_3(%arg0: i32) -> (i32, i32) {
    %c0_i32 = arith.constant 0 : i32
    %c0_i32_0 = arith.constant 0 : i32
    return %arg0, %c0_i32 : i32, i32
  }
}

module attributes {stable_mosaic.version = 11 : i64} {
  func.func @_fc_head_kernel(%arg0: i32, %arg1: memref<16x3136xf32, #tpu.memory_space<vmem>>, %arg2: memref<3136x128xbf16, #tpu.memory_space<vmem>>, %arg3: memref<1x128xf32, #tpu.memory_space<vmem>>, %arg4: memref<128x1xbf16, #tpu.memory_space<vmem>>, %arg5: memref<1x1xf32, #tpu.memory_space<vmem>>, %arg6: memref<16x1xf32, #tpu.memory_space<vmem>>) attributes {dimension_semantics = [#tpu.dimension_semantics<parallel>], iteration_bounds = array<i64: 1>, scalar_prefetch = 0 : i64, scratch_operands = 0 : i64, tpu.core_type = #tpu.core_type<tc>, window_params = [{transform_indices = @transform_0, window_bounds = array<i64: 16, 3136>}, {pipeline_mode = #tpu.pipeline_mode<synchronous>, transform_indices = @transform_1, window_bounds = array<i64: 3136, 128>}, {pipeline_mode = #tpu.pipeline_mode<synchronous>, transform_indices = @transform_2, window_bounds = array<i64: 1, 128>}, {pipeline_mode = #tpu.pipeline_mode<synchronous>, transform_indices = @transform_3, window_bounds = array<i64: 128, 1>}, {pipeline_mode = #tpu.pipeline_mode<synchronous>, transform_indices = @transform_4, window_bounds = array<i64: 1, 1>}, {transform_indices = @transform_5, window_bounds = array<i64: 16, 1>}]} {
    %c0 = arith.constant 0 : index
    %c0_0 = arith.constant 0 : index
    %0 = vector.load %arg1[%c0, %c0_0] : memref<16x3136xf32, #tpu.memory_space<vmem>>, vector<16x3136xf32>
    %1 = arith.truncf %0 : vector<16x3136xf32> to vector<16x3136xbf16>
    %c0_1 = arith.constant 0 : index
    %c0_2 = arith.constant 0 : index
    %2 = vector.load %arg2[%c0_1, %c0_2] : memref<3136x128xbf16, #tpu.memory_space<vmem>>, vector<3136x128xbf16>
    %cst = arith.constant dense<0.000000e+00> : vector<16x128xf32>
    %3 = tpu.matmul %1, %2, %cst {dimension_numbers = #tpu.dot_dimension_numbers<[1], [0], [0], [1], [0, 0, 1, 1], [], []>} : vector<16x3136xbf16>, vector<3136x128xbf16>, vector<16x128xf32> -> vector<16x128xf32>
    %c0_3 = arith.constant 0 : index
    %c0_4 = arith.constant 0 : index
    %4 = vector.load %arg3[%c0_3, %c0_4] : memref<1x128xf32, #tpu.memory_space<vmem>>, vector<1x128xf32>
    %5 = vector.broadcast %4 : vector<1x128xf32> to vector<16x128xf32>
    %6 = arith.addf %3, %5 : vector<16x128xf32>
    %cst_5 = arith.constant 0.000000e+00 : f32
    %7 = vector.broadcast %cst_5 : f32 to vector<16x128xf32>
    %8 = arith.maximumf %6, %7 : vector<16x128xf32>
    %9 = arith.truncf %8 : vector<16x128xf32> to vector<16x128xbf16>
    %c0_6 = arith.constant 0 : index
    %c0_7 = arith.constant 0 : index
    %10 = vector.load %arg4[%c0_6, %c0_7] : memref<128x1xbf16, #tpu.memory_space<vmem>>, vector<128x1xbf16>
    %cst_8 = arith.constant dense<0.000000e+00> : vector<16x1xf32>
    %11 = tpu.matmul %9, %10, %cst_8 {dimension_numbers = #tpu.dot_dimension_numbers<[1], [0], [0], [1], [0, 0, 1, 1], [], []>} : vector<16x128xbf16>, vector<128x1xbf16>, vector<16x1xf32> -> vector<16x1xf32>
    %c0_9 = arith.constant 0 : index
    %c0_10 = arith.constant 0 : index
    %12 = vector.load %arg5[%c0_9, %c0_10] : memref<1x1xf32, #tpu.memory_space<vmem>>, vector<1x1xf32>
    %13 = vector.broadcast %12 : vector<1x1xf32> to vector<16x1xf32>
    %14 = arith.addf %11, %13 : vector<16x1xf32>
    %15 = arith.negf %14 : vector<16x1xf32>
    %16 = math.exp %15 : vector<16x1xf32>
    %cst_11 = arith.constant 1.000000e+00 : f32
    %17 = vector.broadcast %cst_11 : f32 to vector<16x1xf32>
    %18 = arith.addf %17, %16 : vector<16x1xf32>
    %19 = arith.divf %17, %18 : vector<16x1xf32>
    %c0_12 = arith.constant 0 : index
    %c0_13 = arith.constant 0 : index
    %20 = vector.load %arg6[%c0_12, %c0_13] : memref<16x1xf32, #tpu.memory_space<vmem>>, vector<16x1xf32>
    tpu.vector_store %arg6[%c0_12, %c0_13], %19 {strides = array<i32>} : memref<16x1xf32, #tpu.memory_space<vmem>>, vector<16x1xf32>,
    return
  }
  func.func @transform_0(%arg0: i32) -> (i32, i32) {
    %c0_i32 = arith.constant 0 : i32
    %c0_i32_0 = arith.constant 0 : i32
    return %arg0, %c0_i32 : i32, i32
  }
  func.func @transform_1(%arg0: i32) -> (i32, i32) {
    %c0_i32 = arith.constant 0 : i32
    %c0_i32_0 = arith.constant 0 : i32
    %c0_i32_1 = arith.constant 0 : i32
    return %c0_i32, %c0_i32_0 : i32, i32
  }
  func.func @transform_2(%arg0: i32) -> (i32, i32) {
    %c0_i32 = arith.constant 0 : i32
    %c0_i32_0 = arith.constant 0 : i32
    %c0_i32_1 = arith.constant 0 : i32
    return %c0_i32, %c0_i32_0 : i32, i32
  }
  func.func @transform_3(%arg0: i32) -> (i32, i32) {
    %c0_i32 = arith.constant 0 : i32
    %c0_i32_0 = arith.constant 0 : i32
    %c0_i32_1 = arith.constant 0 : i32
    return %c0_i32, %c0_i32_0 : i32, i32
  }
  func.func @transform_4(%arg0: i32) -> (i32, i32) {
    %c0_i32 = arith.constant 0 : i32
    %c0_i32_0 = arith.constant 0 : i32
    %c0_i32_1 = arith.constant 0 : i32
    return %c0_i32, %c0_i32_0 : i32, i32
  }
  func.func @transform_5(%arg0: i32) -> (i32, i32) {
    %c0_i32 = arith.constant 0 : i32
    %c0_i32_0 = arith.constant 0 : i32
    return %arg0, %c0_i32 : i32, i32
  }
}

</mosaic_0001>

<llo_original>
// kernel: policy_network_forward.4
$region0: #{policy_network_forward.4}
  #allocation0 [shape = 'u32[]', space=smem, size = 0x4, offset = 0x4, fixed_abs, tag = 'smem constant byte address 0x4 - core index']
  #allocation1 [shape = 'u32[72,128]{1,0:T(1,128)}', space=vmem, size = 0x9000, scoped, tag = 'internal scratch']
  %s0 = inlined_call_operand.vmem [shape: f32[882,32], index: 0, kind: input, shape index: {}]
  %s1 = inlined_call_operand.hbm [shape: bf16[32,32], index: 1, kind: input, shape index: {}]
  %s2 = inlined_call_operand.hbm [shape: f32[1,32], index: 2, kind: input, shape index: {}]
  %s3 = inlined_call_operand.vmem [shape: f32[882,32], index: 3, kind: output, shape index: {}]
  %s4 = sld [smem:[#allocation0]]
  $region101: #{policy_network_forward.4} parent=0
    _
  %s6 = ssub.s32 1, %s4
  %s7 = scalar_select 0, %s6, %s4
  $region1: #{policy_network_forward.4} parent=0
    #allocation2 [shape = 'u8[8192]{0}', space=vmem, size = 0x2000, scoped, tag = 'input window, operand 1, single buffered']
    #allocation3 [shape = 's32[2]{0}', space=sflag, size = 0x8, scoped, tag = 'scoped memory for policy_network_forward.4']
    #allocation4 [shape = 'u8[512]{0}', space=vmem, size = 0x400, scoped, tag = 'input window, operand 2, single buffered']
    #allocation5 [shape = 's32[1]{0}', space=sflag, size = 0x4, scoped, tag = 'scoped memory for policy_network_forward.4']
    #allocation6 [shape = 'u8[524288]{0}', space=vmem, size = 0x80000, scoped, tag = 'output window, operand 0']
    %8 = vsyncpa [#allocation3], 0
    %9 = vsyncpa [#allocation5], 0
    loop: start=0, step=1, limit=4
    $region2: #{policy_network_forward.4} parent=1 // loop_pre_header
      _
    $region3: #{policy_network_forward.4} parent=1 // loop_header
      %s11 = sphi 0, %s15
      %p12 = scmp.ge.s32.totalorder %s11, 4
      %s21 = sphi 0, %s23
      %s24 = sphi 0, %s21
      %s25 = sphi 0, %s24
      %s41 = sphi 0, %s25
      %s45 = sphi 0, %s45
      %s47 = sphi 0, %s45
      %s48 = sphi 0, %s47
      %s62 = sphi 0, %s48
      %s66 = sphi 0, %s66
      %s68 = sphi 0, %s66
      %s69 = sphi 0, %s68
      %s83 = sphi 0, %s69
      %s89 = sphi 0, %s91
      %s92 = sphi 0, %s89
      %s93 = sphi 0, %s92
      %s109 = sphi 0, %s93
    $region4: #{policy_network_forward.4} parent=1 // loop_header_branch
      %14 = sbr.rel (%p12) target = $region8
    $region5: #{policy_network_forward.4} parent=1 // loop_body
      %s16 = ssub.s32 %s11, 1
      %s17 = ssub.s32 %s11, 2
      %s18 = sadd.s32 %s11, 1
      %s19 = ssub.s32 %s11, %s18
      %p20 = scmp.eq.s32.totalorder %s19, 0
      %s22 = sadd.s32 %s21, 1
      %s23 = scalar_select %p20, %s21, %s22
      %p26 = pneg %p20
      %p27 = scmp.eq.s32.totalorder %s11, 1
      %p28 = por %p26, %p27
      %p29 = scmp.ne.s32.totalorder %s21, %s24
      %p30 = scmp.eq.s32.totalorder %s11, 0
      %p31 = por %p29, %p30
      %p32 = scmp.ne.s32.totalorder %s21, %s24
      %p33 = scmp.eq.s32.totalorder %s16, 1
      %p34 = por %p32, %p33
      %p35 = scmp.ne.s32.totalorder %s24, %s25
      %p36 = scmp.eq.s32.totalorder %s16, 0
      %p37 = por %p35, %p36
      %p38 = scmp.ne.s32.totalorder %s24, %s25
      %p39 = scmp.eq.s32.totalorder %s17, 1
      %p40 = por %p38, %p39
      %p42 = scmp.ne.s32.totalorder %s25, %s41
      %p43 = scmp.eq.s32.totalorder %s17, 0
      %p44 = por %p42, %p43
      %s46 = sadd.s32 %s45, 1
      %p49 = scmp.eq.s32.totalorder %s11, 1
      %p50 = scmp.ne.s32.totalorder %s45, %s47
      %p51 = scmp.eq.s32.totalorder %s11, 0
      %p52 = por %p50, %p51
      %p53 = scmp.ne.s32.totalorder %s45, %s47
      %p54 = scmp.eq.s32.totalorder %s16, 1
      %p55 = por %p53, %p54
      %p56 = scmp.ne.s32.totalorder %s47, %s48
      %p57 = scmp.eq.s32.totalorder %s16, 0
      %p58 = por %p56, %p57
      %p59 = scmp.ne.s32.totalorder %s47, %s48
      %p60 = scmp.eq.s32.totalorder %s17, 1
      %p61 = por %p59, %p60
      %p63 = scmp.ne.s32.totalorder %s48, %s62
      %p64 = scmp.eq.s32.totalorder %s17, 0
      %p65 = por %p63, %p64
      %s67 = sadd.s32 %s66, 1
      %p70 = scmp.eq.s32.totalorder %s11, 1
      %p71 = scmp.ne.s32.totalorder %s66, %s68
      %p72 = scmp.eq.s32.totalorder %s11, 0
      %p73 = por %p71, %p72
      %p74 = scmp.ne.s32.totalorder %s66, %s68
      %p75 = scmp.eq.s32.totalorder %s16, 1
      %p76 = por %p74, %p75
      %p77 = scmp.ne.s32.totalorder %s68, %s69
      %p78 = scmp.eq.s32.totalorder %s16, 0
      %p79 = por %p77, %p78
      %p80 = scmp.ne.s32.totalorder %s68, %s69
      %p81 = scmp.eq.s32.totalorder %s17, 1
      %p82 = por %p80, %p81
      %p84 = scmp.ne.s32.totalorder %s69, %s83
      %p85 = scmp.eq.s32.totalorder %s17, 0
      %p86 = por %p84, %p85
      %s87 = ssub.s32 %s11, %s18
      %p88 = scmp.eq.s32.totalorder %s87, 0
      %s90 = sadd.s32 %s89, 1
      %s91 = scalar_select %p88, %s89, %s90
      %p94 = pneg %p88
      %p95 = scmp.eq.s32.totalorder %s11, 1
      %p96 = por %p94, %p95
      %p97 = scmp.ne.s32.totalorder %s89, %s92
      %p98 = scmp.eq.s32.totalorder %s11, 0
      %p99 = por %p97, %p98
      %p100 = scmp.ne.s32.totalorder %s89, %s92
      %p101 = scmp.eq.s32.totalorder %s16, 1
      %p102 = por %p100, %p101
      %p103 = scmp.ne.s32.totalorder %s92, %s93
      %p104 = scmp.eq.s32.totalorder %s16, 0
      %p105 = por %p103, %p104
      %p106 = scmp.ne.s32.totalorder %s92, %s93
      %p107 = scmp.eq.s32.totalorder %s17, 1
      %p108 = por %p106, %p107
      %p110 = scmp.ne.s32.totalorder %s93, %s109
      %p111 = scmp.eq.s32.totalorder %s17, 0
      %p112 = por %p110, %p111
      %p113 = scmp.le.s32.totalorder 1, %s11
      %p114 = scmp.lt.s32.totalorder %s11, 3
      %p115 = pnand %p113, %p114
      %p116 = pneg %p115
      // Predicated region
      $region9: #{policy_network_forward.4} parent=5 // pred_check
        _
      $region10: #{policy_network_forward.4} parent=5 // pred_check_branch
        %118 = sbr.rel (%p115) target = $region12
      $region11: #{policy_network_forward.4} parent=5 // pred_region
        %s119 = ssub.s32 %s11, 1
        // Predicated region
        $region13: #{policy_network_forward.4} parent=11 // pred_check
          %p120 = pneg %p58
        $region14: #{policy_network_forward.4} parent=11 // pred_check_branch
          %122 = sbr.rel (%p120) target = $region16
        $region15: #{policy_network_forward.4} parent=11 // pred_region
          %124 = vsyncadd [#allocation3], 0
          %s125 = sshll.u32 %s1, 4
          %s126 = int_to_ptr.hbm [resolvable:$true] %s125
          %s127 = sshll.u32 [#allocation2], 4
          %s128 = int_to_ptr.vmem [resolvable:$true] %s127
          %133 = dma.hbm_to_vmem [thread:$0]  %s126, 256, %s128, [#allocation3], 64, 64, 4
        $region16: #{policy_network_forward.4} parent=11 // pred_fallthru
          _
        // Predicated region
        $region17: #{policy_network_forward.4} parent=11 // pred_check
          %p134 = pneg %p79
        $region18: #{policy_network_forward.4} parent=11 // pred_check_branch
          %136 = sbr.rel (%p134) target = $region20
        $region19: #{policy_network_forward.4} parent=11 // pred_region
          %138 = vsyncadd [#allocation5], 0
          %s140 = sshll.u32 %s2, 4
          %s141 = int_to_ptr.hbm [resolvable:$true] %s140
          %s142 = sshll.u32 [#allocation4], 4
          %s143 = int_to_ptr.vmem [resolvable:$true] %s142
          %145 = dma.hbm_to_vmem [thread:$0]  %s141, 16, %s143, [#allocation5]
        $region20: #{policy_network_forward.4} parent=11 // pred_fallthru
          _
      $region12: #{policy_network_forward.4} parent=5 // pred_fallthru
        _
      %p146 = scmp.lt.s32.totalorder %s11, 2
      // Predicated region
      $region21: #{policy_network_forward.4} parent=5 // pred_check
        %p147 = pneg %p146
      $region22: #{policy_network_forward.4} parent=5 // pred_check_branch
        %149 = sbr.rel (%p147) target = $region24
      $region23: #{policy_network_forward.4} parent=5 // pred_region
        // Predicated region
        $region25: #{policy_network_forward.4} parent=23 // pred_check
          %p150 = pneg %p31
        $region26: #{policy_network_forward.4} parent=23 // pred_check_branch
          %152 = sbr.rel (%p150) target = $region28
        $region27: #{policy_network_forward.4} parent=23 // pred_region
          %s153 = smul.u32 64, %s11
          %s154 = ssub.s32 111, %s153
          %p155 = scmp.lt.s32.totalorder %s154, 64
          %s156 = scalar_select %p155, %s154, 64
          %s157 = smul.u32 8, %s156
          %p158 = scmp.lt.s32.totalorder %s153, 110
          %s159 = scalar_select %p158, %s153, 110
          %s160 = smul.addr %s159, 8
          %s161 = scalar_lea.vmem %s0, %s160
          %s162 = smul.u32 64, %s11
          %s163 = ssub.s32 111, %s162
          %p164 = scmp.lt.s32.totalorder %s163, 64
          %s165 = scalar_select %p164, %s163, 64
          %s166 = smul.u32 8, %s165
        $region28: #{policy_network_forward.4} parent=23 // pred_fallthru
          _
      $region24: #{policy_network_forward.4} parent=5 // pred_fallthru
        _
      %p167 = scmp.le.s32.totalorder 1, %s11
      %p168 = scmp.lt.s32.totalorder %s11, 3
      %p169 = pnand %p167, %p168
      %p170 = pneg %p169
      // Predicated region
      $region29: #{policy_network_forward.4} parent=5 // pred_check
        _
      $region30: #{policy_network_forward.4} parent=5 // pred_check_branch
        %172 = sbr.rel (%p169) target = $region32
      $region31: #{policy_network_forward.4} parent=5 // pred_region
        %s173 = ssub.s32 %s11, 1
        // Predicated region
        $region33: #{policy_network_forward.4} parent=31 // pred_check
          %p174 = pneg %p58
        $region34: #{policy_network_forward.4} parent=31 // pred_check_branch
          %176 = sbr.rel (%p174) target = $region36
        $region35: #{policy_network_forward.4} parent=31 // pred_region
          %178 = dma.done [#allocation3], 256
        $region36: #{policy_network_forward.4} parent=31 // pred_fallthru
          _
        // Predicated region
        $region37: #{policy_network_forward.4} parent=31 // pred_check
          %p179 = pneg %p79
        $region38: #{policy_network_forward.4} parent=31 // pred_check_branch
          %181 = sbr.rel (%p179) target = $region40
        $region39: #{policy_network_forward.4} parent=31 // pred_region
          %183 = dma.done [#allocation5], 16
        $region40: #{policy_network_forward.4} parent=31 // pred_fallthru
          _
        %s184 = smul.u32 64, %s16
        %s185 = ssub.s32 111, %s184
        %p186 = scmp.lt.s32.totalorder %s185, 64
        %s187 = scalar_select %p186, %s185, 64
        %s188 = smul.u32 8, %s187
        %p189 = scmp.lt.s32.totalorder %s184, 110
        %s190 = scalar_select %p189, %s184, 110
        %s191 = smul.addr %s190, 8
        %s192 = scalar_lea.vmem %s0, %s191
        %p193 = pneg %p37
        %p194 = pneg %p34
        %p195 = pneg %p58
        %p196 = pneg %p55
        %p197 = pneg %p79
        %p198 = pneg %p76
        %p199 = pneg %p105
        %p200 = pneg %p102
        %s201 = sand.u32 %s92, 1
        %s202 = sand.u32 %s92, 1
        %s203 = smul.addr %s202, 512
        %s204 = scalar_lea.vmem [#allocation6], %s203
        %s205 = smul.u32 64, %s16
        %s206 = ssub.s32 111, %s205
        %p207 = scmp.lt.s32.totalorder %s206, 64
        %s208 = scalar_select %p207, %s206, 64
        %s209 = smul.u32 8, %s208
        %p210 = scmp.lt.s32.totalorder %s205, 110
        %s211 = scalar_select %p210, %s205, 110
        %s212 = smul.addr %s211, 8
        %s213 = scalar_lea.vmem %s0, %s212
        %s214 = smul.u32 64, %s16
        %s215 = ssub.s32 111, %s214
        %p216 = scmp.lt.s32.totalorder %s215, 64
        %s217 = scalar_select %p216, %s215, 64
        %s218 = smul.u32 8, %s217
        %s219 = smul.u32 64, %s16
        %s220 = ssub.s32 111, %s219
        %p221 = scmp.lt.s32.totalorder %s220, 64
        %s222 = scalar_select %p221, %s220, 64
        %s223 = smul.u32 8, %s222
        %v225 = vld [vmem:[%s213] sm:$0xff]
        %v226 = vld [vmem:[%s213 + $0x8] sm:$0xff]
        %v227 = vld [vmem:[%s213 + $0x10] sm:$0xff]
        %v228 = vld [vmem:[%s213 + $0x18] sm:$0xff]
        %v229 = vld [vmem:[%s213 + $0x20] sm:$0xff]
        %v230 = vld [vmem:[%s213 + $0x28] sm:$0xff]
        %v231 = vld [vmem:[%s213 + $0x30] sm:$0xff]
        %v232 = vld [vmem:[%s213 + $0x38] sm:$0xff]
        %v233 = vld [vmem:[%s213 + $0x40] sm:$0xff]
        %v234 = vld [vmem:[%s213 + $0x48] sm:$0xff]
        %v235 = vld [vmem:[%s213 + $0x50] sm:$0xff]
        %v236 = vld [vmem:[%s213 + $0x58] sm:$0xff]
        %v237 = vld [vmem:[%s213 + $0x60] sm:$0xff]
        %v238 = vld [vmem:[%s213 + $0x68] sm:$0xff]
        %v239 = vld [vmem:[%s213 + $0x70] sm:$0xff]
        %v240 = vld [vmem:[%s213 + $0x78] sm:$0xff]
        %v241 = vld [vmem:[%s213 + $0x80] sm:$0xff]
        %v242 = vld [vmem:[%s213 + $0x88] sm:$0xff]
        %v243 = vld [vmem:[%s213 + $0x90] sm:$0xff]
        %v244 = vld [vmem:[%s213 + $0x98] sm:$0xff]
        %v245 = vld [vmem:[%s213 + $0xa0] sm:$0xff]
        %v246 = vld [vmem:[%s213 + $0xa8] sm:$0xff]
        %v247 = vld [vmem:[%s213 + $0xb0] sm:$0xff]
        %v248 = vld [vmem:[%s213 + $0xb8] sm:$0xff]
        %v249 = vld [vmem:[%s213 + $0xc0] sm:$0xff]
        %v250 = vld [vmem:[%s213 + $0xc8] sm:$0xff]
        %v251 = vld [vmem:[%s213 + $0xd0] sm:$0xff]
        %v252 = vld [vmem:[%s213 + $0xd8] sm:$0xff]
        %v253 = vld [vmem:[%s213 + $0xe0] sm:$0xff]
        %v254 = vld [vmem:[%s213 + $0xe8] sm:$0xff]
        %v255 = vld [vmem:[%s213 + $0xf0] sm:$0xff]
        %v256 = vld [vmem:[%s213 + $0xf8] sm:$0xff]
        %v257 = vld [vmem:[%s213 + $0x100] sm:$0xff]
        %v258 = vld [vmem:[%s213 + $0x108] sm:$0xff]
        %v259 = vld [vmem:[%s213 + $0x110] sm:$0xff]
        %v260 = vld [vmem:[%s213 + $0x118] sm:$0xff]
        %v261 = vld [vmem:[%s213 + $0x120] sm:$0xff]
        %v262 = vld [vmem:[%s213 + $0x128] sm:$0xff]
        %v263 = vld [vmem:[%s213 + $0x130] sm:$0xff]
        %v264 = vld [vmem:[%s213 + $0x138] sm:$0xff]
        %v265 = vld [vmem:[%s213 + $0x140] sm:$0xff]
        %v266 = vld [vmem:[%s213 + $0x148] sm:$0xff]
        %v267 = vld [vmem:[%s213 + $0x150] sm:$0xff]
        %v268 = vld [vmem:[%s213 + $0x158] sm:$0xff]
        %v269 = vld [vmem:[%s213 + $0x160] sm:$0xff]
        %v270 = vld [vmem:[%s213 + $0x168] sm:$0xff]
        %v271 = vld [vmem:[%s213 + $0x170] sm:$0xff]
        %v272 = vld [vmem:[%s213 + $0x178] sm:$0xff]
        %v273 = vld [vmem:[%s213 + $0x180] sm:$0xff]
        %v274 = vld [vmem:[%s213 + $0x188] sm:$0xff]
        %v275 = vld [vmem:[%s213 + $0x190] sm:$0xff]
        %v276 = vld [vmem:[%s213 + $0x198] sm:$0xff]
        %v277 = vld [vmem:[%s213 + $0x1a0] sm:$0xff]
        %v278 = vld [vmem:[%s213 + $0x1a8] sm:$0xff]
        %v279 = vld [vmem:[%s213 + $0x1b0] sm:$0xff]
        %v280 = vld [vmem:[%s213 + $0x1b8] sm:$0xff]
        %v281 = vld [vmem:[%s213 + $0x1c0] sm:$0xff]
        %v282 = vld [vmem:[%s213 + $0x1c8] sm:$0xff]
        %v283 = vld [vmem:[%s213 + $0x1d0] sm:$0xff]
        %v284 = vld [vmem:[%s213 + $0x1d8] sm:$0xff]
        %v285 = vld [vmem:[%s213 + $0x1e0] sm:$0xff]
        %v286 = vld [vmem:[%s213 + $0x1e8] sm:$0xff]
        %v287 = vld [vmem:[%s213 + $0x1f0] sm:$0xff]
        %v288 = vld [vmem:[%s213 + $0x1f8] sm:$0xff]
        %v289 = vpack.c.bf16 %v226, %v225
        %v290 = vpack.c.bf16 %v228, %v227
        %v291 = vpack.c.bf16 %v230, %v229
        %v292 = vpack.c.bf16 %v232, %v231
        %v293 = vpack.c.bf16 %v234, %v233
        %v294 = vpack.c.bf16 %v236, %v235
        %v295 = vpack.c.bf16 %v238, %v237
        %v296 = vpack.c.bf16 %v240, %v239
        %v297 = vpack.c.bf16 %v242, %v241
        %v298 = vpack.c.bf16 %v244, %v243
        %v299 = vpack.c.bf16 %v246, %v245
        %v300 = vpack.c.bf16 %v248, %v247
        %v301 = vpack.c.bf16 %v250, %v249
        %v302 = vpack.c.bf16 %v252, %v251
        %v303 = vpack.c.bf16 %v254, %v253
        %v304 = vpack.c.bf16 %v256, %v255
        %v305 = vpack.c.bf16 %v258, %v257
        %v306 = vpack.c.bf16 %v260, %v259
        %v307 = vpack.c.bf16 %v262, %v261
        %v308 = vpack.c.bf16 %v264, %v263
        %v309 = vpack.c.bf16 %v266, %v265
        %v310 = vpack.c.bf16 %v268, %v267
        %v311 = vpack.c.bf16 %v270, %v269
        %v312 = vpack.c.bf16 %v272, %v271
        %v313 = vpack.c.bf16 %v274, %v273
        %v314 = vpack.c.bf16 %v276, %v275
        %v315 = vpack.c.bf16 %v278, %v277
        %v316 = vpack.c.bf16 %v280, %v279
        %v317 = vpack.c.bf16 %v282, %v281
        %v318 = vpack.c.bf16 %v284, %v283
        %v319 = vpack.c.bf16 %v286, %v285
        %v320 = vpack.c.bf16 %v288, %v287
        %v321 = vld [vmem:[#allocation2] sm:$0xf]
        %v322 = vld [vmem:[#allocation2 + $0x4] sm:$0xf]
        %v323 = vld [vmem:[#allocation2 + $0x8] sm:$0xf]
        %v324 = vld [vmem:[#allocation2 + $0xc] sm:$0xf]
        %v325 = vld [vmem:[#allocation4] sm:$0x1]
        %v327 = vperm.slane %v325, 0
        %v333 = vunpack.c.l.b16 %v321
        %v334 = vunpack.c.l.b16 %v322
        %v335 = vunpack.c.l.b16 %v323
        %v336 = vunpack.c.l.b16 %v324
        %v337 = vpack.c.b16 %v334, %v333
        %v338 = vpack.c.b16 %v336, %v335
        %vm341 = vcmask 261120
        %v343 = vsel %vm341, %v289, 0
        %v346 = vsel %vm341, %v290, 0
        %v349 = vsel %vm341, %v291, 0
        %v352 = vsel %vm341, %v292, 0
        %v355 = vsel %vm341, %v293, 0
        %v358 = vsel %vm341, %v294, 0
        %v361 = vsel %vm341, %v295, 0
        %v364 = vsel %vm341, %v296, 0
        %v367 = vsel %vm341, %v297, 0
        %v370 = vsel %vm341, %v298, 0
        %v373 = vsel %vm341, %v299, 0
        %v376 = vsel %vm341, %v300, 0
        %v379 = vsel %vm341, %v301, 0
        %v382 = vsel %vm341, %v302, 0
        %v385 = vsel %vm341, %v303, 0
        %v388 = vsel %vm341, %v304, 0
        %v391 = vsel %vm341, %v305, 0
        %v394 = vsel %vm341, %v306, 0
        %v397 = vsel %vm341, %v307, 0
        %v400 = vsel %vm341, %v308, 0
        %v403 = vsel %vm341, %v309, 0
        %v406 = vsel %vm341, %v310, 0
        %v409 = vsel %vm341, %v311, 0
        %v412 = vsel %vm341, %v312, 0
        %v415 = vsel %vm341, %v313, 0
        %v418 = vsel %vm341, %v314, 0
        %v421 = vsel %vm341, %v315, 0
        %v424 = vsel %vm341, %v316, 0
        %v427 = vsel %vm341, %v317, 0
        %v430 = vsel %vm341, %v318, 0
        %v433 = vsel %vm341, %v319, 0
        %v436 = vsel %vm341, %v320, 0
        %438 = vmatpush.bf16.msra.mxu0 0
        %439 = vmatpush.bf16.msra.mxu0 0
        %440 = vmatpush.bf16.msra.mxu0 0
        %441 = vmatpush.bf16.msra.mxu0 0
        %442 = vmatpush.bf16.msra.mxu0 0
        %443 = vmatpush.bf16.msra.mxu0 0
        %444 = vmatpush.bf16.msra.mxu0 %v338
        %445 = vmatpush.bf16.msra.mxu0 %v337
        %446 = vmatmul.bf16.gmra.mxu0 %v343
        %v447 = vpop.f32.mrf.mxu0
        %v448 = vadd.f32 %v327, %v447
        %v449 = vpop.f32.mrf.mxu0
        %v450 = vadd.f32 %v327, %v449
        %451 = vmatmul.bf16.gmra.mxu0 %v346
        %v452 = vpop.f32.mrf.mxu0
        %v453 = vadd.f32 %v327, %v452
        %v454 = vpop.f32.mrf.mxu0
        %v455 = vadd.f32 %v327, %v454
        %456 = vmatmul.bf16.gmra.mxu0 %v349
        %v457 = vpop.f32.mrf.mxu0
        %v458 = vadd.f32 %v327, %v457
        %v459 = vpop.f32.mrf.mxu0
        %v460 = vadd.f32 %v327, %v459
        %461 = vmatmul.bf16.gmra.mxu0 %v352
        %v462 = vpop.f32.mrf.mxu0
        %v463 = vadd.f32 %v327, %v462
        %v464 = vpop.f32.mrf.mxu0
        %v465 = vadd.f32 %v327, %v464
        %466 = vmatmul.bf16.gmra.mxu0 %v355
        %v467 = vpop.f32.mrf.mxu0
        %v468 = vadd.f32 %v327, %v467
        %v469 = vpop.f32.mrf.mxu0
        %v470 = vadd.f32 %v327, %v469
        %471 = vmatmul.bf16.gmra.mxu0 %v358
        %v472 = vpop.f32.mrf.mxu0
        %v473 = vadd.f32 %v327, %v472
        %v474 = vpop.f32.mrf.mxu0
        %v475 = vadd.f32 %v327, %v474
        %476 = vmatmul.bf16.gmra.mxu0 %v361
        %v477 = vpop.f32.mrf.mxu0
        %v478 = vadd.f32 %v327, %v477
        %v479 = vpop.f32.mrf.mxu0
        %v480 = vadd.f32 %v327, %v479
        %481 = vmatmul.bf16.gmra.mxu0 %v364
        %v482 = vpop.f32.mrf.mxu0
        %v483 = vadd.f32 %v327, %v482
        %v484 = vpop.f32.mrf.mxu0
        %v485 = vadd.f32 %v327, %v484
        %486 = vmatmul.bf16.gmra.mxu0 %v367
        %v487 = vpop.f32.mrf.mxu0
        %v488 = vadd.f32 %v327, %v487
        %v489 = vpop.f32.mrf.mxu0
        %v490 = vadd.f32 %v327, %v489
        %491 = vmatmul.bf16.gmra.mxu0 %v370
        %v492 = vpop.f32.mrf.mxu0
        %v493 = vadd.f32 %v327, %v492
        %v494 = vpop.f32.mrf.mxu0
        %v495 = vadd.f32 %v327, %v494
        %496 = vmatmul.bf16.gmra.mxu0 %v373
        %v497 = vpop.f32.mrf.mxu0
        %v498 = vadd.f32 %v327, %v497
        %v499 = vpop.f32.mrf.mxu0
        %v500 = vadd.f32 %v327, %v499
        %501 = vmatmul.bf16.gmra.mxu0 %v376
        %v502 = vpop.f32.mrf.mxu0
        %v503 = vadd.f32 %v327, %v502
        %v504 = vpop.f32.mrf.mxu0
        %v505 = vadd.f32 %v327, %v504
        %506 = vmatmul.bf16.gmra.mxu0 %v379
        %v507 = vpop.f32.mrf.mxu0
        %v508 = vadd.f32 %v327, %v507
        %v509 = vpop.f32.mrf.mxu0
        %v510 = vadd.f32 %v327, %v509
        %511 = vmatmul.bf16.gmra.mxu0 %v382
        %v512 = vpop.f32.mrf.mxu0
        %v513 = vadd.f32 %v327, %v512
        %v514 = vpop.f32.mrf.mxu0
        %v515 = vadd.f32 %v327, %v514
        %516 = vmatmul.bf16.gmra.mxu0 %v385
        %v517 = vpop.f32.mrf.mxu0
        %v518 = vadd.f32 %v327, %v517
        %v519 = vpop.f32.mrf.mxu0
        %v520 = vadd.f32 %v327, %v519
        %521 = vmatmul.bf16.gmra.mxu0 %v388
        %v522 = vpop.f32.mrf.mxu0
        %v523 = vadd.f32 %v327, %v522
        %v524 = vpop.f32.mrf.mxu0
        %v525 = vadd.f32 %v327, %v524
        %526 = vmatmul.bf16.gmra.mxu0 %v391
        %v527 = vpop.f32.mrf.mxu0
        %v528 = vadd.f32 %v327, %v527
        %v529 = vpop.f32.mrf.mxu0
        %v530 = vadd.f32 %v327, %v529
        %531 = vmatmul.bf16.gmra.mxu0 %v394
        %v532 = vpop.f32.mrf.mxu0
        %v533 = vadd.f32 %v327, %v532
        %v534 = vpop.f32.mrf.mxu0
        %v535 = vadd.f32 %v327, %v534
        %536 = vmatmul.bf16.gmra.mxu0 %v397
        %v537 = vpop.f32.mrf.mxu0
        %v538 = vadd.f32 %v327, %v537
        %v539 = vpop.f32.mrf.mxu0
        %v540 = vadd.f32 %v327, %v539
        %541 = vmatmul.bf16.gmra.mxu0 %v400
        %v542 = vpop.f32.mrf.mxu0
        %v543 = vadd.f32 %v327, %v542
        %v544 = vpop.f32.mrf.mxu0
        %v545 = vadd.f32 %v327, %v544
        %546 = vmatmul.bf16.gmra.mxu0 %v403
        %v547 = vpop.f32.mrf.mxu0
        %v548 = vadd.f32 %v327, %v547
        %v549 = vpop.f32.mrf.mxu0
        %v550 = vadd.f32 %v327, %v549
        %551 = vmatmul.bf16.gmra.mxu0 %v406
        %v552 = vpop.f32.mrf.mxu0
        %v553 = vadd.f32 %v327, %v552
        %v554 = vpop.f32.mrf.mxu0
        %v555 = vadd.f32 %v327, %v554
        %556 = vmatmul.bf16.gmra.mxu0 %v409
        %v557 = vpop.f32.mrf.mxu0
        %v558 = vadd.f32 %v327, %v557
        %v559 = vpop.f32.mrf.mxu0
        %v560 = vadd.f32 %v327, %v559
        %561 = vmatmul.bf16.gmra.mxu0 %v412
        %v562 = vpop.f32.mrf.mxu0
        %v563 = vadd.f32 %v327, %v562
        %v564 = vpop.f32.mrf.mxu0
        %v565 = vadd.f32 %v327, %v564
        %566 = vmatmul.bf16.gmra.mxu0 %v415
        %v567 = vpop.f32.mrf.mxu0
        %v568 = vadd.f32 %v327, %v567
        %v569 = vpop.f32.mrf.mxu0
        %v570 = vadd.f32 %v327, %v569
        %571 = vmatmul.bf16.gmra.mxu0 %v418
        %v572 = vpop.f32.mrf.mxu0
        %v573 = vadd.f32 %v327, %v572
        %v574 = vpop.f32.mrf.mxu0
        %v575 = vadd.f32 %v327, %v574
        %576 = vmatmul.bf16.gmra.mxu0 %v421
        %v577 = vpop.f32.mrf.mxu0
        %v578 = vadd.f32 %v327, %v577
        %v579 = vpop.f32.mrf.mxu0
        %v580 = vadd.f32 %v327, %v579
        %581 = vmatmul.bf16.gmra.mxu0 %v424
        %v582 = vpop.f32.mrf.mxu0
        %v583 = vadd.f32 %v327, %v582
        %v584 = vpop.f32.mrf.mxu0
        %v585 = vadd.f32 %v327, %v584
        %586 = vmatmul.bf16.gmra.mxu0 %v427
        %v587 = vpop.f32.mrf.mxu0
        %v588 = vadd.f32 %v327, %v587
        %v589 = vpop.f32.mrf.mxu0
        %v590 = vadd.f32 %v327, %v589
        %591 = vmatmul.bf16.gmra.mxu0 %v430
        %v592 = vpop.f32.mrf.mxu0
        %v593 = vadd.f32 %v327, %v592
        %v594 = vpop.f32.mrf.mxu0
        %v595 = vadd.f32 %v327, %v594
        %596 = vmatmul.bf16.gmra.mxu0 %v433
        %v597 = vpop.f32.mrf.mxu0
        %v598 = vadd.f32 %v327, %v597
        %v599 = vpop.f32.mrf.mxu0
        %v600 = vadd.f32 %v327, %v599
        %601 = vmatmul.bf16.gmra.mxu0 %v436
        %v602 = vpop.f32.mrf.mxu0
        %v603 = vadd.f32 %v327, %v602
        %v604 = vpop.f32.mrf.mxu0
        %v605 = vadd.f32 %v327, %v604
        %606 = vdwg.mxu0
        %v607 = vmax.f32 %v448, 0.0
        %v608 = vmax.f32 %v450, 0.0
        %v609 = vmax.f32 %v453, 0.0
        %v610 = vmax.f32 %v455, 0.0
        %v611 = vmax.f32 %v458, 0.0
        %v612 = vmax.f32 %v460, 0.0
        %v613 = vmax.f32 %v463, 0.0
        %v614 = vmax.f32 %v465, 0.0
        %v615 = vmax.f32 %v468, 0.0
        %v616 = vmax.f32 %v470, 0.0
        %v617 = vmax.f32 %v473, 0.0
        %v618 = vmax.f32 %v475, 0.0
        %v619 = vmax.f32 %v478, 0.0
        %v620 = vmax.f32 %v480, 0.0
        %v621 = vmax.f32 %v483, 0.0
        %v622 = vmax.f32 %v485, 0.0
        %v623 = vmax.f32 %v488, 0.0
        %v624 = vmax.f32 %v490, 0.0
        %v625 = vmax.f32 %v493, 0.0
        %v626 = vmax.f32 %v495, 0.0
        %v627 = vmax.f32 %v498, 0.0
        %v628 = vmax.f32 %v500, 0.0
        %v629 = vmax.f32 %v503, 0.0
        %v630 = vmax.f32 %v505, 0.0
        %v631 = vmax.f32 %v508, 0.0
        %v632 = vmax.f32 %v510, 0.0
        %v633 = vmax.f32 %v513, 0.0
        %v634 = vmax.f32 %v515, 0.0
        %v635 = vmax.f32 %v518, 0.0
        %v636 = vmax.f32 %v520, 0.0
        %v637 = vmax.f32 %v523, 0.0
        %v638 = vmax.f32 %v525, 0.0
        %v639 = vmax.f32 %v528, 0.0
        %v640 = vmax.f32 %v530, 0.0
        %v641 = vmax.f32 %v533, 0.0
        %v642 = vmax.f32 %v535, 0.0
        %v643 = vmax.f32 %v538, 0.0
        %v644 = vmax.f32 %v540, 0.0
        %v645 = vmax.f32 %v543, 0.0
        %v646 = vmax.f32 %v545, 0.0
        %v647 = vmax.f32 %v548, 0.0
        %v648 = vmax.f32 %v550, 0.0
        %v649 = vmax.f32 %v553, 0.0
        %v650 = vmax.f32 %v555, 0.0
        %v651 = vmax.f32 %v558, 0.0
        %v652 = vmax.f32 %v560, 0.0
        %v653 = vmax.f32 %v563, 0.0
        %v654 = vmax.f32 %v565, 0.0
        %v655 = vmax.f32 %v568, 0.0
        %v656 = vmax.f32 %v570, 0.0
        %v657 = vmax.f32 %v573, 0.0
        %v658 = vmax.f32 %v575, 0.0
        %v659 = vmax.f32 %v578, 0.0
        %v660 = vmax.f32 %v580, 0.0
        %v661 = vmax.f32 %v583, 0.0
        %v662 = vmax.f32 %v585, 0.0
        %v663 = vmax.f32 %v588, 0.0
        %v664 = vmax.f32 %v590, 0.0
        %v665 = vmax.f32 %v593, 0.0
        %v666 = vmax.f32 %v595, 0.0
        %v667 = vmax.f32 %v598, 0.0
        %v668 = vmax.f32 %v600, 0.0
        %v669 = vmax.f32 %v603, 0.0
        %v670 = vmax.f32 %v605, 0.0
        %671 = vst.msk [vmem:[%s204] sm:$0xff] %vm341, %v607
        %672 = vst.msk [vmem:[%s204 + $0x8] sm:$0xff] %vm341, %v608
        %673 = vst.msk [vmem:[%s204 + $0x10] sm:$0xff] %vm341, %v609
        %674 = vst.msk [vmem:[%s204 + $0x18] sm:$0xff] %vm341, %v610
        %675 = vst.msk [vmem:[%s204 + $0x20] sm:$0xff] %vm341, %v611
        %676 = vst.msk [vmem:[%s204 + $0x28] sm:$0xff] %vm341, %v612
        %677 = vst.msk [vmem:[%s204 + $0x30] sm:$0xff] %vm341, %v613
        %678 = vst.msk [vmem:[%s204 + $0x38] sm:$0xff] %vm341, %v614
        %679 = vst.msk [vmem:[%s204 + $0x40] sm:$0xff] %vm341, %v615
        %680 = vst.msk [vmem:[%s204 + $0x48] sm:$0xff] %vm341, %v616
        %681 = vst.msk [vmem:[%s204 + $0x50] sm:$0xff] %vm341, %v617
        %682 = vst.msk [vmem:[%s204 + $0x58] sm:$0xff] %vm341, %v618
        %683 = vst.msk [vmem:[%s204 + $0x60] sm:$0xff] %vm341, %v619
        %684 = vst.msk [vmem:[%s204 + $0x68] sm:$0xff] %vm341, %v620
        %685 = vst.msk [vmem:[%s204 + $0x70] sm:$0xff] %vm341, %v621
        %686 = vst.msk [vmem:[%s204 + $0x78] sm:$0xff] %vm341, %v622
        %687 = vst.msk [vmem:[%s204 + $0x80] sm:$0xff] %vm341, %v623
        %688 = vst.msk [vmem:[%s204 + $0x88] sm:$0xff] %vm341, %v624
        %689 = vst.msk [vmem:[%s204 + $0x90] sm:$0xff] %vm341, %v625
        %690 = vst.msk [vmem:[%s204 + $0x98] sm:$0xff] %vm341, %v626
        %691 = vst.msk [vmem:[%s204 + $0xa0] sm:$0xff] %vm341, %v627
        %692 = vst.msk [vmem:[%s204 + $0xa8] sm:$0xff] %vm341, %v628
        %693 = vst.msk [vmem:[%s204 + $0xb0] sm:$0xff] %vm341, %v629
        %694 = vst.msk [vmem:[%s204 + $0xb8] sm:$0xff] %vm341, %v630
        %695 = vst.msk [vmem:[%s204 + $0xc0] sm:$0xff] %vm341, %v631
        %696 = vst.msk [vmem:[%s204 + $0xc8] sm:$0xff] %vm341, %v632
        %697 = vst.msk [vmem:[%s204 + $0xd0] sm:$0xff] %vm341, %v633
        %698 = vst.msk [vmem:[%s204 + $0xd8] sm:$0xff] %vm341, %v634
        %699 = vst.msk [vmem:[%s204 + $0xe0] sm:$0xff] %vm341, %v635
        %700 = vst.msk [vmem:[%s204 + $0xe8] sm:$0xff] %vm341, %v636
        %701 = vst.msk [vmem:[%s204 + $0xf0] sm:$0xff] %vm341, %v637
        %702 = vst.msk [vmem:[%s204 + $0xf8] sm:$0xff] %vm341, %v638
        %703 = vst.msk [vmem:[%s204 + $0x100] sm:$0xff] %vm341, %v639
        %704 = vst.msk [vmem:[%s204 + $0x108] sm:$0xff] %vm341, %v640
        %705 = vst.msk [vmem:[%s204 + $0x110] sm:$0xff] %vm341, %v641
        %706 = vst.msk [vmem:[%s204 + $0x118] sm:$0xff] %vm341, %v642
        %707 = vst.msk [vmem:[%s204 + $0x120] sm:$0xff] %vm341, %v643
        %708 = vst.msk [vmem:[%s204 + $0x128] sm:$0xff] %vm341, %v644
        %709 = vst.msk [vmem:[%s204 + $0x130] sm:$0xff] %vm341, %v645
        %710 = vst.msk [vmem:[%s204 + $0x138] sm:$0xff] %vm341, %v646
        %711 = vst.msk [vmem:[%s204 + $0x140] sm:$0xff] %vm341, %v647
        %712 = vst.msk [vmem:[%s204 + $0x148] sm:$0xff] %vm341, %v648
        %713 = vst.msk [vmem:[%s204 + $0x150] sm:$0xff] %vm341, %v649
        %714 = vst.msk [vmem:[%s204 + $0x158] sm:$0xff] %vm341, %v650
        %715 = vst.msk [vmem:[%s204 + $0x160] sm:$0xff] %vm341, %v651
        %716 = vst.msk [vmem:[%s204 + $0x168] sm:$0xff] %vm341, %v652
        %717 = vst.msk [vmem:[%s204 + $0x170] sm:$0xff] %vm341, %v653
        %718 = vst.msk [vmem:[%s204 + $0x178] sm:$0xff] %vm341, %v654
        %719 = vst.msk [vmem:[%s204 + $0x180] sm:$0xff] %vm341, %v655
        %720 = vst.msk [vmem:[%s204 + $0x188] sm:$0xff] %vm341, %v656
        %721 = vst.msk [vmem:[%s204 + $0x190] sm:$0xff] %vm341, %v657
        %722 = vst.msk [vmem:[%s204 + $0x198] sm:$0xff] %vm341, %v658
        %723 = vst.msk [vmem:[%s204 + $0x1a0] sm:$0xff] %vm341, %v659
        %724 = vst.msk [vmem:[%s204 + $0x1a8] sm:$0xff] %vm341, %v660
        %725 = vst.msk [vmem:[%s204 + $0x1b0] sm:$0xff] %vm341, %v661
        %726 = vst.msk [vmem:[%s204 + $0x1b8] sm:$0xff] %vm341, %v662
        %727 = vst.msk [vmem:[%s204 + $0x1c0] sm:$0xff] %vm341, %v663
        %728 = vst.msk [vmem:[%s204 + $0x1c8] sm:$0xff] %vm341, %v664
        %729 = vst.msk [vmem:[%s204 + $0x1d0] sm:$0xff] %vm341, %v665
        %730 = vst.msk [vmem:[%s204 + $0x1d8] sm:$0xff] %vm341, %v666
        %731 = vst.msk [vmem:[%s204 + $0x1e0] sm:$0xff] %vm341, %v667
        %732 = vst.msk [vmem:[%s204 + $0x1e8] sm:$0xff] %vm341, %v668
        %733 = vst.msk [vmem:[%s204 + $0x1f0] sm:$0xff] %vm341, %v669
        %734 = vst.msk [vmem:[%s204 + $0x1f8] sm:$0xff] %vm341, %v670
        %s735 = sand.u32 %s92, 1
        %s736 = sand.u32 %s92, 1
        %s737 = smul.addr %s736, 512
        %s738 = scalar_lea.vmem [#allocation6], %s737
        // Predicated region
        $region41: #{policy_network_forward.4} parent=31 // pred_check
          %p739 = pneg %p102
        $region42: #{policy_network_forward.4} parent=31 // pred_check_branch
          %741 = sbr.rel (%p739) target = $region44
        $region43: #{policy_network_forward.4} parent=31 // pred_region
          %s742 = smul.u32 64, %s16
          %s743 = ssub.s32 111, %s742
          %p744 = scmp.lt.s32.totalorder %s743, 64
          %s745 = scalar_select %p744, %s743, 64
          %s746 = smul.u32 8, %s745
          %p747 = scmp.ne.s32.totalorder 0, %s746
          %s748 = smul.addr %s742, 8
          %s749 = scalar_lea.vmem %s3, %s748
          // Predicated region
          $region45: #{policy_network_forward.4} parent=43 // pred_check
            %p750 = pneg %p747
          $region46: #{policy_network_forward.4} parent=43 // pred_check_branch
            %752 = sbr.rel (%p750) target = $region48
          $region47: #{policy_network_forward.4} parent=43 // pred_region
            // Predicated region
            $region49: #{policy_network_forward.4} parent=47 // pred_check
              _
            $region50: #{policy_network_forward.4} parent=47 // pred_check_branch
              %754 = sbr.rel (0) target = $region52
            $region51: #{policy_network_forward.4} parent=47 // pred_region
              // Predicated region
              $region71: #{policy_network_forward.4} parent=51 // pred_check
                _
              $region72: #{policy_network_forward.4} parent=51 // pred_check_branch
                %866 = sbr.rel (0) target = $region74
              $region73: #{policy_network_forward.4} parent=51 // pred_region
                %s867 = sshrl.u32 %s745, 5
                // While loop
                $region75: #{policy_network_forward.4} parent=73 // loop_pre_header
                  _
                $region76: #{policy_network_forward.4} parent=73 // loop_header
                  %s869 = sphi 0, %s871
                  %p870 = scmp.ge.s32.totalorder %s869, %s867
                  %s874 = sphi 0, %s943
                  %s875 = sphi %s738, %s946
                  %s876 = sphi %s749, %s947
                $region77: #{policy_network_forward.4} parent=73 // loop_header_branch
                  %873 = sbr.rel (%p870) target = $region81
                $region78: #{policy_network_forward.4} parent=73 // loop_body
                  %v877 = vld [vmem:[%s875] sm:$0xff]
                  %878 = vst [vmem:[%s876] sm:$0xff] %v877
                  %v879 = vld [vmem:[%s875 + $0x8] sm:$0xff]
                  %880 = vst [vmem:[%s876 + $0x8] sm:$0xff] %v879
                  %v881 = vld [vmem:[%s875 + $0x10] sm:$0xff]
                  %882 = vst [vmem:[%s876 + $0x10] sm:$0xff] %v881
                  %v883 = vld [vmem:[%s875 + $0x18] sm:$0xff]
                  %884 = vst [vmem:[%s876 + $0x18] sm:$0xff] %v883
                  %v885 = vld [vmem:[%s875 + $0x20] sm:$0xff]
                  %886 = vst [vmem:[%s876 + $0x20] sm:$0xff] %v885
                  %v887 = vld [vmem:[%s875 + $0x28] sm:$0xff]
                  %888 = vst [vmem:[%s876 + $0x28] sm:$0xff] %v887
                  %v889 = vld [vmem:[%s875 + $0x30] sm:$0xff]
                  %890 = vst [vmem:[%s876 + $0x30] sm:$0xff] %v889
                  %v891 = vld [vmem:[%s875 + $0x38] sm:$0xff]
                  %892 = vst [vmem:[%s876 + $0x38] sm:$0xff] %v891
                  %v893 = vld [vmem:[%s875 + $0x40] sm:$0xff]
                  %894 = vst [vmem:[%s876 + $0x40] sm:$0xff] %v893
                  %v895 = vld [vmem:[%s875 + $0x48] sm:$0xff]
                  %896 = vst [vmem:[%s876 + $0x48] sm:$0xff] %v895
                  %v897 = vld [vmem:[%s875 + $0x50] sm:$0xff]
                  %898 = vst [vmem:[%s876 + $0x50] sm:$0xff] %v897
                  %v899 = vld [vmem:[%s875 + $0x58] sm:$0xff]
                  %900 = vst [vmem:[%s876 + $0x58] sm:$0xff] %v899
                  %v901 = vld [vmem:[%s875 + $0x60] sm:$0xff]
                  %902 = vst [vmem:[%s876 + $0x60] sm:$0xff] %v901
                  %v903 = vld [vmem:[%s875 + $0x68] sm:$0xff]
                  %904 = vst [vmem:[%s876 + $0x68] sm:$0xff] %v903
                  %v905 = vld [vmem:[%s875 + $0x70] sm:$0xff]
                  %906 = vst [vmem:[%s876 + $0x70] sm:$0xff] %v905
                  %v907 = vld [vmem:[%s875 + $0x78] sm:$0xff]
                  %908 = vst [vmem:[%s876 + $0x78] sm:$0xff] %v907
                  %v909 = vld [vmem:[%s875 + $0x80] sm:$0xff]
                  %910 = vst [vmem:[%s876 + $0x80] sm:$0xff] %v909
                  %v911 = vld [vmem:[%s875 + $0x88] sm:$0xff]
                  %912 = vst [vmem:[%s876 + $0x88] sm:$0xff] %v911
                  %v913 = vld [vmem:[%s875 + $0x90] sm:$0xff]
                  %914 = vst [vmem:[%s876 + $0x90] sm:$0xff] %v913
                  %v915 = vld [vmem:[%s875 + $0x98] sm:$0xff]
                  %916 = vst [vmem:[%s876 + $0x98] sm:$0xff] %v915
                  %v917 = vld [vmem:[%s875 + $0xa0] sm:$0xff]
                  %918 = vst [vmem:[%s876 + $0xa0] sm:$0xff] %v917
                  %v919 = vld [vmem:[%s875 + $0xa8] sm:$0xff]
                  %920 = vst [vmem:[%s876 + $0xa8] sm:$0xff] %v919
                  %v921 = vld [vmem:[%s875 + $0xb0] sm:$0xff]
                  %922 = vst [vmem:[%s876 + $0xb0] sm:$0xff] %v921
                  %v923 = vld [vmem:[%s875 + $0xb8] sm:$0xff]
                  %924 = vst [vmem:[%s876 + $0xb8] sm:$0xff] %v923
                  %v925 = vld [vmem:[%s875 + $0xc0] sm:$0xff]
                  %926 = vst [vmem:[%s876 + $0xc0] sm:$0xff] %v925
                  %v927 = vld [vmem:[%s875 + $0xc8] sm:$0xff]
                  %928 = vst [vmem:[%s876 + $0xc8] sm:$0xff] %v927
                  %v929 = vld [vmem:[%s875 + $0xd0] sm:$0xff]
                  %930 = vst [vmem:[%s876 + $0xd0] sm:$0xff] %v929
                  %v931 = vld [vmem:[%s875 + $0xd8] sm:$0xff]
                  %932 = vst [vmem:[%s876 + $0xd8] sm:$0xff] %v931
                  %v933 = vld [vmem:[%s875 + $0xe0] sm:$0xff]
                  %934 = vst [vmem:[%s876 + $0xe0] sm:$0xff] %v933
                  %v935 = vld [vmem:[%s875 + $0xe8] sm:$0xff]
                  %936 = vst [vmem:[%s876 + $0xe8] sm:$0xff] %v935
                  %v937 = vld [vmem:[%s875 + $0xf0] sm:$0xff]
                  %938 = vst [vmem:[%s876 + $0xf0] sm:$0xff] %v937
                  %v939 = vld [vmem:[%s875 + $0xf8] sm:$0xff]
                  %940 = vst [vmem:[%s876 + $0xf8] sm:$0xff] %v939
                  %s941 = sadd.s32 1, %s874
                  %p942 = scmp.ge.s32.totalorder %s941, %s867
                  %s943 = scalar_select %p942, 0, %s941
                  %s944 = smul.u32 %s943, 256
                  %s945 = smul.u32 %s943, 256
                  %s946 = scalar_lea.vmem %s738, %s944 [#allocation6]
                  %s947 = scalar_lea.vmem %s749, %s945
                $region79: #{policy_network_forward.4} parent=73 // loop_footer
                  %s871 = sadd.s32 %s869, 1
                $region80: #{policy_network_forward.4} parent=73 // loop_footer_branch
                  %868 = sbr.rel target = $region76
                $region81: #{policy_network_forward.4} parent=73 // loop_exit
                  _
                %s948 = sshrl.u32 %s745, 5
                %s949 = sand.u32 %s745, 31
                %s950 = smul.u32 %s948, 32
                %s951 = smul.u32 8, %s950
                %s952 = scalar_lea.vmem %s738, %s951 [#allocation6]
                %s953 = smul.u32 8, %s950
                %s954 = scalar_lea.vmem %s749, %s953
                // While loop
                $region82: #{policy_network_forward.4} parent=73 // loop_pre_header
                  _
                $region83: #{policy_network_forward.4} parent=73 // loop_header
                  %s956 = sphi 0, %s958
                  %p957 = scmp.ge.s32.totalorder %s956, %s949
                  %s961 = sphi 0, %s968
                  %s962 = sphi %s952, %s971
                  %s963 = sphi %s954, %s972
                $region84: #{policy_network_forward.4} parent=73 // loop_header_branch
                  %960 = sbr.rel (%p957) target = $region88
                $region85: #{policy_network_forward.4} parent=73 // loop_body
                  %v964 = vld [vmem:[%s962] sm:$0xff]
                  %965 = vst [vmem:[%s963] sm:$0xff] %v964
                  %s966 = sadd.s32 1, %s961
                  %p967 = scmp.ge.s32.totalorder %s966, %s949
                  %s968 = scalar_select %p967, 0, %s966
                  %s969 = smul.u32 %s968, 8
                  %s970 = smul.u32 %s968, 8
                  %s971 = scalar_lea.vmem %s952, %s969 [#allocation6]
                  %s972 = scalar_lea.vmem %s954, %s970
                $region86: #{policy_network_forward.4} parent=73 // loop_footer
                  %s958 = sadd.s32 %s956, 1
                $region87: #{policy_network_forward.4} parent=73 // loop_footer_branch
                  %955 = sbr.rel target = $region83
                $region88: #{policy_network_forward.4} parent=73 // loop_exit
                  _
              $region74: #{policy_network_forward.4} parent=51 // pred_fallthru
                _
              // Predicated region
              $region89: #{policy_network_forward.4} parent=51 // pred_check
                _
              $region90: #{policy_network_forward.4} parent=51 // pred_check_branch
                %974 = sbr.rel target = $region92
              $region91: #{policy_network_forward.4} parent=51 // pred_region
                _
              $region92: #{policy_network_forward.4} parent=51 // pred_fallthru
                _
            $region52: #{policy_network_forward.4} parent=47 // pred_fallthru
              _
            // Predicated region
            $region53: #{policy_network_forward.4} parent=47 // pred_check
              _
            $region54: #{policy_network_forward.4} parent=47 // pred_check_branch
              %756 = sbr.rel target = $region56
            $region55: #{policy_network_forward.4} parent=47 // pred_region
              %s758 = ssub.s32 256, 1
              %s759 = sshrl.u32 %s745, 5
              // While loop
              $region57: #{policy_network_forward.4} parent=55 // loop_pre_header
                _
              $region58: #{policy_network_forward.4} parent=55 // loop_header
                %s761 = sphi 0, %s763
                %p762 = scmp.ge.s32.totalorder %s761, %s759
                %s766 = sphi 0, %s835
                %s767 = sphi %s738, %s838
                %s768 = sphi %s749, %s839
              $region59: #{policy_network_forward.4} parent=55 // loop_header_branch
                %765 = sbr.rel (%p762) target = $region63
              $region60: #{policy_network_forward.4} parent=55 // loop_body
                %v769 = vld [vmem:[%s767] sm:%s758]
                %770 = vst [vmem:[%s768] sm:%s758] %v769
                %v771 = vld [vmem:[%s767 + $0x8] sm:%s758]
                %772 = vst [vmem:[%s768 + $0x8] sm:%s758] %v771
                %v773 = vld [vmem:[%s767 + $0x10] sm:%s758]
                %774 = vst [vmem:[%s768 + $0x10] sm:%s758] %v773
                %v775 = vld [vmem:[%s767 + $0x18] sm:%s758]
                %776 = vst [vmem:[%s768 + $0x18] sm:%s758] %v775
                %v777 = vld [vmem:[%s767 + $0x20] sm:%s758]
                %778 = vst [vmem:[%s768 + $0x20] sm:%s758] %v777
                %v779 = vld [vmem:[%s767 + $0x28] sm:%s758]
                %780 = vst [vmem:[%s768 + $0x28] sm:%s758] %v779
                %v781 = vld [vmem:[%s767 + $0x30] sm:%s758]
                %782 = vst [vmem:[%s768 + $0x30] sm:%s758] %v781
                %v783 = vld [vmem:[%s767 + $0x38] sm:%s758]
                %784 = vst [vmem:[%s768 + $0x38] sm:%s758] %v783
                %v785 = vld [vmem:[%s767 + $0x40] sm:%s758]
                %786 = vst [vmem:[%s768 + $0x40] sm:%s758] %v785
                %v787 = vld [vmem:[%s767 + $0x48] sm:%s758]
                %788 = vst [vmem:[%s768 + $0x48] sm:%s758] %v787
                %v789 = vld [vmem:[%s767 + $0x50] sm:%s758]
                %790 = vst [vmem:[%s768 + $0x50] sm:%s758] %v789
                %v791 = vld [vmem:[%s767 + $0x58] sm:%s758]
                %792 = vst [vmem:[%s768 + $0x58] sm:%s758] %v791
                %v793 = vld [vmem:[%s767 + $0x60] sm:%s758]
                %794 = vst [vmem:[%s768 + $0x60] sm:%s758] %v793
                %v795 = vld [vmem:[%s767 + $0x68] sm:%s758]
                %796 = vst [vmem:[%s768 + $0x68] sm:%s758] %v795
                %v797 = vld [vmem:[%s767 + $0x70] sm:%s758]
                %798 = vst [vmem:[%s768 + $0x70] sm:%s758] %v797
                %v799 = vld [vmem:[%s767 + $0x78] sm:%s758]
                %800 = vst [vmem:[%s768 + $0x78] sm:%s758] %v799
                %v801 = vld [vmem:[%s767 + $0x80] sm:%s758]
                %802 = vst [vmem:[%s768 + $0x80] sm:%s758] %v801
                %v803 = vld [vmem:[%s767 + $0x88] sm:%s758]
                %804 = vst [vmem:[%s768 + $0x88] sm:%s758] %v803
                %v805 = vld [vmem:[%s767 + $0x90] sm:%s758]
                %806 = vst [vmem:[%s768 + $0x90] sm:%s758] %v805
                %v807 = vld [vmem:[%s767 + $0x98] sm:%s758]
                %808 = vst [vmem:[%s768 + $0x98] sm:%s758] %v807
                %v809 = vld [vmem:[%s767 + $0xa0] sm:%s758]
                %810 = vst [vmem:[%s768 + $0xa0] sm:%s758] %v809
                %v811 = vld [vmem:[%s767 + $0xa8] sm:%s758]
                %812 = vst [vmem:[%s768 + $0xa8] sm:%s758] %v811
                %v813 = vld [vmem:[%s767 + $0xb0] sm:%s758]
                %814 = vst [vmem:[%s768 + $0xb0] sm:%s758] %v813
                %v815 = vld [vmem:[%s767 + $0xb8] sm:%s758]
                %816 = vst [vmem:[%s768 + $0xb8] sm:%s758] %v815
                %v817 = vld [vmem:[%s767 + $0xc0] sm:%s758]
                %818 = vst [vmem:[%s768 + $0xc0] sm:%s758] %v817
                %v819 = vld [vmem:[%s767 + $0xc8] sm:%s758]
                %820 = vst [vmem:[%s768 + $0xc8] sm:%s758] %v819
                %v821 = vld [vmem:[%s767 + $0xd0] sm:%s758]
                %822 = vst [vmem:[%s768 + $0xd0] sm:%s758] %v821
                %v823 = vld [vmem:[%s767 + $0xd8] sm:%s758]
                %824 = vst [vmem:[%s768 + $0xd8] sm:%s758] %v823
                %v825 = vld [vmem:[%s767 + $0xe0] sm:%s758]
                %826 = vst [vmem:[%s768 + $0xe0] sm:%s758] %v825
                %v827 = vld [vmem:[%s767 + $0xe8] sm:%s758]
                %828 = vst [vmem:[%s768 + $0xe8] sm:%s758] %v827
                %v829 = vld [vmem:[%s767 + $0xf0] sm:%s758]
                %830 = vst [vmem:[%s768 + $0xf0] sm:%s758] %v829
                %v831 = vld [vmem:[%s767 + $0xf8] sm:%s758]
                %832 = vst [vmem:[%s768 + $0xf8] sm:%s758] %v831
                %s833 = sadd.s32 1, %s766
                %p834 = scmp.ge.s32.totalorder %s833, %s759
                %s835 = scalar_select %p834, 0, %s833
                %s836 = smul.u32 %s835, 256
                %s837 = smul.u32 %s835, 256
                %s838 = scalar_lea.vmem %s738, %s836 [#allocation6]
                %s839 = scalar_lea.vmem %s749, %s837
              $region61: #{policy_network_forward.4} parent=55 // loop_footer
                %s763 = sadd.s32 %s761, 1
              $region62: #{policy_network_forward.4} parent=55 // loop_footer_branch
                %760 = sbr.rel target = $region58
              $region63: #{policy_network_forward.4} parent=55 // loop_exit
                _
              %s840 = sshrl.u32 %s745, 5
              %s841 = sand.u32 %s745, 31
              %s842 = smul.u32 %s840, 32
              %s843 = smul.u32 8, %s842
              %s844 = scalar_lea.vmem %s738, %s843 [#allocation6]
              %s845 = smul.u32 8, %s842
              %s846 = scalar_lea.vmem %s749, %s845
              // While loop
              $region64: #{policy_network_forward.4} parent=55 // loop_pre_header
                _
              $region65: #{policy_network_forward.4} parent=55 // loop_header
                %s848 = sphi 0, %s850
                %p849 = scmp.ge.s32.totalorder %s848, %s841
                %s853 = sphi 0, %s860
                %s854 = sphi %s844, %s863
                %s855 = sphi %s846, %s864
              $region66: #{policy_network_forward.4} parent=55 // loop_header_branch
                %852 = sbr.rel (%p849) target = $region70
              $region67: #{policy_network_forward.4} parent=55 // loop_body
                %v856 = vld [vmem:[%s854] sm:%s758]
                %857 = vst [vmem:[%s855] sm:%s758] %v856
                %s858 = sadd.s32 1, %s853
                %p859 = scmp.ge.s32.totalorder %s858, %s841
                %s860 = scalar_select %p859, 0, %s858
                %s861 = smul.u32 %s860, 8
                %s862 = smul.u32 %s860, 8
                %s863 = scalar_lea.vmem %s844, %s861 [#allocation6]
                %s864 = scalar_lea.vmem %s846, %s862
              $region68: #{policy_network_forward.4} parent=55 // loop_footer
                %s850 = sadd.s32 %s848, 1
              $region69: #{policy_network_forward.4} parent=55 // loop_footer_branch
                %847 = sbr.rel target = $region65
              $region70: #{policy_network_forward.4} parent=55 // loop_exit
                _
            $region56: #{policy_network_forward.4} parent=47 // pred_fallthru
              _
          $region48: #{policy_network_forward.4} parent=43 // pred_fallthru
            _
          %975 = vnop
        $region44: #{policy_network_forward.4} parent=31 // pred_fallthru
          _
      $region32: #{policy_network_forward.4} parent=5 // pred_fallthru
        _
      %p976 = scmp.le.s32.totalorder 2, %s11
      // Predicated region
      $region93: #{policy_network_forward.4} parent=5 // pred_check
        %p977 = pneg %p976
      $region94: #{policy_network_forward.4} parent=5 // pred_check_branch
        %979 = sbr.rel (%p977) target = $region96
      $region95: #{policy_network_forward.4} parent=5 // pred_region
        %s980 = ssub.s32 %s11, 2
        // Predicated region
        $region97: #{policy_network_forward.4} parent=95 // pred_check
          %p981 = pneg %p108
        $region98: #{policy_network_forward.4} parent=95 // pred_check_branch
          %983 = sbr.rel (%p981) target = $region100
        $region99: #{policy_network_forward.4} parent=95 // pred_region
          %s984 = sand.u32 %s93, 1
          %s985 = sand.u32 %s93, 1
          %s986 = smul.addr %s985, 512
          %s987 = scalar_lea.vmem [#allocation6], %s986
        $region100: #{policy_network_forward.4} parent=95 // pred_fallthru
          _
      $region96: #{policy_network_forward.4} parent=5 // pred_fallthru
        _
    $region6: #{policy_network_forward.4} parent=1 // loop_footer
      %s15 = sadd.s32 1, %s11
    $region7: #{policy_network_forward.4} parent=1 // loop_footer_branch
      %10 = sbr.rel target = $region3
    $region8: #{policy_network_forward.4} parent=1 // loop_exit
      _
    %988 = vsyncpa [#allocation3], 1
    %s989 = scalar_lea.sflag [#allocation3], 1
    %990 = vsyncpa %s989, 1
    %991 = vsyncpa [#allocation5], 1

// kernel: policy_network_forward.5
$region0: #{policy_network_forward.5}
  #allocation0 [shape = 'u32[]', space=smem, size = 0x4, offset = 0x4, fixed_abs, tag = 'smem constant byte address 0x4 - core index']
  #allocation1 [shape = 'u32[72,128]{1,0:T(1,128)}', space=vmem, size = 0x9000, scoped, tag = 'internal scratch']
  %s0 = inlined_call_operand.vmem [shape: f32[162,512], index: 0, kind: input, shape index: {}]
  %s1 = inlined_call_operand.vmem [shape: bf16[512,64], index: 1, kind: input, shape index: {}]
  %s2 = inlined_call_operand.vmem [shape: f32[1,64], index: 2, kind: input, shape index: {}]
  %s3 = inlined_call_operand.vmem [shape: f32[162,64], index: 3, kind: output, shape index: {}]
  %s4 = sld [smem:[#allocation0]]
  $region56: #{policy_network_forward.5} parent=0
    _
  %s6 = ssub.s32 1, %s4
  %s7 = scalar_select 0, %s6, %s4
  $region1: #{policy_network_forward.5} parent=0
    #allocation2 [shape = 'u8[90112]{0}', space=vmem, size = 0x16000, scoped, tag = 'output window, operand 0, single buffered']
    // Predicated region
    $region2: #{policy_network_forward.5} parent=1 // pred_check
      _
    $region3: #{policy_network_forward.5} parent=1 // pred_check_branch
      %9 = sbr.rel (0) target = $region5
    $region4: #{policy_network_forward.5} parent=1 // pred_region
      _
    $region5: #{policy_network_forward.5} parent=1 // pred_fallthru
      _
    // Predicated region
    $region6: #{policy_network_forward.5} parent=1 // pred_check
      _
    $region7: #{policy_network_forward.5} parent=1 // pred_check_branch
      %11 = sbr.rel (0) target = $region9
    $region8: #{policy_network_forward.5} parent=1 // pred_region
      _
    $region9: #{policy_network_forward.5} parent=1 // pred_fallthru
      _
    // Predicated region
    $region10: #{policy_network_forward.5} parent=1 // pred_check
      _
    $region11: #{policy_network_forward.5} parent=1 // pred_check_branch
      %13 = sbr.rel (0) target = $region13
    $region12: #{policy_network_forward.5} parent=1 // pred_region
      _
    $region13: #{policy_network_forward.5} parent=1 // pred_fallthru
      _
    %v14 = vld [vmem:[%s0] sm:$0xff]
    %v15 = vld [vmem:[%s0 + $0x8] sm:$0xff]
    %v16 = vld [vmem:[%s0 + $0x10] sm:$0xff]
    %v17 = vld [vmem:[%s0 + $0x18] sm:$0xff]
    %v18 = vld [vmem:[%s0 + $0x20] sm:$0xff]
    %v19 = vld [vmem:[%s0 + $0x28] sm:$0xff]
    %v20 = vld [vmem:[%s0 + $0x30] sm:$0xff]
    %v21 = vld [vmem:[%s0 + $0x38] sm:$0xff]
    %v22 = vld [vmem:[%s0 + $0x40] sm:$0xff]
    %v23 = vld [vmem:[%s0 + $0x48] sm:$0xff]
    %v24 = vld [vmem:[%s0 + $0x50] sm:$0xff]
    %v25 = vld [vmem:[%s0 + $0x58] sm:$0xff]
    %v26 = vld [vmem:[%s0 + $0x60] sm:$0xff]
    %v27 = vld [vmem:[%s0 + $0x68] sm:$0xff]
    %v28 = vld [vmem:[%s0 + $0x70] sm:$0xff]
    %v29 = vld [vmem:[%s0 + $0x78] sm:$0xff]
    %v30 = vld [vmem:[%s0 + $0x80] sm:$0xff]
    %v31 = vld [vmem:[%s0 + $0x88] sm:$0xff]
    %v32 = vld [vmem:[%s0 + $0x90] sm:$0xff]
    %v33 = vld [vmem:[%s0 + $0x98] sm:$0xff]
    %v34 = vld [vmem:[%s0 + $0xa0] sm:$0xff]
    %v35 = vld [vmem:[%s0 + $0xa8] sm:$0xff]
    %v36 = vld [vmem:[%s0 + $0xb0] sm:$0xff]
    %v37 = vld [vmem:[%s0 + $0xb8] sm:$0xff]
    %v38 = vld [vmem:[%s0 + $0xc0] sm:$0xff]
    %v39 = vld [vmem:[%s0 + $0xc8] sm:$0xff]
    %v40 = vld [vmem:[%s0 + $0xd0] sm:$0xff]
    %v41 = vld [vmem:[%s0 + $0xd8] sm:$0xff]
    %v42 = vld [vmem:[%s0 + $0xe0] sm:$0xff]
    %v43 = vld [vmem:[%s0 + $0xe8] sm:$0xff]
    %v44 = vld [vmem:[%s0 + $0xf0] sm:$0xff]
    %v45 = vld [vmem:[%s0 + $0xf8] sm:$0xff]
    %v46 = vld [vmem:[%s0 + $0x100] sm:$0xff]
    %v47 = vld [vmem:[%s0 + $0x108] sm:$0xff]
    %v48 = vld [vmem:[%s0 + $0x110] sm:$0xff]
    %v49 = vld [vmem:[%s0 + $0x118] sm:$0xff]
    %v50 = vld [vmem:[%s0 + $0x120] sm:$0xff]
    %v51 = vld [vmem:[%s0 + $0x128] sm:$0xff]
    %v52 = vld [vmem:[%s0 + $0x130] sm:$0xff]
    %v53 = vld [vmem:[%s0 + $0x138] sm:$0xff]
    %v54 = vld [vmem:[%s0 + $0x140] sm:$0xff]
    %v55 = vld [vmem:[%s0 + $0x148] sm:$0xff]
    %v56 = vld [vmem:[%s0 + $0x150] sm:$0xff]
    %v57 = vld [vmem:[%s0 + $0x158] sm:$0xff]
    %v58 = vld [vmem:[%s0 + $0x160] sm:$0xff]
    %v59 = vld [vmem:[%s0 + $0x168] sm:$0xff]
    %v60 = vld [vmem:[%s0 + $0x170] sm:$0xff]
    %v61 = vld [vmem:[%s0 + $0x178] sm:$0xff]
    %v62 = vld [vmem:[%s0 + $0x180] sm:$0xff]
    %v63 = vld [vmem:[%s0 + $0x188] sm:$0xff]
    %v64 = vld [vmem:[%s0 + $0x190] sm:$0xff]
    %v65 = vld [vmem:[%s0 + $0x198] sm:$0xff]
    %v66 = vld [vmem:[%s0 + $0x1a0] sm:$0xff]
    %v67 = vld [vmem:[%s0 + $0x1a8] sm:$0xff]
    %v68 = vld [vmem:[%s0 + $0x1b0] sm:$0xff]
    %v69 = vld [vmem:[%s0 + $0x1b8] sm:$0xff]
    %v70 = vld [vmem:[%s0 + $0x1c0] sm:$0xff]
    %v71 = vld [vmem:[%s0 + $0x1c8] sm:$0xff]
    %v72 = vld [vmem:[%s0 + $0x1d0] sm:$0xff]
    %v73 = vld [vmem:[%s0 + $0x1d8] sm:$0xff]
    %v74 = vld [vmem:[%s0 + $0x1e0] sm:$0xff]
    %v75 = vld [vmem:[%s0 + $0x1e8] sm:$0xff]
    %v76 = vld [vmem:[%s0 + $0x1f0] sm:$0xff]
    %v77 = vld [vmem:[%s0 + $0x1f8] sm:$0xff]
    %v78 = vld [vmem:[%s0 + $0x200] sm:$0xff]
    %v79 = vld [vmem:[%s0 + $0x208] sm:$0xff]
    %v80 = vld [vmem:[%s0 + $0x210] sm:$0xff]
    %v81 = vld [vmem:[%s0 + $0x218] sm:$0xff]
    %v82 = vld [vmem:[%s0 + $0x220] sm:$0xff]
    %v83 = vld [vmem:[%s0 + $0x228] sm:$0xff]
    %v84 = vld [vmem:[%s0 + $0x230] sm:$0xff]
    %v85 = vld [vmem:[%s0 + $0x238] sm:$0xff]
    %v86 = vld [vmem:[%s0 + $0x240] sm:$0xff]
    %v87 = vld [vmem:[%s0 + $0x248] sm:$0xff]
    %v88 = vld [vmem:[%s0 + $0x250] sm:$0xff]
    %v89 = vld [vmem:[%s0 + $0x258] sm:$0xff]
    %v90 = vld [vmem:[%s0 + $0x260] sm:$0xff]
    %v91 = vld [vmem:[%s0 + $0x268] sm:$0xff]
    %v92 = vld [vmem:[%s0 + $0x270] sm:$0xff]
    %v93 = vld [vmem:[%s0 + $0x278] sm:$0xff]
    %v94 = vld [vmem:[%s0 + $0x280] sm:$0xff]
    %v95 = vld [vmem:[%s0 + $0x288] sm:$0xff]
    %v96 = vld [vmem:[%s0 + $0x290] sm:$0xff]
    %v97 = vld [vmem:[%s0 + $0x298] sm:$0xff]
    %v98 = vld [vmem:[%s0 + $0x2a0] sm:$0xff]
    %v99 = vld [vmem:[%s0 + $0x2a8] sm:$0xff]
    %v100 = vld [vmem:[%s0 + $0x2b0] sm:$0xff]
    %v101 = vld [vmem:[%s0 + $0x2b8] sm:$0xff]
    %v102 = vpack.c.bf16 %v18, %v14
    %v103 = vpack.c.bf16 %v19, %v15
    %v104 = vpack.c.bf16 %v20, %v16
    %v105 = vpack.c.bf16 %v21, %v17
    %v106 = vpack.c.bf16 %v26, %v22
    %v107 = vpack.c.bf16 %v27, %v23
    %v108 = vpack.c.bf16 %v28, %v24
    %v109 = vpack.c.bf16 %v29, %v25
    %v110 = vpack.c.bf16 %v34, %v30
    %v111 = vpack.c.bf16 %v35, %v31
    %v112 = vpack.c.bf16 %v36, %v32
    %v113 = vpack.c.bf16 %v37, %v33
    %v114 = vpack.c.bf16 %v42, %v38
    %v115 = vpack.c.bf16 %v43, %v39
    %v116 = vpack.c.bf16 %v44, %v40
    %v117 = vpack.c.bf16 %v45, %v41
    %v118 = vpack.c.bf16 %v50, %v46
    %v119 = vpack.c.bf16 %v51, %v47
    %v120 = vpack.c.bf16 %v52, %v48
    %v121 = vpack.c.bf16 %v53, %v49
    %v122 = vpack.c.bf16 %v58, %v54
    %v123 = vpack.c.bf16 %v59, %v55
    %v124 = vpack.c.bf16 %v60, %v56
    %v125 = vpack.c.bf16 %v61, %v57
    %v126 = vpack.c.bf16 %v66, %v62
    %v127 = vpack.c.bf16 %v67, %v63
    %v128 = vpack.c.bf16 %v68, %v64
    %v129 = vpack.c.bf16 %v69, %v65
    %v130 = vpack.c.bf16 %v74, %v70
    %v131 = vpack.c.bf16 %v75, %v71
    %v132 = vpack.c.bf16 %v76, %v72
    %v133 = vpack.c.bf16 %v77, %v73
    %v134 = vpack.c.bf16 %v82, %v78
    %v135 = vpack.c.bf16 %v83, %v79
    %v136 = vpack.c.bf16 %v84, %v80
    %v137 = vpack.c.bf16 %v85, %v81
    %v138 = vpack.c.bf16 %v90, %v86
    %v139 = vpack.c.bf16 %v91, %v87
    %v140 = vpack.c.bf16 %v92, %v88
    %v141 = vpack.c.bf16 %v93, %v89
    %v142 = vpack.c.bf16 %v98, %v94
    %v143 = vpack.c.bf16 %v99, %v95
    %v144 = vpack.c.bf16 %v100, %v96
    %v145 = vpack.c.bf16 %v101, %v97
    %v146 = vld [vmem:[%s1] sm:$0xf]
    %v147 = vld [vmem:[%s1 + $0x4] sm:$0xf]
    %v148 = vld [vmem:[%s1 + $0x8] sm:$0xf]
    %v149 = vld [vmem:[%s1 + $0xc] sm:$0xf]
    %v150 = vld [vmem:[%s1 + $0x10] sm:$0xf]
    %v151 = vld [vmem:[%s1 + $0x14] sm:$0xf]
    %v152 = vld [vmem:[%s1 + $0x18] sm:$0xf]
    %v153 = vld [vmem:[%s1 + $0x1c] sm:$0xf]
    %v154 = vld [vmem:[%s1 + $0x20] sm:$0xf]
    %v155 = vld [vmem:[%s1 + $0x24] sm:$0xf]
    %v156 = vld [vmem:[%s1 + $0x28] sm:$0xf]
    %v157 = vld [vmem:[%s1 + $0x2c] sm:$0xf]
    %v158 = vld [vmem:[%s1 + $0x30] sm:$0xf]
    %v159 = vld [vmem:[%s1 + $0x34] sm:$0xf]
    %v160 = vld [vmem:[%s1 + $0x38] sm:$0xf]
    %v161 = vld [vmem:[%s1 + $0x3c] sm:$0xf]
    %v162 = vld [vmem:[%s1 + $0x40] sm:$0xf]
    %v163 = vld [vmem:[%s1 + $0x44] sm:$0xf]
    %v164 = vld [vmem:[%s1 + $0x48] sm:$0xf]
    %v165 = vld [vmem:[%s1 + $0x4c] sm:$0xf]
    %v166 = vld [vmem:[%s1 + $0x50] sm:$0xf]
    %v167 = vld [vmem:[%s1 + $0x54] sm:$0xf]
    %v168 = vld [vmem:[%s1 + $0x58] sm:$0xf]
    %v169 = vld [vmem:[%s1 + $0x5c] sm:$0xf]
    %v170 = vld [vmem:[%s1 + $0x60] sm:$0xf]
    %v171 = vld [vmem:[%s1 + $0x64] sm:$0xf]
    %v172 = vld [vmem:[%s1 + $0x68] sm:$0xf]
    %v173 = vld [vmem:[%s1 + $0x6c] sm:$0xf]
    %v174 = vld [vmem:[%s1 + $0x70] sm:$0xf]
    %v175 = vld [vmem:[%s1 + $0x74] sm:$0xf]
    %v176 = vld [vmem:[%s1 + $0x78] sm:$0xf]
    %v177 = vld [vmem:[%s1 + $0x7c] sm:$0xf]
    %v178 = vld [vmem:[%s1 + $0x80] sm:$0xf]
    %v179 = vld [vmem:[%s1 + $0x84] sm:$0xf]
    %v180 = vld [vmem:[%s1 + $0x88] sm:$0xf]
    %v181 = vld [vmem:[%s1 + $0x8c] sm:$0xf]
    %v182 = vld [vmem:[%s1 + $0x90] sm:$0xf]
    %v183 = vld [vmem:[%s1 + $0x94] sm:$0xf]
    %v184 = vld [vmem:[%s1 + $0x98] sm:$0xf]
    %v185 = vld [vmem:[%s1 + $0x9c] sm:$0xf]
    %v186 = vld [vmem:[%s1 + $0xa0] sm:$0xf]
    %v187 = vld [vmem:[%s1 + $0xa4] sm:$0xf]
    %v188 = vld [vmem:[%s1 + $0xa8] sm:$0xf]
    %v189 = vld [vmem:[%s1 + $0xac] sm:$0xf]
    %v190 = vld [vmem:[%s1 + $0xb0] sm:$0xf]
    %v191 = vld [vmem:[%s1 + $0xb4] sm:$0xf]
    %v192 = vld [vmem:[%s1 + $0xb8] sm:$0xf]
    %v193 = vld [vmem:[%s1 + $0xbc] sm:$0xf]
    %v194 = vld [vmem:[%s1 + $0xc0] sm:$0xf]
    %v195 = vld [vmem:[%s1 + $0xc4] sm:$0xf]
    %v196 = vld [vmem:[%s1 + $0xc8] sm:$0xf]
    %v197 = vld [vmem:[%s1 + $0xcc] sm:$0xf]
    %v198 = vld [vmem:[%s1 + $0xd0] sm:$0xf]
    %v199 = vld [vmem:[%s1 + $0xd4] sm:$0xf]
    %v200 = vld [vmem:[%s1 + $0xd8] sm:$0xf]
    %v201 = vld [vmem:[%s1 + $0xdc] sm:$0xf]
    %v202 = vld [vmem:[%s1 + $0xe0] sm:$0xf]
    %v203 = vld [vmem:[%s1 + $0xe4] sm:$0xf]
    %v204 = vld [vmem:[%s1 + $0xe8] sm:$0xf]
    %v205 = vld [vmem:[%s1 + $0xec] sm:$0xf]
    %v206 = vld [vmem:[%s1 + $0xf0] sm:$0xf]
    %v207 = vld [vmem:[%s1 + $0xf4] sm:$0xf]
    %v208 = vld [vmem:[%s1 + $0xf8] sm:$0xf]
    %v209 = vld [vmem:[%s1 + $0xfc] sm:$0xf]
    %v210 = vld [vmem:[%s2] sm:$0x1]
    %v212 = vperm.slane %v210, 0
    %v278 = vunpack.c.l.b16 %v146
    %v279 = vunpack.c.l.b16 %v147
    %v280 = vunpack.c.l.b16 %v148
    %v281 = vunpack.c.l.b16 %v149
    %v282 = vunpack.c.l.b16 %v150
    %v283 = vunpack.c.l.b16 %v151
    %v284 = vunpack.c.l.b16 %v152
    %v285 = vunpack.c.l.b16 %v153
    %v286 = vunpack.c.l.b16 %v154
    %v287 = vunpack.c.l.b16 %v155
    %v288 = vunpack.c.l.b16 %v156
    %v289 = vunpack.c.l.b16 %v157
    %v290 = vunpack.c.l.b16 %v158
    %v291 = vunpack.c.l.b16 %v159
    %v292 = vunpack.c.l.b16 %v160
    %v293 = vunpack.c.l.b16 %v161
    %v294 = vunpack.c.l.b16 %v162
    %v295 = vunpack.c.l.b16 %v163
    %v296 = vunpack.c.l.b16 %v164
    %v297 = vunpack.c.l.b16 %v165
    %v298 = vunpack.c.l.b16 %v166
    %v299 = vunpack.c.l.b16 %v167
    %v300 = vunpack.c.l.b16 %v168
    %v301 = vunpack.c.l.b16 %v169
    %v302 = vunpack.c.l.b16 %v170
    %v303 = vunpack.c.l.b16 %v171
    %v304 = vunpack.c.l.b16 %v172
    %v305 = vunpack.c.l.b16 %v173
    %v306 = vunpack.c.l.b16 %v174
    %v307 = vunpack.c.l.b16 %v175
    %v308 = vunpack.c.l.b16 %v176
    %v309 = vunpack.c.l.b16 %v177
    %v310 = vunpack.c.l.b16 %v178
    %v311 = vunpack.c.l.b16 %v179
    %v312 = vunpack.c.l.b16 %v180
    %v313 = vunpack.c.l.b16 %v181
    %v314 = vunpack.c.l.b16 %v182
    %v315 = vunpack.c.l.b16 %v183
    %v316 = vunpack.c.l.b16 %v184
    %v317 = vunpack.c.l.b16 %v185
    %v318 = vunpack.c.l.b16 %v186
    %v319 = vunpack.c.l.b16 %v187
    %v320 = vunpack.c.l.b16 %v188
    %v321 = vunpack.c.l.b16 %v189
    %v322 = vunpack.c.l.b16 %v190
    %v323 = vunpack.c.l.b16 %v191
    %v324 = vunpack.c.l.b16 %v192
    %v325 = vunpack.c.l.b16 %v193
    %v326 = vunpack.c.l.b16 %v194
    %v327 = vunpack.c.l.b16 %v195
    %v328 = vunpack.c.l.b16 %v196
    %v329 = vunpack.c.l.b16 %v197
    %v330 = vunpack.c.l.b16 %v198
    %v331 = vunpack.c.l.b16 %v199
    %v332 = vunpack.c.l.b16 %v200
    %v333 = vunpack.c.l.b16 %v201
    %v334 = vunpack.c.l.b16 %v202
    %v335 = vunpack.c.l.b16 %v203
    %v336 = vunpack.c.l.b16 %v204
    %v337 = vunpack.c.l.b16 %v205
    %v338 = vunpack.c.l.b16 %v206
    %v339 = vunpack.c.l.b16 %v207
    %v340 = vunpack.c.l.b16 %v208
    %v341 = vunpack.c.l.b16 %v209
    %v342 = vpack.c.b16 %v279, %v278
    %v343 = vpack.c.b16 %v281, %v280
    %v344 = vpack.c.b16 %v283, %v282
    %v345 = vpack.c.b16 %v285, %v284
    %v346 = vpack.c.b16 %v287, %v286
    %v347 = vpack.c.b16 %v289, %v288
    %v348 = vpack.c.b16 %v291, %v290
    %v349 = vpack.c.b16 %v293, %v292
    %v350 = vpack.c.b16 %v295, %v294
    %v351 = vpack.c.b16 %v297, %v296
    %v352 = vpack.c.b16 %v299, %v298
    %v353 = vpack.c.b16 %v301, %v300
    %v354 = vpack.c.b16 %v303, %v302
    %v355 = vpack.c.b16 %v305, %v304
    %v356 = vpack.c.b16 %v307, %v306
    %v357 = vpack.c.b16 %v309, %v308
    %v358 = vpack.c.b16 %v311, %v310
    %v359 = vpack.c.b16 %v313, %v312
    %v360 = vpack.c.b16 %v315, %v314
    %v361 = vpack.c.b16 %v317, %v316
    %v362 = vpack.c.b16 %v319, %v318
    %v363 = vpack.c.b16 %v321, %v320
    %v364 = vpack.c.b16 %v323, %v322
    %v365 = vpack.c.b16 %v325, %v324
    %v366 = vpack.c.b16 %v327, %v326
    %v367 = vpack.c.b16 %v329, %v328
    %v368 = vpack.c.b16 %v331, %v330
    %v369 = vpack.c.b16 %v333, %v332
    %v370 = vpack.c.b16 %v335, %v334
    %v371 = vpack.c.b16 %v337, %v336
    %v372 = vpack.c.b16 %v339, %v338
    %v373 = vpack.c.b16 %v341, %v340
    %406 = vmatpush.bf16.msra.mxu0 %v349
    %407 = vmatpush.bf16.msra.mxu0 %v348
    %408 = vmatpush.bf16.msra.mxu0 %v347
    %409 = vmatpush.bf16.msra.mxu0 %v346
    %410 = vmatpush.bf16.msra.mxu0 %v345
    %411 = vmatpush.bf16.msra.mxu0 %v344
    %412 = vmatpush.bf16.msra.mxu0 %v343
    %413 = vmatpush.bf16.msra.mxu0 %v342
    %414 = vmatmul.bf16.gmra.mxu0 %v102
    %v415 = vpop.f32.mrf.mxu0
    %v416 = vadd.f32 %v212, %v415
    %v417 = vpop.f32.mrf.mxu0
    %v418 = vadd.f32 %v212, %v417
    %419 = vmatmul.bf16.gmra.mxu0 %v106
    %v420 = vpop.f32.mrf.mxu0
    %v421 = vadd.f32 %v212, %v420
    %v422 = vpop.f32.mrf.mxu0
    %v423 = vadd.f32 %v212, %v422
    %424 = vmatmul.bf16.gmra.mxu0 %v110
    %v425 = vpop.f32.mrf.mxu0
    %v426 = vadd.f32 %v212, %v425
    %v427 = vpop.f32.mrf.mxu0
    %v428 = vadd.f32 %v212, %v427
    %429 = vmatmul.bf16.gmra.mxu0 %v114
    %v430 = vpop.f32.mrf.mxu0
    %v431 = vadd.f32 %v212, %v430
    %v432 = vpop.f32.mrf.mxu0
    %v433 = vadd.f32 %v212, %v432
    %434 = vmatmul.bf16.gmra.mxu0 %v118
    %v435 = vpop.f32.mrf.mxu0
    %v436 = vadd.f32 %v212, %v435
    %v437 = vpop.f32.mrf.mxu0
    %v438 = vadd.f32 %v212, %v437
    %439 = vmatmul.bf16.gmra.mxu0 %v122
    %v440 = vpop.f32.mrf.mxu0
    %v441 = vadd.f32 %v212, %v440
    %v442 = vpop.f32.mrf.mxu0
    %v443 = vadd.f32 %v212, %v442
    %444 = vmatmul.bf16.gmra.mxu0 %v126
    %v445 = vpop.f32.mrf.mxu0
    %v446 = vadd.f32 %v212, %v445
    %v447 = vpop.f32.mrf.mxu0
    %v448 = vadd.f32 %v212, %v447
    %449 = vmatmul.bf16.gmra.mxu0 %v130
    %v450 = vpop.f32.mrf.mxu0
    %v451 = vadd.f32 %v212, %v450
    %v452 = vpop.f32.mrf.mxu0
    %v453 = vadd.f32 %v212, %v452
    %454 = vmatmul.bf16.gmra.mxu0 %v134
    %v455 = vpop.f32.mrf.mxu0
    %v456 = vadd.f32 %v212, %v455
    %v457 = vpop.f32.mrf.mxu0
    %v458 = vadd.f32 %v212, %v457
    %459 = vmatmul.bf16.gmra.mxu0 %v138
    %v460 = vpop.f32.mrf.mxu0
    %v461 = vadd.f32 %v212, %v460
    %v462 = vpop.f32.mrf.mxu0
    %v463 = vadd.f32 %v212, %v462
    %464 = vmatmul.bf16.gmra.mxu0 %v142
    %v465 = vpop.f32.mrf.mxu0
    %v466 = vadd.f32 %v212, %v465
    %v467 = vpop.f32.mrf.mxu0
    %v468 = vadd.f32 %v212, %v467
    %469 = vdwg.mxu0
    %470 = vmatpush.bf16.msra.mxu0 %v357
    %471 = vmatpush.bf16.msra.mxu0 %v356
    %472 = vmatpush.bf16.msra.mxu0 %v355
    %473 = vmatpush.bf16.msra.mxu0 %v354
    %474 = vmatpush.bf16.msra.mxu0 %v353
    %475 = vmatpush.bf16.msra.mxu0 %v352
    %476 = vmatpush.bf16.msra.mxu0 %v351
    %477 = vmatpush.bf16.msra.mxu0 %v350
    %478 = vmatmul.bf16.gmra.mxu0 %v103
    %v479 = vpop.f32.mrf.mxu0
    %v480 = vadd.f32 %v416, %v479
    %v481 = vpop.f32.mrf.mxu0
    %v482 = vadd.f32 %v418, %v481
    %483 = vmatmul.bf16.gmra.mxu0 %v107
    %v484 = vpop.f32.mrf.mxu0
    %v485 = vadd.f32 %v421, %v484
    %v486 = vpop.f32.mrf.mxu0
    %v487 = vadd.f32 %v423, %v486
    %488 = vmatmul.bf16.gmra.mxu0 %v111
    %v489 = vpop.f32.mrf.mxu0
    %v490 = vadd.f32 %v426, %v489
    %v491 = vpop.f32.mrf.mxu0
    %v492 = vadd.f32 %v428, %v491
    %493 = vmatmul.bf16.gmra.mxu0 %v115
    %v494 = vpop.f32.mrf.mxu0
    %v495 = vadd.f32 %v431, %v494
    %v496 = vpop.f32.mrf.mxu0
    %v497 = vadd.f32 %v433, %v496
    %498 = vmatmul.bf16.gmra.mxu0 %v119
    %v499 = vpop.f32.mrf.mxu0
    %v500 = vadd.f32 %v436, %v499
    %v501 = vpop.f32.mrf.mxu0
    %v502 = vadd.f32 %v438, %v501
    %503 = vmatmul.bf16.gmra.mxu0 %v123
    %v504 = vpop.f32.mrf.mxu0
    %v505 = vadd.f32 %v441, %v504
    %v506 = vpop.f32.mrf.mxu0
    %v507 = vadd.f32 %v443, %v506
    %508 = vmatmul.bf16.gmra.mxu0 %v127
    %v509 = vpop.f32.mrf.mxu0
    %v510 = vadd.f32 %v446, %v509
    %v511 = vpop.f32.mrf.mxu0
    %v512 = vadd.f32 %v448, %v511
    %513 = vmatmul.bf16.gmra.mxu0 %v131
    %v514 = vpop.f32.mrf.mxu0
    %v515 = vadd.f32 %v451, %v514
    %v516 = vpop.f32.mrf.mxu0
    %v517 = vadd.f32 %v453, %v516
    %518 = vmatmul.bf16.gmra.mxu0 %v135
    %v519 = vpop.f32.mrf.mxu0
    %v520 = vadd.f32 %v456, %v519
    %v521 = vpop.f32.mrf.mxu0
    %v522 = vadd.f32 %v458, %v521
    %523 = vmatmul.bf16.gmra.mxu0 %v139
    %v524 = vpop.f32.mrf.mxu0
    %v525 = vadd.f32 %v461, %v524
    %v526 = vpop.f32.mrf.mxu0
    %v527 = vadd.f32 %v463, %v526
    %528 = vmatmul.bf16.gmra.mxu0 %v143
    %v529 = vpop.f32.mrf.mxu0
    %v530 = vadd.f32 %v466, %v529
    %v531 = vpop.f32.mrf.mxu0
    %v532 = vadd.f32 %v468, %v531
    %533 = vdwg.mxu0
    %534 = vmatpush.bf16.msra.mxu0 %v365
    %535 = vmatpush.bf16.msra.mxu0 %v364
    %536 = vmatpush.bf16.msra.mxu0 %v363
    %537 = vmatpush.bf16.msra.mxu0 %v362
    %538 = vmatpush.bf16.msra.mxu0 %v361
    %539 = vmatpush.bf16.msra.mxu0 %v360
    %540 = vmatpush.bf16.msra.mxu0 %v359
    %541 = vmatpush.bf16.msra.mxu0 %v358
    %542 = vmatmul.bf16.gmra.mxu0 %v104
    %v543 = vpop.f32.mrf.mxu0
    %v544 = vadd.f32 %v480, %v543
    %v545 = vpop.f32.mrf.mxu0
    %v546 = vadd.f32 %v482, %v545
    %547 = vmatmul.bf16.gmra.mxu0 %v108
    %v548 = vpop.f32.mrf.mxu0
    %v549 = vadd.f32 %v485, %v548
    %v550 = vpop.f32.mrf.mxu0
    %v551 = vadd.f32 %v487, %v550
    %552 = vmatmul.bf16.gmra.mxu0 %v112
    %v553 = vpop.f32.mrf.mxu0
    %v554 = vadd.f32 %v490, %v553
    %v555 = vpop.f32.mrf.mxu0
    %v556 = vadd.f32 %v492, %v555
    %557 = vmatmul.bf16.gmra.mxu0 %v116
    %v558 = vpop.f32.mrf.mxu0
    %v559 = vadd.f32 %v495, %v558
    %v560 = vpop.f32.mrf.mxu0
    %v561 = vadd.f32 %v497, %v560
    %562 = vmatmul.bf16.gmra.mxu0 %v120
    %v563 = vpop.f32.mrf.mxu0
    %v564 = vadd.f32 %v500, %v563
    %v565 = vpop.f32.mrf.mxu0
    %v566 = vadd.f32 %v502, %v565
    %567 = vmatmul.bf16.gmra.mxu0 %v124
    %v568 = vpop.f32.mrf.mxu0
    %v569 = vadd.f32 %v505, %v568
    %v570 = vpop.f32.mrf.mxu0
    %v571 = vadd.f32 %v507, %v570
    %572 = vmatmul.bf16.gmra.mxu0 %v128
    %v573 = vpop.f32.mrf.mxu0
    %v574 = vadd.f32 %v510, %v573
    %v575 = vpop.f32.mrf.mxu0
    %v576 = vadd.f32 %v512, %v575
    %577 = vmatmul.bf16.gmra.mxu0 %v132
    %v578 = vpop.f32.mrf.mxu0
    %v579 = vadd.f32 %v515, %v578
    %v580 = vpop.f32.mrf.mxu0
    %v581 = vadd.f32 %v517, %v580
    %582 = vmatmul.bf16.gmra.mxu0 %v136
    %v583 = vpop.f32.mrf.mxu0
    %v584 = vadd.f32 %v520, %v583
    %v585 = vpop.f32.mrf.mxu0
    %v586 = vadd.f32 %v522, %v585
    %587 = vmatmul.bf16.gmra.mxu0 %v140
    %v588 = vpop.f32.mrf.mxu0
    %v589 = vadd.f32 %v525, %v588
    %v590 = vpop.f32.mrf.mxu0
    %v591 = vadd.f32 %v527, %v590
    %592 = vmatmul.bf16.gmra.mxu0 %v144
    %v593 = vpop.f32.mrf.mxu0
    %v594 = vadd.f32 %v530, %v593
    %v595 = vpop.f32.mrf.mxu0
    %v596 = vadd.f32 %v532, %v595
    %597 = vdwg.mxu0
    %598 = vmatpush.bf16.msra.mxu0 %v373
    %599 = vmatpush.bf16.msra.mxu0 %v372
    %600 = vmatpush.bf16.msra.mxu0 %v371
    %601 = vmatpush.bf16.msra.mxu0 %v370
    %602 = vmatpush.bf16.msra.mxu0 %v369
    %603 = vmatpush.bf16.msra.mxu0 %v368
    %604 = vmatpush.bf16.msra.mxu0 %v367
    %605 = vmatpush.bf16.msra.mxu0 %v366
    %606 = vmatmul.bf16.gmra.mxu0 %v105
    %v607 = vpop.f32.mrf.mxu0
    %v608 = vadd.f32 %v544, %v607
    %v609 = vpop.f32.mrf.mxu0
    %v610 = vadd.f32 %v546, %v609
    %611 = vmatmul.bf16.gmra.mxu0 %v109
    %v612 = vpop.f32.mrf.mxu0
    %v613 = vadd.f32 %v549, %v612
    %v614 = vpop.f32.mrf.mxu0
    %v615 = vadd.f32 %v551, %v614
    %616 = vmatmul.bf16.gmra.mxu0 %v113
    %v617 = vpop.f32.mrf.mxu0
    %v618 = vadd.f32 %v554, %v617
    %v619 = vpop.f32.mrf.mxu0
    %v620 = vadd.f32 %v556, %v619
    %621 = vmatmul.bf16.gmra.mxu0 %v117
    %v622 = vpop.f32.mrf.mxu0
    %v623 = vadd.f32 %v559, %v622
    %v624 = vpop.f32.mrf.mxu0
    %v625 = vadd.f32 %v561, %v624
    %626 = vmatmul.bf16.gmra.mxu0 %v121
    %v627 = vpop.f32.mrf.mxu0
    %v628 = vadd.f32 %v564, %v627
    %v629 = vpop.f32.mrf.mxu0
    %v630 = vadd.f32 %v566, %v629
    %631 = vmatmul.bf16.gmra.mxu0 %v125
    %v632 = vpop.f32.mrf.mxu0
    %v633 = vadd.f32 %v569, %v632
    %v634 = vpop.f32.mrf.mxu0
    %v635 = vadd.f32 %v571, %v634
    %636 = vmatmul.bf16.gmra.mxu0 %v129
    %v637 = vpop.f32.mrf.mxu0
    %v638 = vadd.f32 %v574, %v637
    %v639 = vpop.f32.mrf.mxu0
    %v640 = vadd.f32 %v576, %v639
    %641 = vmatmul.bf16.gmra.mxu0 %v133
    %v642 = vpop.f32.mrf.mxu0
    %v643 = vadd.f32 %v579, %v642
    %v644 = vpop.f32.mrf.mxu0
    %v645 = vadd.f32 %v581, %v644
    %646 = vmatmul.bf16.gmra.mxu0 %v137
    %v647 = vpop.f32.mrf.mxu0
    %v648 = vadd.f32 %v584, %v647
    %v649 = vpop.f32.mrf.mxu0
    %v650 = vadd.f32 %v586, %v649
    %651 = vmatmul.bf16.gmra.mxu0 %v141
    %v652 = vpop.f32.mrf.mxu0
    %v653 = vadd.f32 %v589, %v652
    %v654 = vpop.f32.mrf.mxu0
    %v655 = vadd.f32 %v591, %v654
    %656 = vmatmul.bf16.gmra.mxu0 %v145
    %v657 = vpop.f32.mrf.mxu0
    %v658 = vadd.f32 %v594, %v657
    %v659 = vpop.f32.mrf.mxu0
    %v660 = vadd.f32 %v596, %v659
    %661 = vdwg.mxu0
    %v662 = vmax.f32 %v608, 0.0
    %v663 = vmax.f32 %v610, 0.0
    %v664 = vmax.f32 %v613, 0.0
    %v665 = vmax.f32 %v615, 0.0
    %v666 = vmax.f32 %v618, 0.0
    %v667 = vmax.f32 %v620, 0.0
    %v668 = vmax.f32 %v623, 0.0
    %v669 = vmax.f32 %v625, 0.0
    %v670 = vmax.f32 %v628, 0.0
    %v671 = vmax.f32 %v630, 0.0
    %v672 = vmax.f32 %v633, 0.0
    %v673 = vmax.f32 %v635, 0.0
    %v674 = vmax.f32 %v638, 0.0
    %v675 = vmax.f32 %v640, 0.0
    %v676 = vmax.f32 %v643, 0.0
    %v677 = vmax.f32 %v645, 0.0
    %v678 = vmax.f32 %v648, 0.0
    %v679 = vmax.f32 %v650, 0.0
    %v680 = vmax.f32 %v653, 0.0
    %v681 = vmax.f32 %v655, 0.0
    %v682 = vmax.f32 %v658, 0.0
    %v683 = vmax.f32 %v660, 0.0
    %vm684 = vcmask 523264
    %685 = vst.msk [vmem:[#allocation2] sm:$0xff] %vm684, %v662
    %686 = vst.msk [vmem:[#allocation2 + $0x8] sm:$0xff] %vm684, %v663
    %687 = vst.msk [vmem:[#allocation2 + $0x10] sm:$0xff] %vm684, %v664
    %688 = vst.msk [vmem:[#allocation2 + $0x18] sm:$0xff] %vm684, %v665
    %689 = vst.msk [vmem:[#allocation2 + $0x20] sm:$0xff] %vm684, %v666
    %690 = vst.msk [vmem:[#allocation2 + $0x28] sm:$0xff] %vm684, %v667
    %691 = vst.msk [vmem:[#allocation2 + $0x30] sm:$0xff] %vm684, %v668
    %692 = vst.msk [vmem:[#allocation2 + $0x38] sm:$0xff] %vm684, %v669
    %693 = vst.msk [vmem:[#allocation2 + $0x40] sm:$0xff] %vm684, %v670
    %694 = vst.msk [vmem:[#allocation2 + $0x48] sm:$0xff] %vm684, %v671
    %695 = vst.msk [vmem:[#allocation2 + $0x50] sm:$0xff] %vm684, %v672
    %696 = vst.msk [vmem:[#allocation2 + $0x58] sm:$0xff] %vm684, %v673
    %697 = vst.msk [vmem:[#allocation2 + $0x60] sm:$0xff] %vm684, %v674
    %698 = vst.msk [vmem:[#allocation2 + $0x68] sm:$0xff] %vm684, %v675
    %699 = vst.msk [vmem:[#allocation2 + $0x70] sm:$0xff] %vm684, %v676
    %700 = vst.msk [vmem:[#allocation2 + $0x78] sm:$0xff] %vm684, %v677
    %701 = vst.msk [vmem:[#allocation2 + $0x80] sm:$0xff] %vm684, %v678
    %702 = vst.msk [vmem:[#allocation2 + $0x88] sm:$0xff] %vm684, %v679
    %703 = vst.msk [vmem:[#allocation2 + $0x90] sm:$0xff] %vm684, %v680
    %704 = vst.msk [vmem:[#allocation2 + $0x98] sm:$0xff] %vm684, %v681
    %705 = vst.msk [vmem:[#allocation2 + $0xa0] sm:$0xff] %vm684, %v682
    %706 = vst.msk [vmem:[#allocation2 + $0xa8] sm:$0xff] %vm684, %v683
    // Predicated region
    $region14: #{policy_network_forward.5} parent=1 // pred_check
      _
    $region15: #{policy_network_forward.5} parent=1 // pred_check_branch
      %708 = sbr.rel (0) target = $region17
    $region16: #{policy_network_forward.5} parent=1 // pred_region
      // Predicated region
      $region18: #{policy_network_forward.5} parent=16 // pred_check
        _
      $region19: #{policy_network_forward.5} parent=16 // pred_check_branch
        %710 = sbr.rel (0) target = $region21
      $region20: #{policy_network_forward.5} parent=16 // pred_region
        // Predicated region
        $region22: #{policy_network_forward.5} parent=20 // pred_check
          _
        $region23: #{policy_network_forward.5} parent=20 // pred_check_branch
          %712 = sbr.rel (0) target = $region25
        $region24: #{policy_network_forward.5} parent=20 // pred_region
          // Predicated region
          $region37: #{policy_network_forward.5} parent=24 // pred_check
            _
          $region38: #{policy_network_forward.5} parent=24 // pred_check_branch
            %768 = sbr.rel (0) target = $region40
          $region39: #{policy_network_forward.5} parent=24 // pred_region
            loop: start=0, step=1, limit=1
            $region41: #{policy_network_forward.5} parent=39 // loop_pre_header
              _
            $region42: #{policy_network_forward.5} parent=39 // loop_header
              %s770 = sphi 0, %s774
              %p771 = scmp.ge.s32.totalorder %s770, 1
              %s775 = sphi [#allocation2], [#allocation2]
              %s776 = sphi %s3, %s3
            $region43: #{policy_network_forward.5} parent=39 // loop_header_branch
              %773 = sbr.rel (%p771) target = $region47
            $region44: #{policy_network_forward.5} parent=39 // loop_body
              %v777 = vld [vmem:[%s775] sm:$0xff]
              %778 = vst [vmem:[%s776] sm:$0xff] %v777
              %v779 = vld [vmem:[%s775 + $0x8] sm:$0xff]
              %780 = vst [vmem:[%s776 + $0x8] sm:$0xff] %v779
              %v781 = vld [vmem:[%s775 + $0x10] sm:$0xff]
              %782 = vst [vmem:[%s776 + $0x10] sm:$0xff] %v781
              %v783 = vld [vmem:[%s775 + $0x18] sm:$0xff]
              %784 = vst [vmem:[%s776 + $0x18] sm:$0xff] %v783
              %v785 = vld [vmem:[%s775 + $0x20] sm:$0xff]
              %786 = vst [vmem:[%s776 + $0x20] sm:$0xff] %v785
              %v787 = vld [vmem:[%s775 + $0x28] sm:$0xff]
              %788 = vst [vmem:[%s776 + $0x28] sm:$0xff] %v787
              %v789 = vld [vmem:[%s775 + $0x30] sm:$0xff]
              %790 = vst [vmem:[%s776 + $0x30] sm:$0xff] %v789
              %v791 = vld [vmem:[%s775 + $0x38] sm:$0xff]
              %792 = vst [vmem:[%s776 + $0x38] sm:$0xff] %v791
              %v793 = vld [vmem:[%s775 + $0x40] sm:$0xff]
              %794 = vst [vmem:[%s776 + $0x40] sm:$0xff] %v793
              %v795 = vld [vmem:[%s775 + $0x48] sm:$0xff]
              %796 = vst [vmem:[%s776 + $0x48] sm:$0xff] %v795
              %v797 = vld [vmem:[%s775 + $0x50] sm:$0xff]
              %798 = vst [vmem:[%s776 + $0x50] sm:$0xff] %v797
              %v799 = vld [vmem:[%s775 + $0x58] sm:$0xff]
              %800 = vst [vmem:[%s776 + $0x58] sm:$0xff] %v799
              %v801 = vld [vmem:[%s775 + $0x60] sm:$0xff]
              %802 = vst [vmem:[%s776 + $0x60] sm:$0xff] %v801
              %v803 = vld [vmem:[%s775 + $0x68] sm:$0xff]
              %804 = vst [vmem:[%s776 + $0x68] sm:$0xff] %v803
              %v805 = vld [vmem:[%s775 + $0x70] sm:$0xff]
              %806 = vst [vmem:[%s776 + $0x70] sm:$0xff] %v805
              %v807 = vld [vmem:[%s775 + $0x78] sm:$0xff]
              %808 = vst [vmem:[%s776 + $0x78] sm:$0xff] %v807
              %v809 = vld [vmem:[%s775 + $0x80] sm:$0xff]
              %810 = vst [vmem:[%s776 + $0x80] sm:$0xff] %v809
              %v811 = vld [vmem:[%s775 + $0x88] sm:$0xff]
              %812 = vst [vmem:[%s776 + $0x88] sm:$0xff] %v811
              %v813 = vld [vmem:[%s775 + $0x90] sm:$0xff]
              %814 = vst [vmem:[%s776 + $0x90] sm:$0xff] %v813
              %v815 = vld [vmem:[%s775 + $0x98] sm:$0xff]
              %816 = vst [vmem:[%s776 + $0x98] sm:$0xff] %v815
              %v817 = vld [vmem:[%s775 + $0xa0] sm:$0xff]
              %818 = vst [vmem:[%s776 + $0xa0] sm:$0xff] %v817
            $region45: #{policy_network_forward.5} parent=39 // loop_footer
              %s774 = sadd.s32 1, %s770
            $region46: #{policy_network_forward.5} parent=39 // loop_footer_branch
              %769 = sbr.rel target = $region42
            $region47: #{policy_network_forward.5} parent=39 // loop_exit
              _
          $region40: #{policy_network_forward.5} parent=24 // pred_fallthru
            _
          // Predicated region
          $region48: #{policy_network_forward.5} parent=24 // pred_check
            _
          $region49: #{policy_network_forward.5} parent=24 // pred_check_branch
            %820 = sbr.rel target = $region51
          $region50: #{policy_network_forward.5} parent=24 // pred_region
            _
          $region51: #{policy_network_forward.5} parent=24 // pred_fallthru
            _
        $region25: #{policy_network_forward.5} parent=20 // pred_fallthru
          _
        // Predicated region
        $region26: #{policy_network_forward.5} parent=20 // pred_check
          _
        $region27: #{policy_network_forward.5} parent=20 // pred_check_branch
          %714 = sbr.rel target = $region29
        $region28: #{policy_network_forward.5} parent=20 // pred_region
          %s716 = ssub.s32 256, 1
          loop: start=0, step=1, limit=1
          $region30: #{policy_network_forward.5} parent=28 // loop_pre_header
            _
          $region31: #{policy_network_forward.5} parent=28 // loop_header
            %s718 = sphi 0, %s722
            %p719 = scmp.ge.s32.totalorder %s718, 1
            %s723 = sphi [#allocation2], [#allocation2]
            %s724 = sphi %s3, %s3
          $region32: #{policy_network_forward.5} parent=28 // loop_header_branch
            %721 = sbr.rel (%p719) target = $region36
          $region33: #{policy_network_forward.5} parent=28 // loop_body
            %v725 = vld [vmem:[%s723] sm:%s716]
            %726 = vst [vmem:[%s724] sm:%s716] %v725
            %v727 = vld [vmem:[%s723 + $0x8] sm:%s716]
            %728 = vst [vmem:[%s724 + $0x8] sm:%s716] %v727
            %v729 = vld [vmem:[%s723 + $0x10] sm:%s716]
            %730 = vst [vmem:[%s724 + $0x10] sm:%s716] %v729
            %v731 = vld [vmem:[%s723 + $0x18] sm:%s716]
            %732 = vst [vmem:[%s724 + $0x18] sm:%s716] %v731
            %v733 = vld [vmem:[%s723 + $0x20] sm:%s716]
            %734 = vst [vmem:[%s724 + $0x20] sm:%s716] %v733
            %v735 = vld [vmem:[%s723 + $0x28] sm:%s716]
            %736 = vst [vmem:[%s724 + $0x28] sm:%s716] %v735
            %v737 = vld [vmem:[%s723 + $0x30] sm:%s716]
            %738 = vst [vmem:[%s724 + $0x30] sm:%s716] %v737
            %v739 = vld [vmem:[%s723 + $0x38] sm:%s716]
            %740 = vst [vmem:[%s724 + $0x38] sm:%s716] %v739
            %v741 = vld [vmem:[%s723 + $0x40] sm:%s716]
            %742 = vst [vmem:[%s724 + $0x40] sm:%s716] %v741
            %v743 = vld [vmem:[%s723 + $0x48] sm:%s716]
            %744 = vst [vmem:[%s724 + $0x48] sm:%s716] %v743
            %v745 = vld [vmem:[%s723 + $0x50] sm:%s716]
            %746 = vst [vmem:[%s724 + $0x50] sm:%s716] %v745
            %v747 = vld [vmem:[%s723 + $0x58] sm:%s716]
            %748 = vst [vmem:[%s724 + $0x58] sm:%s716] %v747
            %v749 = vld [vmem:[%s723 + $0x60] sm:%s716]
            %750 = vst [vmem:[%s724 + $0x60] sm:%s716] %v749
            %v751 = vld [vmem:[%s723 + $0x68] sm:%s716]
            %752 = vst [vmem:[%s724 + $0x68] sm:%s716] %v751
            %v753 = vld [vmem:[%s723 + $0x70] sm:%s716]
            %754 = vst [vmem:[%s724 + $0x70] sm:%s716] %v753
            %v755 = vld [vmem:[%s723 + $0x78] sm:%s716]
            %756 = vst [vmem:[%s724 + $0x78] sm:%s716] %v755
            %v757 = vld [vmem:[%s723 + $0x80] sm:%s716]
            %758 = vst [vmem:[%s724 + $0x80] sm:%s716] %v757
            %v759 = vld [vmem:[%s723 + $0x88] sm:%s716]
            %760 = vst [vmem:[%s724 + $0x88] sm:%s716] %v759
            %v761 = vld [vmem:[%s723 + $0x90] sm:%s716]
            %762 = vst [vmem:[%s724 + $0x90] sm:%s716] %v761
            %v763 = vld [vmem:[%s723 + $0x98] sm:%s716]
            %764 = vst [vmem:[%s724 + $0x98] sm:%s716] %v763
            %v765 = vld [vmem:[%s723 + $0xa0] sm:%s716]
            %766 = vst [vmem:[%s724 + $0xa0] sm:%s716] %v765
          $region34: #{policy_network_forward.5} parent=28 // loop_footer
            %s722 = sadd.s32 1, %s718
          $region35: #{policy_network_forward.5} parent=28 // loop_footer_branch
            %717 = sbr.rel target = $region31
          $region36: #{policy_network_forward.5} parent=28 // loop_exit
            _
        $region29: #{policy_network_forward.5} parent=20 // pred_fallthru
          _
      $region21: #{policy_network_forward.5} parent=16 // pred_fallthru
        _
      %821 = vnop
    $region17: #{policy_network_forward.5} parent=1 // pred_fallthru
      _
    // Predicated region
    $region52: #{policy_network_forward.5} parent=1 // pred_check
      _
    $region53: #{policy_network_forward.5} parent=1 // pred_check_branch
      %823 = sbr.rel (0) target = $region55
    $region54: #{policy_network_forward.5} parent=1 // pred_region
      _
    $region55: #{policy_network_forward.5} parent=1 // pred_fallthru
      _

// kernel: policy_network_forward.6
$region0: #{policy_network_forward.6}
  #allocation0 [shape = 'u32[]', space=smem, size = 0x4, offset = 0x4, fixed_abs, tag = 'smem constant byte address 0x4 - core index']
  #allocation1 [shape = 'u32[72,128]{1,0:T(1,128)}', space=vmem, size = 0x9000, scoped, tag = 'internal scratch']
  %s0 = inlined_call_operand.vmem [shape: f32[98,576], index: 0, kind: input, shape index: {}]
  %s1 = inlined_call_operand.vmem [shape: bf16[576,64], index: 1, kind: input, shape index: {}]
  %s2 = inlined_call_operand.vmem [shape: f32[1,64], index: 2, kind: input, shape index: {}]
  %s3 = inlined_call_operand.vmem [shape: f32[98,64], index: 3, kind: output, shape index: {}]
  %s4 = sld [smem:[#allocation0]]
  $region56: #{policy_network_forward.6} parent=0
    _
  %s6 = ssub.s32 1, %s4
  %s7 = scalar_select 0, %s6, %s4
  $region1: #{policy_network_forward.6} parent=0
    #allocation2 [shape = 'u8[57344]{0}', space=vmem, size = 0xe000, scoped, tag = 'output window, operand 0, single buffered']
    // Predicated region
    $region2: #{policy_network_forward.6} parent=1 // pred_check
      _
    $region3: #{policy_network_forward.6} parent=1 // pred_check_branch
      %9 = sbr.rel (0) target = $region5
    $region4: #{policy_network_forward.6} parent=1 // pred_region
      _
    $region5: #{policy_network_forward.6} parent=1 // pred_fallthru
      _
    // Predicated region
    $region6: #{policy_network_forward.6} parent=1 // pred_check
      _
    $region7: #{policy_network_forward.6} parent=1 // pred_check_branch
      %11 = sbr.rel (0) target = $region9
    $region8: #{policy_network_forward.6} parent=1 // pred_region
      _
    $region9: #{policy_network_forward.6} parent=1 // pred_fallthru
      _
    // Predicated region
    $region10: #{policy_network_forward.6} parent=1 // pred_check
      _
    $region11: #{policy_network_forward.6} parent=1 // pred_check_branch
      %13 = sbr.rel (0) target = $region13
    $region12: #{policy_network_forward.6} parent=1 // pred_region
      _
    $region13: #{policy_network_forward.6} parent=1 // pred_fallthru
      _
    %v15 = vld [vmem:[%s0] sm:$0xff]
    %v16 = vld [vmem:[%s0 + $0x8] sm:$0xff]
    %v17 = vld [vmem:[%s0 + $0x10] sm:$0xff]
    %v18 = vld [vmem:[%s0 + $0x18] sm:$0xff]
    %v19 = vld [vmem:[%s0 + $0x20] sm:$0xff]
    %v20 = vld [vmem:[%s0 + $0x28] sm:$0xff]
    %v21 = vld [vmem:[%s0 + $0x30] sm:$0xff]
    %v22 = vld [vmem:[%s0 + $0x38] sm:$0xff]
    %v23 = vld [vmem:[%s0 + $0x40] sm:$0xff]
    %v24 = vld [vmem:[%s0 + $0x48] sm:$0xff]
    %v25 = vld [vmem:[%s0 + $0x50] sm:$0xff]
    %v26 = vld [vmem:[%s0 + $0x58] sm:$0xff]
    %v27 = vld [vmem:[%s0 + $0x60] sm:$0xff]
    %v28 = vld [vmem:[%s0 + $0x68] sm:$0xff]
    %v29 = vld [vmem:[%s0 + $0x70] sm:$0xff]
    %v30 = vld [vmem:[%s0 + $0x78] sm:$0xff]
    %v31 = vld [vmem:[%s0 + $0x80] sm:$0xff]
    %v32 = vld [vmem:[%s0 + $0x88] sm:$0xff]
    %v33 = vld [vmem:[%s0 + $0x90] sm:$0xff]
    %v34 = vld [vmem:[%s0 + $0x98] sm:$0xff]
    %v35 = vld [vmem:[%s0 + $0xa0] sm:$0xff]
    %v36 = vld [vmem:[%s0 + $0xa8] sm:$0xff]
    %v37 = vld [vmem:[%s0 + $0xb0] sm:$0xff]
    %v38 = vld [vmem:[%s0 + $0xb8] sm:$0xff]
    %v39 = vld [vmem:[%s0 + $0xc0] sm:$0xff]
    %v40 = vld [vmem:[%s0 + $0xc8] sm:$0xff]
    %v41 = vld [vmem:[%s0 + $0xd0] sm:$0xff]
    %v42 = vld [vmem:[%s0 + $0xd8] sm:$0xff]
    %v43 = vld [vmem:[%s0 + $0xe0] sm:$0xff]
    %v44 = vld [vmem:[%s0 + $0xe8] sm:$0xff]
    %v45 = vld [vmem:[%s0 + $0xf0] sm:$0xff]
    %v46 = vld [vmem:[%s0 + $0xf8] sm:$0xff]
    %v47 = vld [vmem:[%s0 + $0x100] sm:$0xff]
    %v48 = vld [vmem:[%s0 + $0x108] sm:$0xff]
    %v49 = vld [vmem:[%s0 + $0x110] sm:$0xff]
    %v50 = vld [vmem:[%s0 + $0x118] sm:$0xff]
    %v51 = vld [vmem:[%s0 + $0x120] sm:$0xff]
    %v52 = vld [vmem:[%s0 + $0x128] sm:$0xff]
    %v53 = vld [vmem:[%s0 + $0x130] sm:$0xff]
    %v54 = vld [vmem:[%s0 + $0x138] sm:$0xff]
    %v55 = vld [vmem:[%s0 + $0x140] sm:$0xff]
    %v56 = vld [vmem:[%s0 + $0x148] sm:$0xff]
    %v57 = vld [vmem:[%s0 + $0x150] sm:$0xff]
    %v58 = vld [vmem:[%s0 + $0x158] sm:$0xff]
    %v59 = vld [vmem:[%s0 + $0x160] sm:$0xff]
    %v60 = vld [vmem:[%s0 + $0x168] sm:$0xff]
    %v61 = vld [vmem:[%s0 + $0x170] sm:$0xff]
    %v62 = vld [vmem:[%s0 + $0x178] sm:$0xff]
    %v63 = vld [vmem:[%s0 + $0x180] sm:$0xff]
    %v64 = vld [vmem:[%s0 + $0x188] sm:$0xff]
    %v65 = vld [vmem:[%s0 + $0x190] sm:$0xff]
    %v66 = vld [vmem:[%s0 + $0x198] sm:$0xff]
    %v67 = vld [vmem:[%s0 + $0x1a0] sm:$0xff]
    %v68 = vld [vmem:[%s0 + $0x1a8] sm:$0xff]
    %v69 = vld [vmem:[%s0 + $0x1b0] sm:$0xff]
    %v70 = vld [vmem:[%s0 + $0x1b8] sm:$0xff]
    %v71 = vld [vmem:[%s0 + $0x1c0] sm:$0xff]
    %v72 = vld [vmem:[%s0 + $0x1c8] sm:$0xff]
    %v73 = vld [vmem:[%s0 + $0x1d0] sm:$0xff]
    %v74 = vld [vmem:[%s0 + $0x1d8] sm:$0xff]
    %v75 = vld [vmem:[%s0 + $0x1e0] sm:$0xff]
    %v76 = vld [vmem:[%s0 + $0x1e8] sm:$0xff]
    %v77 = vld [vmem:[%s0 + $0x1f0] sm:$0xff]
    %v78 = vld [vmem:[%s0 + $0x1f8] sm:$0xff]
    %v79 = vld [vmem:[%s0 + $0x200] sm:$0xff]
    %v80 = vld [vmem:[%s0 + $0x208] sm:$0xff]
    %v81 = vld [vmem:[%s0 + $0x210] sm:$0xff]
    %v82 = vld [vmem:[%s0 + $0x218] sm:$0xff]
    %v83 = vld [vmem:[%s0 + $0x220] sm:$0xff]
    %v84 = vld [vmem:[%s0 + $0x228] sm:$0xff]
    %v85 = vpack.c.bf16 %v20, %v15
    %v86 = vpack.c.bf16 %v21, %v16
    %v87 = vpack.c.bf16 %v22, %v17
    %v88 = vpack.c.bf16 %v23, %v18
    %v89 = vpack.c.bf16 %v24, %v19
    %v90 = vpack.c.bf16 %v30, %v25
    %v91 = vpack.c.bf16 %v31, %v26
    %v92 = vpack.c.bf16 %v32, %v27
    %v93 = vpack.c.bf16 %v33, %v28
    %v94 = vpack.c.bf16 %v34, %v29
    %v95 = vpack.c.bf16 %v40, %v35
    %v96 = vpack.c.bf16 %v41, %v36
    %v97 = vpack.c.bf16 %v42, %v37
    %v98 = vpack.c.bf16 %v43, %v38
    %v99 = vpack.c.bf16 %v44, %v39
    %v100 = vpack.c.bf16 %v50, %v45
    %v101 = vpack.c.bf16 %v51, %v46
    %v102 = vpack.c.bf16 %v52, %v47
    %v103 = vpack.c.bf16 %v53, %v48
    %v104 = vpack.c.bf16 %v54, %v49
    %v105 = vpack.c.bf16 %v60, %v55
    %v106 = vpack.c.bf16 %v61, %v56
    %v107 = vpack.c.bf16 %v62, %v57
    %v108 = vpack.c.bf16 %v63, %v58
    %v109 = vpack.c.bf16 %v64, %v59
    %v110 = vpack.c.bf16 %v70, %v65
    %v111 = vpack.c.bf16 %v71, %v66
    %v112 = vpack.c.bf16 %v72, %v67
    %v113 = vpack.c.bf16 %v73, %v68
    %v114 = vpack.c.bf16 %v74, %v69
    %v115 = vpack.c.bf16 %v80, %v75
    %v116 = vpack.c.bf16 %v81, %v76
    %v117 = vpack.c.bf16 %v82, %v77
    %v118 = vpack.c.bf16 %v83, %v78
    %v119 = vpack.c.bf16 %v84, %v79
    %v120 = vld [vmem:[%s1] sm:$0xf]
    %v121 = vld [vmem:[%s1 + $0x4] sm:$0xf]
    %v122 = vld [vmem:[%s1 + $0x8] sm:$0xf]
    %v123 = vld [vmem:[%s1 + $0xc] sm:$0xf]
    %v124 = vld [vmem:[%s1 + $0x10] sm:$0xf]
    %v125 = vld [vmem:[%s1 + $0x14] sm:$0xf]
    %v126 = vld [vmem:[%s1 + $0x18] sm:$0xf]
    %v127 = vld [vmem:[%s1 + $0x1c] sm:$0xf]
    %v128 = vld [vmem:[%s1 + $0x20] sm:$0xf]
    %v129 = vld [vmem:[%s1 + $0x24] sm:$0xf]
    %v130 = vld [vmem:[%s1 + $0x28] sm:$0xf]
    %v131 = vld [vmem:[%s1 + $0x2c] sm:$0xf]
    %v132 = vld [vmem:[%s1 + $0x30] sm:$0xf]
    %v133 = vld [vmem:[%s1 + $0x34] sm:$0xf]
    %v134 = vld [vmem:[%s1 + $0x38] sm:$0xf]
    %v135 = vld [vmem:[%s1 + $0x3c] sm:$0xf]
    %v136 = vld [vmem:[%s1 + $0x40] sm:$0xf]
    %v137 = vld [vmem:[%s1 + $0x44] sm:$0xf]
    %v138 = vld [vmem:[%s1 + $0x48] sm:$0xf]
    %v139 = vld [vmem:[%s1 + $0x4c] sm:$0xf]
    %v140 = vld [vmem:[%s1 + $0x50] sm:$0xf]
    %v141 = vld [vmem:[%s1 + $0x54] sm:$0xf]
    %v142 = vld [vmem:[%s1 + $0x58] sm:$0xf]
    %v143 = vld [vmem:[%s1 + $0x5c] sm:$0xf]
    %v144 = vld [vmem:[%s1 + $0x60] sm:$0xf]
    %v145 = vld [vmem:[%s1 + $0x64] sm:$0xf]
    %v146 = vld [vmem:[%s1 + $0x68] sm:$0xf]
    %v147 = vld [vmem:[%s1 + $0x6c] sm:$0xf]
    %v148 = vld [vmem:[%s1 + $0x70] sm:$0xf]
    %v149 = vld [vmem:[%s1 + $0x74] sm:$0xf]
    %v150 = vld [vmem:[%s1 + $0x78] sm:$0xf]
    %v151 = vld [vmem:[%s1 + $0x7c] sm:$0xf]
    %v152 = vld [vmem:[%s1 + $0x80] sm:$0xf]
    %v153 = vld [vmem:[%s1 + $0x84] sm:$0xf]
    %v154 = vld [vmem:[%s1 + $0x88] sm:$0xf]
    %v155 = vld [vmem:[%s1 + $0x8c] sm:$0xf]
    %v156 = vld [vmem:[%s1 + $0x90] sm:$0xf]
    %v157 = vld [vmem:[%s1 + $0x94] sm:$0xf]
    %v158 = vld [vmem:[%s1 + $0x98] sm:$0xf]
    %v159 = vld [vmem:[%s1 + $0x9c] sm:$0xf]
    %v160 = vld [vmem:[%s1 + $0xa0] sm:$0xf]
    %v161 = vld [vmem:[%s1 + $0xa4] sm:$0xf]
    %v162 = vld [vmem:[%s1 + $0xa8] sm:$0xf]
    %v163 = vld [vmem:[%s1 + $0xac] sm:$0xf]
    %v164 = vld [vmem:[%s1 + $0xb0] sm:$0xf]
    %v165 = vld [vmem:[%s1 + $0xb4] sm:$0xf]
    %v166 = vld [vmem:[%s1 + $0xb8] sm:$0xf]
    %v167 = vld [vmem:[%s1 + $0xbc] sm:$0xf]
    %v168 = vld [vmem:[%s1 + $0xc0] sm:$0xf]
    %v169 = vld [vmem:[%s1 + $0xc4] sm:$0xf]
    %v170 = vld [vmem:[%s1 + $0xc8] sm:$0xf]
    %v171 = vld [vmem:[%s1 + $0xcc] sm:$0xf]
    %v172 = vld [vmem:[%s1 + $0xd0] sm:$0xf]
    %v173 = vld [vmem:[%s1 + $0xd4] sm:$0xf]
    %v174 = vld [vmem:[%s1 + $0xd8] sm:$0xf]
    %v175 = vld [vmem:[%s1 + $0xdc] sm:$0xf]
    %v176 = vld [vmem:[%s1 + $0xe0] sm:$0xf]
    %v177 = vld [vmem:[%s1 + $0xe4] sm:$0xf]
    %v178 = vld [vmem:[%s1 + $0xe8] sm:$0xf]
    %v179 = vld [vmem:[%s1 + $0xec] sm:$0xf]
    %v180 = vld [vmem:[%s1 + $0xf0] sm:$0xf]
    %v181 = vld [vmem:[%s1 + $0xf4] sm:$0xf]
    %v182 = vld [vmem:[%s1 + $0xf8] sm:$0xf]
    %v183 = vld [vmem:[%s1 + $0xfc] sm:$0xf]
    %v184 = vld [vmem:[%s1 + $0x100] sm:$0xf]
    %v185 = vld [vmem:[%s1 + $0x104] sm:$0xf]
    %v186 = vld [vmem:[%s1 + $0x108] sm:$0xf]
    %v187 = vld [vmem:[%s1 + $0x10c] sm:$0xf]
    %v188 = vld [vmem:[%s1 + $0x110] sm:$0xf]
    %v189 = vld [vmem:[%s1 + $0x114] sm:$0xf]
    %v190 = vld [vmem:[%s1 + $0x118] sm:$0xf]
    %v191 = vld [vmem:[%s1 + $0x11c] sm:$0xf]
    %v192 = vld [vmem:[%s2] sm:$0x1]
    %v194 = vperm.slane %v192, 0
    %v268 = vunpack.c.l.b16 %v120
    %v269 = vunpack.c.l.b16 %v121
    %v270 = vunpack.c.l.b16 %v122
    %v271 = vunpack.c.l.b16 %v123
    %v272 = vunpack.c.l.b16 %v124
    %v273 = vunpack.c.l.b16 %v125
    %v274 = vunpack.c.l.b16 %v126
    %v275 = vunpack.c.l.b16 %v127
    %v276 = vunpack.c.l.b16 %v128
    %v277 = vunpack.c.l.b16 %v129
    %v278 = vunpack.c.l.b16 %v130
    %v279 = vunpack.c.l.b16 %v131
    %v280 = vunpack.c.l.b16 %v132
    %v281 = vunpack.c.l.b16 %v133
    %v282 = vunpack.c.l.b16 %v134
    %v283 = vunpack.c.l.b16 %v135
    %v284 = vunpack.c.l.b16 %v136
    %v285 = vunpack.c.l.b16 %v137
    %v286 = vunpack.c.l.b16 %v138
    %v287 = vunpack.c.l.b16 %v139
    %v288 = vunpack.c.l.b16 %v140
    %v289 = vunpack.c.l.b16 %v141
    %v290 = vunpack.c.l.b16 %v142
    %v291 = vunpack.c.l.b16 %v143
    %v292 = vunpack.c.l.b16 %v144
    %v293 = vunpack.c.l.b16 %v145
    %v294 = vunpack.c.l.b16 %v146
    %v295 = vunpack.c.l.b16 %v147
    %v296 = vunpack.c.l.b16 %v148
    %v297 = vunpack.c.l.b16 %v149
    %v298 = vunpack.c.l.b16 %v150
    %v299 = vunpack.c.l.b16 %v151
    %v300 = vunpack.c.l.b16 %v152
    %v301 = vunpack.c.l.b16 %v153
    %v302 = vunpack.c.l.b16 %v154
    %v303 = vunpack.c.l.b16 %v155
    %v304 = vunpack.c.l.b16 %v156
    %v305 = vunpack.c.l.b16 %v157
    %v306 = vunpack.c.l.b16 %v158
    %v307 = vunpack.c.l.b16 %v159
    %v308 = vunpack.c.l.b16 %v160
    %v309 = vunpack.c.l.b16 %v161
    %v310 = vunpack.c.l.b16 %v162
    %v311 = vunpack.c.l.b16 %v163
    %v312 = vunpack.c.l.b16 %v164
    %v313 = vunpack.c.l.b16 %v165
    %v314 = vunpack.c.l.b16 %v166
    %v315 = vunpack.c.l.b16 %v167
    %v316 = vunpack.c.l.b16 %v168
    %v317 = vunpack.c.l.b16 %v169
    %v318 = vunpack.c.l.b16 %v170
    %v319 = vunpack.c.l.b16 %v171
    %v320 = vunpack.c.l.b16 %v172
    %v321 = vunpack.c.l.b16 %v173
    %v322 = vunpack.c.l.b16 %v174
    %v323 = vunpack.c.l.b16 %v175
    %v324 = vunpack.c.l.b16 %v176
    %v325 = vunpack.c.l.b16 %v177
    %v326 = vunpack.c.l.b16 %v178
    %v327 = vunpack.c.l.b16 %v179
    %v328 = vunpack.c.l.b16 %v180
    %v329 = vunpack.c.l.b16 %v181
    %v330 = vunpack.c.l.b16 %v182
    %v331 = vunpack.c.l.b16 %v183
    %v332 = vunpack.c.l.b16 %v184
    %v333 = vunpack.c.l.b16 %v185
    %v334 = vunpack.c.l.b16 %v186
    %v335 = vunpack.c.l.b16 %v187
    %v336 = vunpack.c.l.b16 %v188
    %v337 = vunpack.c.l.b16 %v189
    %v338 = vunpack.c.l.b16 %v190
    %v339 = vunpack.c.l.b16 %v191
    %v340 = vpack.c.b16 %v269, %v268
    %v341 = vpack.c.b16 %v271, %v270
    %v342 = vpack.c.b16 %v273, %v272
    %v343 = vpack.c.b16 %v275, %v274
    %v344 = vpack.c.b16 %v277, %v276
    %v345 = vpack.c.b16 %v279, %v278
    %v346 = vpack.c.b16 %v281, %v280
    %v347 = vpack.c.b16 %v283, %v282
    %v348 = vpack.c.b16 %v285, %v284
    %v349 = vpack.c.b16 %v287, %v286
    %v350 = vpack.c.b16 %v289, %v288
    %v351 = vpack.c.b16 %v291, %v290
    %v352 = vpack.c.b16 %v293, %v292
    %v353 = vpack.c.b16 %v295, %v294
    %v354 = vpack.c.b16 %v297, %v296
    %v355 = vpack.c.b16 %v299, %v298
    %v356 = vpack.c.b16 %v301, %v300
    %v357 = vpack.c.b16 %v303, %v302
    %v358 = vpack.c.b16 %v305, %v304
    %v359 = vpack.c.b16 %v307, %v306
    %v360 = vpack.c.b16 %v309, %v308
    %v361 = vpack.c.b16 %v311, %v310
    %v362 = vpack.c.b16 %v313, %v312
    %v363 = vpack.c.b16 %v315, %v314
    %v364 = vpack.c.b16 %v317, %v316
    %v365 = vpack.c.b16 %v319, %v318
    %v366 = vpack.c.b16 %v321, %v320
    %v367 = vpack.c.b16 %v323, %v322
    %v368 = vpack.c.b16 %v325, %v324
    %v369 = vpack.c.b16 %v327, %v326
    %v370 = vpack.c.b16 %v329, %v328
    %v371 = vpack.c.b16 %v331, %v330
    %v372 = vpack.c.b16 %v333, %v332
    %v373 = vpack.c.b16 %v335, %v334
    %v374 = vpack.c.b16 %v337, %v336
    %v375 = vpack.c.b16 %v339, %v338
    %vm412 = vcmask 523264
    %v414 = vsel %vm412, %v89, 0
    %v417 = vsel %vm412, %v94, 0
    %v420 = vsel %vm412, %v99, 0
    %v423 = vsel %vm412, %v104, 0
    %v426 = vsel %vm412, %v109, 0
    %v429 = vsel %vm412, %v114, 0
    %v432 = vsel %vm412, %v119, 0
    %434 = vmatpush.bf16.msra.mxu0 %v347
    %435 = vmatpush.bf16.msra.mxu0 %v346
    %436 = vmatpush.bf16.msra.mxu0 %v345
    %437 = vmatpush.bf16.msra.mxu0 %v344
    %438 = vmatpush.bf16.msra.mxu0 %v343
    %439 = vmatpush.bf16.msra.mxu0 %v342
    %440 = vmatpush.bf16.msra.mxu0 %v341
    %441 = vmatpush.bf16.msra.mxu0 %v340
    %442 = vmatmul.bf16.gmra.mxu0 %v85
    %v443 = vpop.f32.mrf.mxu0
    %v444 = vadd.f32 %v194, %v443
    %v445 = vpop.f32.mrf.mxu0
    %v446 = vadd.f32 %v194, %v445
    %447 = vmatmul.bf16.gmra.mxu0 %v90
    %v448 = vpop.f32.mrf.mxu0
    %v449 = vadd.f32 %v194, %v448
    %v450 = vpop.f32.mrf.mxu0
    %v451 = vadd.f32 %v194, %v450
    %452 = vmatmul.bf16.gmra.mxu0 %v95
    %v453 = vpop.f32.mrf.mxu0
    %v454 = vadd.f32 %v194, %v453
    %v455 = vpop.f32.mrf.mxu0
    %v456 = vadd.f32 %v194, %v455
    %457 = vmatmul.bf16.gmra.mxu0 %v100
    %v458 = vpop.f32.mrf.mxu0
    %v459 = vadd.f32 %v194, %v458
    %v460 = vpop.f32.mrf.mxu0
    %v461 = vadd.f32 %v194, %v460
    %462 = vmatmul.bf16.gmra.mxu0 %v105
    %v463 = vpop.f32.mrf.mxu0
    %v464 = vadd.f32 %v194, %v463
    %v465 = vpop.f32.mrf.mxu0
    %v466 = vadd.f32 %v194, %v465
    %467 = vmatmul.bf16.gmra.mxu0 %v110
    %v468 = vpop.f32.mrf.mxu0
    %v469 = vadd.f32 %v194, %v468
    %v470 = vpop.f32.mrf.mxu0
    %v471 = vadd.f32 %v194, %v470
    %472 = vmatmul.bf16.gmra.mxu0 %v115
    %v473 = vpop.f32.mrf.mxu0
    %v474 = vadd.f32 %v194, %v473
    %v475 = vpop.f32.mrf.mxu0
    %v476 = vadd.f32 %v194, %v475
    %477 = vdwg.mxu0
    %478 = vmatpush.bf16.msra.mxu0 %v355
    %479 = vmatpush.bf16.msra.mxu0 %v354
    %480 = vmatpush.bf16.msra.mxu0 %v353
    %481 = vmatpush.bf16.msra.mxu0 %v352
    %482 = vmatpush.bf16.msra.mxu0 %v351
    %483 = vmatpush.bf16.msra.mxu0 %v350
    %484 = vmatpush.bf16.msra.mxu0 %v349
    %485 = vmatpush.bf16.msra.mxu0 %v348
    %486 = vmatmul.bf16.gmra.mxu0 %v86
    %v487 = vpop.f32.mrf.mxu0
    %v488 = vadd.f32 %v444, %v487
    %v489 = vpop.f32.mrf.mxu0
    %v490 = vadd.f32 %v446, %v489
    %491 = vmatmul.bf16.gmra.mxu0 %v91
    %v492 = vpop.f32.mrf.mxu0
    %v493 = vadd.f32 %v449, %v492
    %v494 = vpop.f32.mrf.mxu0
    %v495 = vadd.f32 %v451, %v494
    %496 = vmatmul.bf16.gmra.mxu0 %v96
    %v497 = vpop.f32.mrf.mxu0
    %v498 = vadd.f32 %v454, %v497
    %v499 = vpop.f32.mrf.mxu0
    %v500 = vadd.f32 %v456, %v499
    %501 = vmatmul.bf16.gmra.mxu0 %v101
    %v502 = vpop.f32.mrf.mxu0
    %v503 = vadd.f32 %v459, %v502
    %v504 = vpop.f32.mrf.mxu0
    %v505 = vadd.f32 %v461, %v504
    %506 = vmatmul.bf16.gmra.mxu0 %v106
    %v507 = vpop.f32.mrf.mxu0
    %v508 = vadd.f32 %v464, %v507
    %v509 = vpop.f32.mrf.mxu0
    %v510 = vadd.f32 %v466, %v509
    %511 = vmatmul.bf16.gmra.mxu0 %v111
    %v512 = vpop.f32.mrf.mxu0
    %v513 = vadd.f32 %v469, %v512
    %v514 = vpop.f32.mrf.mxu0
    %v515 = vadd.f32 %v471, %v514
    %516 = vmatmul.bf16.gmra.mxu0 %v116
    %v517 = vpop.f32.mrf.mxu0
    %v518 = vadd.f32 %v474, %v517
    %v519 = vpop.f32.mrf.mxu0
    %v520 = vadd.f32 %v476, %v519
    %521 = vdwg.mxu0
    %522 = vmatpush.bf16.msra.mxu0 %v363
    %523 = vmatpush.bf16.msra.mxu0 %v362
    %524 = vmatpush.bf16.msra.mxu0 %v361
    %525 = vmatpush.bf16.msra.mxu0 %v360
    %526 = vmatpush.bf16.msra.mxu0 %v359
    %527 = vmatpush.bf16.msra.mxu0 %v358
    %528 = vmatpush.bf16.msra.mxu0 %v357
    %529 = vmatpush.bf16.msra.mxu0 %v356
    %530 = vmatmul.bf16.gmra.mxu0 %v87
    %v531 = vpop.f32.mrf.mxu0
    %v532 = vadd.f32 %v488, %v531
    %v533 = vpop.f32.mrf.mxu0
    %v534 = vadd.f32 %v490, %v533
    %535 = vmatmul.bf16.gmra.mxu0 %v92
    %v536 = vpop.f32.mrf.mxu0
    %v537 = vadd.f32 %v493, %v536
    %v538 = vpop.f32.mrf.mxu0
    %v539 = vadd.f32 %v495, %v538
    %540 = vmatmul.bf16.gmra.mxu0 %v97
    %v541 = vpop.f32.mrf.mxu0
    %v542 = vadd.f32 %v498, %v541
    %v543 = vpop.f32.mrf.mxu0
    %v544 = vadd.f32 %v500, %v543
    %545 = vmatmul.bf16.gmra.mxu0 %v102
    %v546 = vpop.f32.mrf.mxu0
    %v547 = vadd.f32 %v503, %v546
    %v548 = vpop.f32.mrf.mxu0
    %v549 = vadd.f32 %v505, %v548
    %550 = vmatmul.bf16.gmra.mxu0 %v107
    %v551 = vpop.f32.mrf.mxu0
    %v552 = vadd.f32 %v508, %v551
    %v553 = vpop.f32.mrf.mxu0
    %v554 = vadd.f32 %v510, %v553
    %555 = vmatmul.bf16.gmra.mxu0 %v112
    %v556 = vpop.f32.mrf.mxu0
    %v557 = vadd.f32 %v513, %v556
    %v558 = vpop.f32.mrf.mxu0
    %v559 = vadd.f32 %v515, %v558
    %560 = vmatmul.bf16.gmra.mxu0 %v117
    %v561 = vpop.f32.mrf.mxu0
    %v562 = vadd.f32 %v518, %v561
    %v563 = vpop.f32.mrf.mxu0
    %v564 = vadd.f32 %v520, %v563
    %565 = vdwg.mxu0
    %566 = vmatpush.bf16.msra.mxu0 %v371
    %567 = vmatpush.bf16.msra.mxu0 %v370
    %568 = vmatpush.bf16.msra.mxu0 %v369
    %569 = vmatpush.bf16.msra.mxu0 %v368
    %570 = vmatpush.bf16.msra.mxu0 %v367
    %571 = vmatpush.bf16.msra.mxu0 %v366
    %572 = vmatpush.bf16.msra.mxu0 %v365
    %573 = vmatpush.bf16.msra.mxu0 %v364
    %574 = vmatmul.bf16.gmra.mxu0 %v88
    %v575 = vpop.f32.mrf.mxu0
    %v576 = vadd.f32 %v532, %v575
    %v577 = vpop.f32.mrf.mxu0
    %v578 = vadd.f32 %v534, %v577
    %579 = vmatmul.bf16.gmra.mxu0 %v93
    %v580 = vpop.f32.mrf.mxu0
    %v581 = vadd.f32 %v537, %v580
    %v582 = vpop.f32.mrf.mxu0
    %v583 = vadd.f32 %v539, %v582
    %584 = vmatmul.bf16.gmra.mxu0 %v98
    %v585 = vpop.f32.mrf.mxu0
    %v586 = vadd.f32 %v542, %v585
    %v587 = vpop.f32.mrf.mxu0
    %v588 = vadd.f32 %v544, %v587
    %589 = vmatmul.bf16.gmra.mxu0 %v103
    %v590 = vpop.f32.mrf.mxu0
    %v591 = vadd.f32 %v547, %v590
    %v592 = vpop.f32.mrf.mxu0
    %v593 = vadd.f32 %v549, %v592
    %594 = vmatmul.bf16.gmra.mxu0 %v108
    %v595 = vpop.f32.mrf.mxu0
    %v596 = vadd.f32 %v552, %v595
    %v597 = vpop.f32.mrf.mxu0
    %v598 = vadd.f32 %v554, %v597
    %599 = vmatmul.bf16.gmra.mxu0 %v113
    %v600 = vpop.f32.mrf.mxu0
    %v601 = vadd.f32 %v557, %v600
    %v602 = vpop.f32.mrf.mxu0
    %v603 = vadd.f32 %v559, %v602
    %604 = vmatmul.bf16.gmra.mxu0 %v118
    %v605 = vpop.f32.mrf.mxu0
    %v606 = vadd.f32 %v562, %v605
    %v607 = vpop.f32.mrf.mxu0
    %v608 = vadd.f32 %v564, %v607
    %609 = vdwg.mxu0
    %610 = vmatpush.bf16.msra.mxu0 0
    %611 = vmatpush.bf16.msra.mxu0 0
    %612 = vmatpush.bf16.msra.mxu0 0
    %613 = vmatpush.bf16.msra.mxu0 0
    %614 = vmatpush.bf16.msra.mxu0 %v375
    %615 = vmatpush.bf16.msra.mxu0 %v374
    %616 = vmatpush.bf16.msra.mxu0 %v373
    %617 = vmatpush.bf16.msra.mxu0 %v372
    %618 = vmatmul.bf16.gmra.mxu0 %v414
    %v619 = vpop.f32.mrf.mxu0
    %v620 = vadd.f32 %v576, %v619
    %v621 = vpop.f32.mrf.mxu0
    %v622 = vadd.f32 %v578, %v621
    %623 = vmatmul.bf16.gmra.mxu0 %v417
    %v624 = vpop.f32.mrf.mxu0
    %v625 = vadd.f32 %v581, %v624
    %v626 = vpop.f32.mrf.mxu0
    %v627 = vadd.f32 %v583, %v626
    %628 = vmatmul.bf16.gmra.mxu0 %v420
    %v629 = vpop.f32.mrf.mxu0
    %v630 = vadd.f32 %v586, %v629
    %v631 = vpop.f32.mrf.mxu0
    %v632 = vadd.f32 %v588, %v631
    %633 = vmatmul.bf16.gmra.mxu0 %v423
    %v634 = vpop.f32.mrf.mxu0
    %v635 = vadd.f32 %v591, %v634
    %v636 = vpop.f32.mrf.mxu0
    %v637 = vadd.f32 %v593, %v636
    %638 = vmatmul.bf16.gmra.mxu0 %v426
    %v639 = vpop.f32.mrf.mxu0
    %v640 = vadd.f32 %v596, %v639
    %v641 = vpop.f32.mrf.mxu0
    %v642 = vadd.f32 %v598, %v641
    %643 = vmatmul.bf16.gmra.mxu0 %v429
    %v644 = vpop.f32.mrf.mxu0
    %v645 = vadd.f32 %v601, %v644
    %v646 = vpop.f32.mrf.mxu0
    %v647 = vadd.f32 %v603, %v646
    %648 = vmatmul.bf16.gmra.mxu0 %v432
    %v649 = vpop.f32.mrf.mxu0
    %v650 = vadd.f32 %v606, %v649
    %v651 = vpop.f32.mrf.mxu0
    %v652 = vadd.f32 %v608, %v651
    %653 = vdwg.mxu0
    %v654 = vmax.f32 %v620, 0.0
    %v655 = vmax.f32 %v622, 0.0
    %v656 = vmax.f32 %v625, 0.0
    %v657 = vmax.f32 %v627, 0.0
    %v658 = vmax.f32 %v630, 0.0
    %v659 = vmax.f32 %v632, 0.0
    %v660 = vmax.f32 %v635, 0.0
    %v661 = vmax.f32 %v637, 0.0
    %v662 = vmax.f32 %v640, 0.0
    %v663 = vmax.f32 %v642, 0.0
    %v664 = vmax.f32 %v645, 0.0
    %v665 = vmax.f32 %v647, 0.0
    %v666 = vmax.f32 %v650, 0.0
    %v667 = vmax.f32 %v652, 0.0
    %668 = vst.msk [vmem:[#allocation2] sm:$0xff] %vm412, %v654
    %669 = vst.msk [vmem:[#allocation2 + $0x8] sm:$0xff] %vm412, %v655
    %670 = vst.msk [vmem:[#allocation2 + $0x10] sm:$0xff] %vm412, %v656
    %671 = vst.msk [vmem:[#allocation2 + $0x18] sm:$0xff] %vm412, %v657
    %672 = vst.msk [vmem:[#allocation2 + $0x20] sm:$0xff] %vm412, %v658
    %673 = vst.msk [vmem:[#allocation2 + $0x28] sm:$0xff] %vm412, %v659
    %674 = vst.msk [vmem:[#allocation2 + $0x30] sm:$0xff] %vm412, %v660
    %675 = vst.msk [vmem:[#allocation2 + $0x38] sm:$0xff] %vm412, %v661
    %676 = vst.msk [vmem:[#allocation2 + $0x40] sm:$0xff] %vm412, %v662
    %677 = vst.msk [vmem:[#allocation2 + $0x48] sm:$0xff] %vm412, %v663
    %678 = vst.msk [vmem:[#allocation2 + $0x50] sm:$0xff] %vm412, %v664
    %679 = vst.msk [vmem:[#allocation2 + $0x58] sm:$0xff] %vm412, %v665
    %680 = vst.msk [vmem:[#allocation2 + $0x60] sm:$0xff] %vm412, %v666
    %681 = vst.msk [vmem:[#allocation2 + $0x68] sm:$0xff] %vm412, %v667
    // Predicated region
    $region14: #{policy_network_forward.6} parent=1 // pred_check
      _
    $region15: #{policy_network_forward.6} parent=1 // pred_check_branch
      %683 = sbr.rel (0) target = $region17
    $region16: #{policy_network_forward.6} parent=1 // pred_region
      // Predicated region
      $region18: #{policy_network_forward.6} parent=16 // pred_check
        _
      $region19: #{policy_network_forward.6} parent=16 // pred_check_branch
        %685 = sbr.rel (0) target = $region21
      $region20: #{policy_network_forward.6} parent=16 // pred_region
        // Predicated region
        $region22: #{policy_network_forward.6} parent=20 // pred_check
          _
        $region23: #{policy_network_forward.6} parent=20 // pred_check_branch
          %687 = sbr.rel (0) target = $region25
        $region24: #{policy_network_forward.6} parent=20 // pred_region
          // Predicated region
          $region37: #{policy_network_forward.6} parent=24 // pred_check
            _
          $region38: #{policy_network_forward.6} parent=24 // pred_check_branch
            %727 = sbr.rel (0) target = $region40
          $region39: #{policy_network_forward.6} parent=24 // pred_region
            loop: start=0, step=1, limit=1
            $region41: #{policy_network_forward.6} parent=39 // loop_pre_header
              _
            $region42: #{policy_network_forward.6} parent=39 // loop_header
              %s729 = sphi 0, %s733
              %p730 = scmp.ge.s32.totalorder %s729, 1
              %s734 = sphi [#allocation2], [#allocation2]
              %s735 = sphi %s3, %s3
            $region43: #{policy_network_forward.6} parent=39 // loop_header_branch
              %732 = sbr.rel (%p730) target = $region47
            $region44: #{policy_network_forward.6} parent=39 // loop_body
              %v736 = vld [vmem:[%s734] sm:$0xff]
              %737 = vst [vmem:[%s735] sm:$0xff] %v736
              %v738 = vld [vmem:[%s734 + $0x8] sm:$0xff]
              %739 = vst [vmem:[%s735 + $0x8] sm:$0xff] %v738
              %v740 = vld [vmem:[%s734 + $0x10] sm:$0xff]
              %741 = vst [vmem:[%s735 + $0x10] sm:$0xff] %v740
              %v742 = vld [vmem:[%s734 + $0x18] sm:$0xff]
              %743 = vst [vmem:[%s735 + $0x18] sm:$0xff] %v742
              %v744 = vld [vmem:[%s734 + $0x20] sm:$0xff]
              %745 = vst [vmem:[%s735 + $0x20] sm:$0xff] %v744
              %v746 = vld [vmem:[%s734 + $0x28] sm:$0xff]
              %747 = vst [vmem:[%s735 + $0x28] sm:$0xff] %v746
              %v748 = vld [vmem:[%s734 + $0x30] sm:$0xff]
              %749 = vst [vmem:[%s735 + $0x30] sm:$0xff] %v748
              %v750 = vld [vmem:[%s734 + $0x38] sm:$0xff]
              %751 = vst [vmem:[%s735 + $0x38] sm:$0xff] %v750
              %v752 = vld [vmem:[%s734 + $0x40] sm:$0xff]
              %753 = vst [vmem:[%s735 + $0x40] sm:$0xff] %v752
              %v754 = vld [vmem:[%s734 + $0x48] sm:$0xff]
              %755 = vst [vmem:[%s735 + $0x48] sm:$0xff] %v754
              %v756 = vld [vmem:[%s734 + $0x50] sm:$0xff]
              %757 = vst [vmem:[%s735 + $0x50] sm:$0xff] %v756
              %v758 = vld [vmem:[%s734 + $0x58] sm:$0xff]
              %759 = vst [vmem:[%s735 + $0x58] sm:$0xff] %v758
              %v760 = vld [vmem:[%s734 + $0x60] sm:$0xff]
              %761 = vst [vmem:[%s735 + $0x60] sm:$0xff] %v760
            $region45: #{policy_network_forward.6} parent=39 // loop_footer
              %s733 = sadd.s32 1, %s729
            $region46: #{policy_network_forward.6} parent=39 // loop_footer_branch
              %728 = sbr.rel target = $region42
            $region47: #{policy_network_forward.6} parent=39 // loop_exit
              _
          $region40: #{policy_network_forward.6} parent=24 // pred_fallthru
            _
          // Predicated region
          $region48: #{policy_network_forward.6} parent=24 // pred_check
            _
          $region49: #{policy_network_forward.6} parent=24 // pred_check_branch
            %763 = sbr.rel target = $region51
          $region50: #{policy_network_forward.6} parent=24 // pred_region
            _
          $region51: #{policy_network_forward.6} parent=24 // pred_fallthru
            _
        $region25: #{policy_network_forward.6} parent=20 // pred_fallthru
          _
        // Predicated region
        $region26: #{policy_network_forward.6} parent=20 // pred_check
          _
        $region27: #{policy_network_forward.6} parent=20 // pred_check_branch
          %689 = sbr.rel target = $region29
        $region28: #{policy_network_forward.6} parent=20 // pred_region
          %s691 = ssub.s32 256, 1
          loop: start=0, step=1, limit=1
          $region30: #{policy_network_forward.6} parent=28 // loop_pre_header
            _
          $region31: #{policy_network_forward.6} parent=28 // loop_header
            %s693 = sphi 0, %s697
            %p694 = scmp.ge.s32.totalorder %s693, 1
            %s698 = sphi [#allocation2], [#allocation2]
            %s699 = sphi %s3, %s3
          $region32: #{policy_network_forward.6} parent=28 // loop_header_branch
            %696 = sbr.rel (%p694) target = $region36
          $region33: #{policy_network_forward.6} parent=28 // loop_body
            %v700 = vld [vmem:[%s698] sm:%s691]
            %701 = vst [vmem:[%s699] sm:%s691] %v700
            %v702 = vld [vmem:[%s698 + $0x8] sm:%s691]
            %703 = vst [vmem:[%s699 + $0x8] sm:%s691] %v702
            %v704 = vld [vmem:[%s698 + $0x10] sm:%s691]
            %705 = vst [vmem:[%s699 + $0x10] sm:%s691] %v704
            %v706 = vld [vmem:[%s698 + $0x18] sm:%s691]
            %707 = vst [vmem:[%s699 + $0x18] sm:%s691] %v706
            %v708 = vld [vmem:[%s698 + $0x20] sm:%s691]
            %709 = vst [vmem:[%s699 + $0x20] sm:%s691] %v708
            %v710 = vld [vmem:[%s698 + $0x28] sm:%s691]
            %711 = vst [vmem:[%s699 + $0x28] sm:%s691] %v710
            %v712 = vld [vmem:[%s698 + $0x30] sm:%s691]
            %713 = vst [vmem:[%s699 + $0x30] sm:%s691] %v712
            %v714 = vld [vmem:[%s698 + $0x38] sm:%s691]
            %715 = vst [vmem:[%s699 + $0x38] sm:%s691] %v714
            %v716 = vld [vmem:[%s698 + $0x40] sm:%s691]
            %717 = vst [vmem:[%s699 + $0x40] sm:%s691] %v716
            %v718 = vld [vmem:[%s698 + $0x48] sm:%s691]
            %719 = vst [vmem:[%s699 + $0x48] sm:%s691] %v718
            %v720 = vld [vmem:[%s698 + $0x50] sm:%s691]
            %721 = vst [vmem:[%s699 + $0x50] sm:%s691] %v720
            %v722 = vld [vmem:[%s698 + $0x58] sm:%s691]
            %723 = vst [vmem:[%s699 + $0x58] sm:%s691] %v722
            %v724 = vld [vmem:[%s698 + $0x60] sm:%s691]
            %725 = vst [vmem:[%s699 + $0x60] sm:%s691] %v724
          $region34: #{policy_network_forward.6} parent=28 // loop_footer
            %s697 = sadd.s32 1, %s693
          $region35: #{policy_network_forward.6} parent=28 // loop_footer_branch
            %692 = sbr.rel target = $region31
          $region36: #{policy_network_forward.6} parent=28 // loop_exit
            _
        $region29: #{policy_network_forward.6} parent=20 // pred_fallthru
          _
      $region21: #{policy_network_forward.6} parent=16 // pred_fallthru
        _
      %764 = vnop
    $region17: #{policy_network_forward.6} parent=1 // pred_fallthru
      _
    // Predicated region
    $region52: #{policy_network_forward.6} parent=1 // pred_check
      _
    $region53: #{policy_network_forward.6} parent=1 // pred_check_branch
      %766 = sbr.rel (0) target = $region55
    $region54: #{policy_network_forward.6} parent=1 // pred_region
      _
    $region55: #{policy_network_forward.6} parent=1 // pred_fallthru
      _

// kernel: policy_network_forward.7
$region0: #{policy_network_forward.7}
  #allocation0 [shape = 'u32[]', space=smem, size = 0x4, offset = 0x4, fixed_abs, tag = 'smem constant byte address 0x4 - core index']
  #allocation1 [shape = 'u32[72,128]{1,0:T(1,128)}', space=vmem, size = 0x9000, scoped, tag = 'internal scratch']
  #allocation2 [shape = 'f32[1,1]{1,0:T(1,128)S(1)}', space=vmem, size = 0x200, scoped, tag = 'scoped memory for policy_network_forward.7']
  %s0 = inlined_call_operand.vmem [shape: f32[2,3136], index: 0, kind: input, shape index: {}]
  %s1 = inlined_call_operand.vmem [shape: bf16[3136,128], index: 1, kind: input, shape index: {}]
  %s2 = inlined_call_operand.vmem [shape: f32[1,128], index: 2, kind: input, shape index: {}]
  %s3 = inlined_call_operand.vmem [shape: bf16[128,1], index: 3, kind: input, shape index: {}]
  %s4 = inlined_call_operand.<no memory space> [shape: f32[1,1], index: 4, kind: input, shape index: {}]
  %s5 = inlined_call_operand.vmem [shape: f32[2,1], index: 5, kind: output, shape index: {}]
  %s6 = sld [smem:[#allocation0]]
  $region60: #{policy_network_forward.7} parent=0
    _
  %s8 = ssub.s32 1, %s6
  %s9 = scalar_select 0, %s8, %s6
  %v10 = vstv %s4
  %11 = vst [vmem:[#allocation2] sm:$0x1] %v10
  $region1: #{policy_network_forward.7} parent=0
    #allocation3 [shape = 'u8[8192]{0}', space=vmem, size = 0x2000, scoped, tag = 'output window, operand 0, single buffered']
    // Predicated region
    $region2: #{policy_network_forward.7} parent=1 // pred_check
      _
    $region3: #{policy_network_forward.7} parent=1 // pred_check_branch
      %13 = sbr.rel (0) target = $region5
    $region4: #{policy_network_forward.7} parent=1 // pred_region
      _
    $region5: #{policy_network_forward.7} parent=1 // pred_fallthru
      _
    // Predicated region
    $region6: #{policy_network_forward.7} parent=1 // pred_check
      _
    $region7: #{policy_network_forward.7} parent=1 // pred_check_branch
      %15 = sbr.rel (0) target = $region9
    $region8: #{policy_network_forward.7} parent=1 // pred_region
      _
    $region9: #{policy_network_forward.7} parent=1 // pred_fallthru
      _
    // Predicated region
    $region10: #{policy_network_forward.7} parent=1 // pred_check
      _
    $region11: #{policy_network_forward.7} parent=1 // pred_check_branch
      %17 = sbr.rel (0) target = $region13
    $region12: #{policy_network_forward.7} parent=1 // pred_region
      _
    $region13: #{policy_network_forward.7} parent=1 // pred_fallthru
      _
    // Predicated region
    $region14: #{policy_network_forward.7} parent=1 // pred_check
      _
    $region15: #{policy_network_forward.7} parent=1 // pred_check_branch
      %19 = sbr.rel (0) target = $region17
    $region16: #{policy_network_forward.7} parent=1 // pred_region
      _
    $region17: #{policy_network_forward.7} parent=1 // pred_fallthru
      _
    // Predicated region
    $region18: #{policy_network_forward.7} parent=1 // pred_check
      _
    $region19: #{policy_network_forward.7} parent=1 // pred_check_branch
      %21 = sbr.rel (0) target = $region21
    $region20: #{policy_network_forward.7} parent=1 // pred_region
      _
    $region21: #{policy_network_forward.7} parent=1 // pred_fallthru
      _
    %v23 = vld [vmem:[%s0] sm:$0xff]
    %v24 = vld [vmem:[%s0 + $0x8] sm:$0xff]
    %v25 = vld [vmem:[%s0 + $0x10] sm:$0xff]
    %v26 = vld [vmem:[%s0 + $0x18] sm:$0xff]
    %v27 = vld [vmem:[%s0 + $0x20] sm:$0xff]
    %v28 = vld [vmem:[%s0 + $0x28] sm:$0xff]
    %v29 = vld [vmem:[%s0 + $0x30] sm:$0x3]
    %v30 = vld [vmem:[%s0 + $0x32] sm:$0xff]
    %v31 = vld [vmem:[%s0 + $0x3a] sm:$0xff]
    %v32 = vld [vmem:[%s0 + $0x42] sm:$0xff]
    %v33 = vld [vmem:[%s0 + $0x4a] sm:$0xff]
    %v34 = vld [vmem:[%s0 + $0x52] sm:$0xff]
    %v35 = vld [vmem:[%s0 + $0x5a] sm:$0xff]
    %v36 = vld [vmem:[%s0 + $0x62] sm:$0x3]
    %v37 = vld [vmem:[%s0 + $0x64] sm:$0xff]
    %v38 = vld [vmem:[%s0 + $0x6c] sm:$0xff]
    %v39 = vld [vmem:[%s0 + $0x74] sm:$0xff]
    %v40 = vld [vmem:[%s0 + $0x7c] sm:$0xff]
    %v41 = vld [vmem:[%s0 + $0x84] sm:$0xff]
    %v42 = vld [vmem:[%s0 + $0x8c] sm:$0xff]
    %v43 = vld [vmem:[%s0 + $0x94] sm:$0x3]
    %v44 = vld [vmem:[%s0 + $0x96] sm:$0xff]
    %v45 = vld [vmem:[%s0 + $0x9e] sm:$0xff]
    %v46 = vld [vmem:[%s0 + $0xa6] sm:$0xff]
    %v47 = vld [vmem:[%s0 + $0xae] sm:$0xff]
    %v48 = vld [vmem:[%s0 + $0xb6] sm:$0xff]
    %v49 = vld [vmem:[%s0 + $0xbe] sm:$0xff]
    %v50 = vld [vmem:[%s0 + $0xc6] sm:$0x3]
    %v51 = vld [vmem:[%s0 + $0xc8] sm:$0xff]
    %v52 = vld [vmem:[%s0 + $0xd0] sm:$0xff]
    %v53 = vld [vmem:[%s0 + $0xd8] sm:$0xff]
    %v54 = vld [vmem:[%s0 + $0xe0] sm:$0xff]
    %v55 = vld [vmem:[%s0 + $0xe8] sm:$0xff]
    %v56 = vld [vmem:[%s0 + $0xf0] sm:$0xff]
    %v57 = vld [vmem:[%s0 + $0xf8] sm:$0x3]
    %v58 = vld [vmem:[%s0 + $0xfa] sm:$0xff]
    %v59 = vld [vmem:[%s0 + $0x102] sm:$0xff]
    %v60 = vld [vmem:[%s0 + $0x10a] sm:$0xff]
    %v61 = vld [vmem:[%s0 + $0x112] sm:$0xff]
    %v62 = vld [vmem:[%s0 + $0x11a] sm:$0xff]
    %v63 = vld [vmem:[%s0 + $0x122] sm:$0xff]
    %v64 = vld [vmem:[%s0 + $0x12a] sm:$0x3]
    %v65 = vld [vmem:[%s0 + $0x12c] sm:$0xff]
    %v66 = vld [vmem:[%s0 + $0x134] sm:$0xff]
    %v67 = vld [vmem:[%s0 + $0x13c] sm:$0xff]
    %v68 = vld [vmem:[%s0 + $0x144] sm:$0xff]
    %v69 = vld [vmem:[%s0 + $0x14c] sm:$0xff]
    %v70 = vld [vmem:[%s0 + $0x154] sm:$0xff]
    %v71 = vld [vmem:[%s0 + $0x15c] sm:$0x3]
    %v72 = vld [vmem:[%s0 + $0x15e] sm:$0xff]
    %v73 = vld [vmem:[%s0 + $0x166] sm:$0xff]
    %v74 = vld [vmem:[%s0 + $0x16e] sm:$0xff]
    %v75 = vld [vmem:[%s0 + $0x176] sm:$0xff]
    %v76 = vld [vmem:[%s0 + $0x17e] sm:$0xff]
    %v77 = vld [vmem:[%s0 + $0x186] sm:$0xff]
    %v78 = vld [vmem:[%s0 + $0x18e] sm:$0x3]
    %135 = vst [vmem:[#allocation1] ss:$4 sm:$0xff] %v23
    %s136 = scalar_lea.vmem [#allocation1], 1
    %137 = vst [vmem:[%s136] ss:$4 sm:$0xff] %v30
    %s138 = scalar_lea.vmem [#allocation1], 2
    %139 = vst [vmem:[%s138] ss:$4 sm:$0xff] %v37
    %s140 = scalar_lea.vmem [#allocation1], 3
    %141 = vst [vmem:[%s140] ss:$4 sm:$0xff] %v44
    %s142 = scalar_lea.vmem [#allocation1], 32
    %143 = vst [vmem:[%s142] ss:$4 sm:$0xff] %v24
    %s144 = scalar_lea.vmem [#allocation1], 33
    %145 = vst [vmem:[%s144] ss:$4 sm:$0xff] %v31
    %s146 = scalar_lea.vmem [#allocation1], 34
    %147 = vst [vmem:[%s146] ss:$4 sm:$0xff] %v38
    %s148 = scalar_lea.vmem [#allocation1], 35
    %149 = vst [vmem:[%s148] ss:$4 sm:$0xff] %v45
    %v150 = vld.sshfl [vmem:[#allocation1] sm:$0xff pattern:$0x73625140]
    %v151 = vld.sshfl [vmem:[#allocation1 + $0x8] sm:$0xff pattern:$0x73625140]
    %v152 = vld.sshfl [vmem:[#allocation1 + $0x10] sm:$0xff pattern:$0x73625140]
    %v153 = vld.sshfl [vmem:[#allocation1 + $0x18] sm:$0xff pattern:$0x73625140]
    %v154 = vld.sshfl [vmem:[#allocation1 + $0x20] sm:$0xff pattern:$0x73625140]
    %v155 = vld.sshfl [vmem:[#allocation1 + $0x28] sm:$0xff pattern:$0x73625140]
    %v156 = vld.sshfl [vmem:[#allocation1 + $0x30] sm:$0xff pattern:$0x73625140]
    %v157 = vld.sshfl [vmem:[#allocation1 + $0x38] sm:$0xff pattern:$0x73625140]
    %158 = vst [vmem:[#allocation1] ss:$4 sm:$0xff] %v25
    %159 = vst [vmem:[%s136] ss:$4 sm:$0xff] %v32
    %160 = vst [vmem:[%s138] ss:$4 sm:$0xff] %v39
    %161 = vst [vmem:[%s140] ss:$4 sm:$0xff] %v46
    %162 = vst [vmem:[%s142] ss:$4 sm:$0xff] %v26
    %163 = vst [vmem:[%s144] ss:$4 sm:$0xff] %v33
    %164 = vst [vmem:[%s146] ss:$4 sm:$0xff] %v40
    %165 = vst [vmem:[%s148] ss:$4 sm:$0xff] %v47
    %v166 = vld.sshfl [vmem:[#allocation1] sm:$0xff pattern:$0x73625140]
    %v167 = vld.sshfl [vmem:[#allocation1 + $0x8] sm:$0xff pattern:$0x73625140]
    %v168 = vld.sshfl [vmem:[#allocation1 + $0x10] sm:$0xff pattern:$0x73625140]
    %v169 = vld.sshfl [vmem:[#allocation1 + $0x18] sm:$0xff pattern:$0x73625140]
    %v170 = vld.sshfl [vmem:[#allocation1 + $0x20] sm:$0xff pattern:$0x73625140]
    %v171 = vld.sshfl [vmem:[#allocation1 + $0x28] sm:$0xff pattern:$0x73625140]
    %v172 = vld.sshfl [vmem:[#allocation1 + $0x30] sm:$0xff pattern:$0x73625140]
    %v173 = vld.sshfl [vmem:[#allocation1 + $0x38] sm:$0xff pattern:$0x73625140]
    %174 = vst [vmem:[#allocation1] ss:$4 sm:$0xff] %v27
    %175 = vst [vmem:[%s136] ss:$4 sm:$0xff] %v34
    %176 = vst [vmem:[%s138] ss:$4 sm:$0xff] %v41
    %177 = vst [vmem:[%s140] ss:$4 sm:$0xff] %v48
    %178 = vst [vmem:[%s142] ss:$4 sm:$0xff] %v28
    %179 = vst [vmem:[%s144] ss:$4 sm:$0xff] %v35
    %180 = vst [vmem:[%s146] ss:$4 sm:$0xff] %v42
    %181 = vst [vmem:[%s148] ss:$4 sm:$0xff] %v49
    %v182 = vld.sshfl [vmem:[#allocation1] sm:$0xff pattern:$0x73625140]
    %v183 = vld.sshfl [vmem:[#allocation1 + $0x8] sm:$0xff pattern:$0x73625140]
    %v184 = vld.sshfl [vmem:[#allocation1 + $0x10] sm:$0xff pattern:$0x73625140]
    %v185 = vld.sshfl [vmem:[#allocation1 + $0x18] sm:$0xff pattern:$0x73625140]
    %v186 = vld.sshfl [vmem:[#allocation1 + $0x20] sm:$0xff pattern:$0x73625140]
    %v187 = vld.sshfl [vmem:[#allocation1 + $0x28] sm:$0xff pattern:$0x73625140]
    %v188 = vld.sshfl [vmem:[#allocation1 + $0x30] sm:$0xff pattern:$0x73625140]
    %v189 = vld.sshfl [vmem:[#allocation1 + $0x38] sm:$0xff pattern:$0x73625140]
    %190 = vst [vmem:[#allocation1] ss:$4 sm:$0xff] %v29
    %191 = vst [vmem:[%s136] ss:$4 sm:$0xff] %v36
    %192 = vst [vmem:[%s138] ss:$4 sm:$0xff] %v43
    %193 = vst [vmem:[%s140] ss:$4 sm:$0xff] %v50
    %194 = vst [vmem:[%s142] ss:$4 sm:$0xff] %v51
    %195 = vst [vmem:[%s144] ss:$4 sm:$0xff] %v58
    %196 = vst [vmem:[%s146] ss:$4 sm:$0xff] %v65
    %197 = vst [vmem:[%s148] ss:$4 sm:$0xff] %v72
    %v198 = vld.sshfl [vmem:[#allocation1] sm:$0xff pattern:$0x73625140]
    %v199 = vld.sshfl [vmem:[#allocation1 + $0x20] sm:$0xff pattern:$0x73625140]
    %v200 = vld.sshfl [vmem:[#allocation1 + $0x28] sm:$0xff pattern:$0x73625140]
    %v201 = vld.sshfl [vmem:[#allocation1 + $0x30] sm:$0xff pattern:$0x73625140]
    %v202 = vld.sshfl [vmem:[#allocation1 + $0x38] sm:$0xff pattern:$0x73625140]
    %203 = vst [vmem:[#allocation1] ss:$4 sm:$0xff] %v52
    %204 = vst [vmem:[%s136] ss:$4 sm:$0xff] %v59
    %205 = vst [vmem:[%s138] ss:$4 sm:$0xff] %v66
    %206 = vst [vmem:[%s140] ss:$4 sm:$0xff] %v73
    %207 = vst [vmem:[%s142] ss:$4 sm:$0xff] %v53
    %208 = vst [vmem:[%s144] ss:$4 sm:$0xff] %v60
    %209 = vst [vmem:[%s146] ss:$4 sm:$0xff] %v67
    %210 = vst [vmem:[%s148] ss:$4 sm:$0xff] %v74
    %v211 = vld.sshfl [vmem:[#allocation1] sm:$0xff pattern:$0x73625140]
    %v212 = vld.sshfl [vmem:[#allocation1 + $0x8] sm:$0xff pattern:$0x73625140]
    %v213 = vld.sshfl [vmem:[#allocation1 + $0x10] sm:$0xff pattern:$0x73625140]
    %v214 = vld.sshfl [vmem:[#allocation1 + $0x18] sm:$0xff pattern:$0x73625140]
    %v215 = vld.sshfl [vmem:[#allocation1 + $0x20] sm:$0xff pattern:$0x73625140]
    %v216 = vld.sshfl [vmem:[#allocation1 + $0x28] sm:$0xff pattern:$0x73625140]
    %v217 = vld.sshfl [vmem:[#allocation1 + $0x30] sm:$0xff pattern:$0x73625140]
    %v218 = vld.sshfl [vmem:[#allocation1 + $0x38] sm:$0xff pattern:$0x73625140]
    %219 = vst [vmem:[#allocation1] ss:$4 sm:$0xff] %v54
    %220 = vst [vmem:[%s136] ss:$4 sm:$0xff] %v61
    %221 = vst [vmem:[%s138] ss:$4 sm:$0xff] %v68
    %222 = vst [vmem:[%s140] ss:$4 sm:$0xff] %v75
    %223 = vst [vmem:[%s142] ss:$4 sm:$0xff] %v55
    %224 = vst [vmem:[%s144] ss:$4 sm:$0xff] %v62
    %225 = vst [vmem:[%s146] ss:$4 sm:$0xff] %v69
    %226 = vst [vmem:[%s148] ss:$4 sm:$0xff] %v76
    %v227 = vld.sshfl [vmem:[#allocation1] sm:$0xff pattern:$0x73625140]
    %v228 = vld.sshfl [vmem:[#allocation1 + $0x8] sm:$0xff pattern:$0x73625140]
    %v229 = vld.sshfl [vmem:[#allocation1 + $0x10] sm:$0xff pattern:$0x73625140]
    %v230 = vld.sshfl [vmem:[#allocation1 + $0x18] sm:$0xff pattern:$0x73625140]
    %v231 = vld.sshfl [vmem:[#allocation1 + $0x20] sm:$0xff pattern:$0x73625140]
    %v232 = vld.sshfl [vmem:[#allocation1 + $0x28] sm:$0xff pattern:$0x73625140]
    %v233 = vld.sshfl [vmem:[#allocation1 + $0x30] sm:$0xff pattern:$0x73625140]
    %v234 = vld.sshfl [vmem:[#allocation1 + $0x38] sm:$0xff pattern:$0x73625140]
    %235 = vst [vmem:[#allocation1] ss:$4 sm:$0xff] %v56
    %236 = vst [vmem:[%s136] ss:$4 sm:$0xff] %v63
    %237 = vst [vmem:[%s138] ss:$4 sm:$0xff] %v70
    %238 = vst [vmem:[%s140] ss:$4 sm:$0xff] %v77
    %239 = vst [vmem:[%s142] ss:$4 sm:$0xff] %v57
    %240 = vst [vmem:[%s144] ss:$4 sm:$0xff] %v64
    %241 = vst [vmem:[%s146] ss:$4 sm:$0xff] %v71
    %242 = vst [vmem:[%s148] ss:$4 sm:$0xff] %v78
    %v243 = vld.sshfl [vmem:[#allocation1] sm:$0xff pattern:$0x73625140]
    %v244 = vld.sshfl [vmem:[#allocation1 + $0x8] sm:$0xff pattern:$0x73625140]
    %v245 = vld.sshfl [vmem:[#allocation1 + $0x10] sm:$0xff pattern:$0x73625140]
    %v246 = vld.sshfl [vmem:[#allocation1 + $0x18] sm:$0xff pattern:$0x73625140]
    %v247 = vld.sshfl [vmem:[#allocation1 + $0x20] sm:$0xff pattern:$0x73625140]
    %v298 = vpack.c.bf16 %v199, %v150
    %v299 = vpack.c.bf16 %v200, %v151
    %v300 = vpack.c.bf16 %v201, %v152
    %v301 = vpack.c.bf16 %v202, %v153
    %v302 = vpack.c.bf16 %v211, %v154
    %v303 = vpack.c.bf16 %v212, %v155
    %v304 = vpack.c.bf16 %v213, %v156
    %v305 = vpack.c.bf16 %v214, %v157
    %v306 = vpack.c.bf16 %v215, %v166
    %v307 = vpack.c.bf16 %v216, %v167
    %v308 = vpack.c.bf16 %v217, %v168
    %v309 = vpack.c.bf16 %v218, %v169
    %v310 = vpack.c.bf16 %v227, %v170
    %v311 = vpack.c.bf16 %v228, %v171
    %v312 = vpack.c.bf16 %v229, %v172
    %v313 = vpack.c.bf16 %v230, %v173
    %v314 = vpack.c.bf16 %v231, %v182
    %v315 = vpack.c.bf16 %v232, %v183
    %v316 = vpack.c.bf16 %v233, %v184
    %v317 = vpack.c.bf16 %v234, %v185
    %v318 = vpack.c.bf16 %v243, %v186
    %v319 = vpack.c.bf16 %v244, %v187
    %v320 = vpack.c.bf16 %v245, %v188
    %v321 = vpack.c.bf16 %v246, %v189
    %v322 = vpack.c.bf16 %v247, %v198
    %v323 = vld [vmem:[%s1] sm:$0xf]
    %v324 = vld [vmem:[%s1 + $0x4] sm:$0xf]
    %v325 = vld [vmem:[%s1 + $0x8] sm:$0xf]
    %v326 = vld [vmem:[%s1 + $0xc] sm:$0xf]
    %v327 = vld [vmem:[%s1 + $0x10] sm:$0xf]
    %v328 = vld [vmem:[%s1 + $0x14] sm:$0xf]
    %v329 = vld [vmem:[%s1 + $0x18] sm:$0xf]
    %v330 = vld [vmem:[%s1 + $0x1c] sm:$0xf]
    %v331 = vld [vmem:[%s1 + $0x20] sm:$0xf]
    %v332 = vld [vmem:[%s1 + $0x24] sm:$0xf]
    %v333 = vld [vmem:[%s1 + $0x28] sm:$0xf]
    %v334 = vld [vmem:[%s1 + $0x2c] sm:$0xf]
    %v335 = vld [vmem:[%s1 + $0x30] sm:$0xf]
    %v336 = vld [vmem:[%s1 + $0x34] sm:$0xf]
    %v337 = vld [vmem:[%s1 + $0x38] sm:$0xf]
    %v338 = vld [vmem:[%s1 + $0x3c] sm:$0xf]
    %v339 = vld [vmem:[%s1 + $0x40] sm:$0xf]
    %v340 = vld [vmem:[%s1 + $0x44] sm:$0xf]
    %v341 = vld [vmem:[%s1 + $0x48] sm:$0xf]
    %v342 = vld [vmem:[%s1 + $0x4c] sm:$0xf]
    %v343 = vld [vmem:[%s1 + $0x50] sm:$0xf]
    %v344 = vld [vmem:[%s1 + $0x54] sm:$0xf]
    %v345 = vld [vmem:[%s1 + $0x58] sm:$0xf]
    %v346 = vld [vmem:[%s1 + $0x5c] sm:$0xf]
    %v347 = vld [vmem:[%s1 + $0x60] sm:$0xf]
    %v348 = vld [vmem:[%s1 + $0x64] sm:$0xf]
    %v349 = vld [vmem:[%s1 + $0x68] sm:$0xf]
    %v350 = vld [vmem:[%s1 + $0x6c] sm:$0xf]
    %v351 = vld [vmem:[%s1 + $0x70] sm:$0xf]
    %v352 = vld [vmem:[%s1 + $0x74] sm:$0xf]
    %v353 = vld [vmem:[%s1 + $0x78] sm:$0xf]
    %v354 = vld [vmem:[%s1 + $0x7c] sm:$0xf]
    %v355 = vld [vmem:[%s1 + $0x80] sm:$0xf]
    %v356 = vld [vmem:[%s1 + $0x84] sm:$0xf]
    %v357 = vld [vmem:[%s1 + $0x88] sm:$0xf]
    %v358 = vld [vmem:[%s1 + $0x8c] sm:$0xf]
    %v359 = vld [vmem:[%s1 + $0x90] sm:$0xf]
    %v360 = vld [vmem:[%s1 + $0x94] sm:$0xf]
    %v361 = vld [vmem:[%s1 + $0x98] sm:$0xf]
    %v362 = vld [vmem:[%s1 + $0x9c] sm:$0xf]
    %v363 = vld [vmem:[%s1 + $0xa0] sm:$0xf]
    %v364 = vld [vmem:[%s1 + $0xa4] sm:$0xf]
    %v365 = vld [vmem:[%s1 + $0xa8] sm:$0xf]
    %v366 = vld [vmem:[%s1 + $0xac] sm:$0xf]
    %v367 = vld [vmem:[%s1 + $0xb0] sm:$0xf]
    %v368 = vld [vmem:[%s1 + $0xb4] sm:$0xf]
    %v369 = vld [vmem:[%s1 + $0xb8] sm:$0xf]
    %v370 = vld [vmem:[%s1 + $0xbc] sm:$0xf]
    %v371 = vld [vmem:[%s1 + $0xc0] sm:$0xf]
    %v372 = vld [vmem:[%s1 + $0xc4] sm:$0xf]
    %v373 = vld [vmem:[%s1 + $0xc8] sm:$0xf]
    %v374 = vld [vmem:[%s1 + $0xcc] sm:$0xf]
    %v375 = vld [vmem:[%s1 + $0xd0] sm:$0xf]
    %v376 = vld [vmem:[%s1 + $0xd4] sm:$0xf]
    %v377 = vld [vmem:[%s1 + $0xd8] sm:$0xf]
    %v378 = vld [vmem:[%s1 + $0xdc] sm:$0xf]
    %v379 = vld [vmem:[%s1 + $0xe0] sm:$0xf]
    %v380 = vld [vmem:[%s1 + $0xe4] sm:$0xf]
    %v381 = vld [vmem:[%s1 + $0xe8] sm:$0xf]
    %v382 = vld [vmem:[%s1 + $0xec] sm:$0xf]
    %v383 = vld [vmem:[%s1 + $0xf0] sm:$0xf]
    %v384 = vld [vmem:[%s1 + $0xf4] sm:$0xf]
    %v385 = vld [vmem:[%s1 + $0xf8] sm:$0xf]
    %v386 = vld [vmem:[%s1 + $0xfc] sm:$0xf]
    %v387 = vld [vmem:[%s1 + $0x100] sm:$0xf]
    %v388 = vld [vmem:[%s1 + $0x104] sm:$0xf]
    %v389 = vld [vmem:[%s1 + $0x108] sm:$0xf]
    %v390 = vld [vmem:[%s1 + $0x10c] sm:$0xf]
    %v391 = vld [vmem:[%s1 + $0x110] sm:$0xf]
    %v392 = vld [vmem:[%s1 + $0x114] sm:$0xf]
    %v393 = vld [vmem:[%s1 + $0x118] sm:$0xf]
    %v394 = vld [vmem:[%s1 + $0x11c] sm:$0xf]
    %v395 = vld [vmem:[%s1 + $0x120] sm:$0xf]
    %v396 = vld [vmem:[%s1 + $0x124] sm:$0xf]
    %v397 = vld [vmem:[%s1 + $0x128] sm:$0xf]
    %v398 = vld [vmem:[%s1 + $0x12c] sm:$0xf]
    %v399 = vld [vmem:[%s1 + $0x130] sm:$0xf]
    %v400 = vld [vmem:[%s1 + $0x134] sm:$0xf]
    %v401 = vld [vmem:[%s1 + $0x138] sm:$0xf]
    %v402 = vld [vmem:[%s1 + $0x13c] sm:$0xf]
    %v403 = vld [vmem:[%s1 + $0x140] sm:$0xf]
    %v404 = vld [vmem:[%s1 + $0x144] sm:$0xf]
    %v405 = vld [vmem:[%s1 + $0x148] sm:$0xf]
    %v406 = vld [vmem:[%s1 + $0x14c] sm:$0xf]
    %v407 = vld [vmem:[%s1 + $0x150] sm:$0xf]
    %v408 = vld [vmem:[%s1 + $0x154] sm:$0xf]
    %v409 = vld [vmem:[%s1 + $0x158] sm:$0xf]
    %v410 = vld [vmem:[%s1 + $0x15c] sm:$0xf]
    %v411 = vld [vmem:[%s1 + $0x160] sm:$0xf]
    %v412 = vld [vmem:[%s1 + $0x164] sm:$0xf]
    %v413 = vld [vmem:[%s1 + $0x168] sm:$0xf]
    %v414 = vld [vmem:[%s1 + $0x16c] sm:$0xf]
    %v415 = vld [vmem:[%s1 + $0x170] sm:$0xf]
    %v416 = vld [vmem:[%s1 + $0x174] sm:$0xf]
    %v417 = vld [vmem:[%s1 + $0x178] sm:$0xf]
    %v418 = vld [vmem:[%s1 + $0x17c] sm:$0xf]
    %v419 = vld [vmem:[%s1 + $0x180] sm:$0xf]
    %v420 = vld [vmem:[%s1 + $0x184] sm:$0xf]
    %v421 = vld [vmem:[%s1 + $0x188] sm:$0xf]
    %v422 = vld [vmem:[%s1 + $0x18c] sm:$0xf]
    %v423 = vld [vmem:[%s1 + $0x190] sm:$0xf]
    %v424 = vld [vmem:[%s1 + $0x194] sm:$0xf]
    %v425 = vld [vmem:[%s1 + $0x198] sm:$0xf]
    %v426 = vld [vmem:[%s1 + $0x19c] sm:$0xf]
    %v427 = vld [vmem:[%s1 + $0x1a0] sm:$0xf]
    %v428 = vld [vmem:[%s1 + $0x1a4] sm:$0xf]
    %v429 = vld [vmem:[%s1 + $0x1a8] sm:$0xf]
    %v430 = vld [vmem:[%s1 + $0x1ac] sm:$0xf]
    %v431 = vld [vmem:[%s1 + $0x1b0] sm:$0xf]
    %v432 = vld [vmem:[%s1 + $0x1b4] sm:$0xf]
    %v433 = vld [vmem:[%s1 + $0x1b8] sm:$0xf]
    %v434 = vld [vmem:[%s1 + $0x1bc] sm:$0xf]
    %v435 = vld [vmem:[%s1 + $0x1c0] sm:$0xf]
    %v436 = vld [vmem:[%s1 + $0x1c4] sm:$0xf]
    %v437 = vld [vmem:[%s1 + $0x1c8] sm:$0xf]
    %v438 = vld [vmem:[%s1 + $0x1cc] sm:$0xf]
    %v439 = vld [vmem:[%s1 + $0x1d0] sm:$0xf]
    %v440 = vld [vmem:[%s1 + $0x1d4] sm:$0xf]
    %v441 = vld [vmem:[%s1 + $0x1d8] sm:$0xf]
    %v442 = vld [vmem:[%s1 + $0x1dc] sm:$0xf]
    %v443 = vld [vmem:[%s1 + $0x1e0] sm:$0xf]
    %v444 = vld [vmem:[%s1 + $0x1e4] sm:$0xf]
    %v445 = vld [vmem:[%s1 + $0x1e8] sm:$0xf]
    %v446 = vld [vmem:[%s1 + $0x1ec] sm:$0xf]
    %v447 = vld [vmem:[%s1 + $0x1f0] sm:$0xf]
    %v448 = vld [vmem:[%s1 + $0x1f4] sm:$0xf]
    %v449 = vld [vmem:[%s1 + $0x1f8] sm:$0xf]
    %v450 = vld [vmem:[%s1 + $0x1fc] sm:$0xf]
    %v451 = vld [vmem:[%s1 + $0x200] sm:$0xf]
    %v452 = vld [vmem:[%s1 + $0x204] sm:$0xf]
    %v453 = vld [vmem:[%s1 + $0x208] sm:$0xf]
    %v454 = vld [vmem:[%s1 + $0x20c] sm:$0xf]
    %v455 = vld [vmem:[%s1 + $0x210] sm:$0xf]
    %v456 = vld [vmem:[%s1 + $0x214] sm:$0xf]
    %v457 = vld [vmem:[%s1 + $0x218] sm:$0xf]
    %v458 = vld [vmem:[%s1 + $0x21c] sm:$0xf]
    %v459 = vld [vmem:[%s1 + $0x220] sm:$0xf]
    %v460 = vld [vmem:[%s1 + $0x224] sm:$0xf]
    %v461 = vld [vmem:[%s1 + $0x228] sm:$0xf]
    %v462 = vld [vmem:[%s1 + $0x22c] sm:$0xf]
    %v463 = vld [vmem:[%s1 + $0x230] sm:$0xf]
    %v464 = vld [vmem:[%s1 + $0x234] sm:$0xf]
    %v465 = vld [vmem:[%s1 + $0x238] sm:$0xf]
    %v466 = vld [vmem:[%s1 + $0x23c] sm:$0xf]
    %v467 = vld [vmem:[%s1 + $0x240] sm:$0xf]
    %v468 = vld [vmem:[%s1 + $0x244] sm:$0xf]
    %v469 = vld [vmem:[%s1 + $0x248] sm:$0xf]
    %v470 = vld [vmem:[%s1 + $0x24c] sm:$0xf]
    %v471 = vld [vmem:[%s1 + $0x250] sm:$0xf]
    %v472 = vld [vmem:[%s1 + $0x254] sm:$0xf]
    %v473 = vld [vmem:[%s1 + $0x258] sm:$0xf]
    %v474 = vld [vmem:[%s1 + $0x25c] sm:$0xf]
    %v475 = vld [vmem:[%s1 + $0x260] sm:$0xf]
    %v476 = vld [vmem:[%s1 + $0x264] sm:$0xf]
    %v477 = vld [vmem:[%s1 + $0x268] sm:$0xf]
    %v478 = vld [vmem:[%s1 + $0x26c] sm:$0xf]
    %v479 = vld [vmem:[%s1 + $0x270] sm:$0xf]
    %v480 = vld [vmem:[%s1 + $0x274] sm:$0xf]
    %v481 = vld [vmem:[%s1 + $0x278] sm:$0xf]
    %v482 = vld [vmem:[%s1 + $0x27c] sm:$0xf]
    %v483 = vld [vmem:[%s1 + $0x280] sm:$0xf]
    %v484 = vld [vmem:[%s1 + $0x284] sm:$0xf]
    %v485 = vld [vmem:[%s1 + $0x288] sm:$0xf]
    %v486 = vld [vmem:[%s1 + $0x28c] sm:$0xf]
    %v487 = vld [vmem:[%s1 + $0x290] sm:$0xf]
    %v488 = vld [vmem:[%s1 + $0x294] sm:$0xf]
    %v489 = vld [vmem:[%s1 + $0x298] sm:$0xf]
    %v490 = vld [vmem:[%s1 + $0x29c] sm:$0xf]
    %v491 = vld [vmem:[%s1 + $0x2a0] sm:$0xf]
    %v492 = vld [vmem:[%s1 + $0x2a4] sm:$0xf]
    %v493 = vld [vmem:[%s1 + $0x2a8] sm:$0xf]
    %v494 = vld [vmem:[%s1 + $0x2ac] sm:$0xf]
    %v495 = vld [vmem:[%s1 + $0x2b0] sm:$0xf]
    %v496 = vld [vmem:[%s1 + $0x2b4] sm:$0xf]
    %v497 = vld [vmem:[%s1 + $0x2b8] sm:$0xf]
    %v498 = vld [vmem:[%s1 + $0x2bc] sm:$0xf]
    %v499 = vld [vmem:[%s1 + $0x2c0] sm:$0xf]
    %v500 = vld [vmem:[%s1 + $0x2c4] sm:$0xf]
    %v501 = vld [vmem:[%s1 + $0x2c8] sm:$0xf]
    %v502 = vld [vmem:[%s1 + $0x2cc] sm:$0xf]
    %v503 = vld [vmem:[%s1 + $0x2d0] sm:$0xf]
    %v504 = vld [vmem:[%s1 + $0x2d4] sm:$0xf]
    %v505 = vld [vmem:[%s1 + $0x2d8] sm:$0xf]
    %v506 = vld [vmem:[%s1 + $0x2dc] sm:$0xf]
    %v507 = vld [vmem:[%s1 + $0x2e0] sm:$0xf]
    %v508 = vld [vmem:[%s1 + $0x2e4] sm:$0xf]
    %v509 = vld [vmem:[%s1 + $0x2e8] sm:$0xf]
    %v510 = vld [vmem:[%s1 + $0x2ec] sm:$0xf]
    %v511 = vld [vmem:[%s1 + $0x2f0] sm:$0xf]
    %v512 = vld [vmem:[%s1 + $0x2f4] sm:$0xf]
    %v513 = vld [vmem:[%s1 + $0x2f8] sm:$0xf]
    %v514 = vld [vmem:[%s1 + $0x2fc] sm:$0xf]
    %v515 = vld [vmem:[%s1 + $0x300] sm:$0xf]
    %v516 = vld [vmem:[%s1 + $0x304] sm:$0xf]
    %v517 = vld [vmem:[%s1 + $0x308] sm:$0xf]
    %v518 = vld [vmem:[%s1 + $0x30c] sm:$0xf]
    %v519 = vld [vmem:[%s1 + $0x310] sm:$0xf]
    %v520 = vld [vmem:[%s1 + $0x314] sm:$0xf]
    %v521 = vld [vmem:[%s1 + $0x318] sm:$0xf]
    %v522 = vld [vmem:[%s1 + $0x31c] sm:$0xf]
    %v523 = vld [vmem:[%s1 + $0x320] sm:$0xf]
    %v524 = vld [vmem:[%s1 + $0x324] sm:$0xf]
    %v525 = vld [vmem:[%s1 + $0x328] sm:$0xf]
    %v526 = vld [vmem:[%s1 + $0x32c] sm:$0xf]
    %v527 = vld [vmem:[%s1 + $0x330] sm:$0xf]
    %v528 = vld [vmem:[%s1 + $0x334] sm:$0xf]
    %v529 = vld [vmem:[%s1 + $0x338] sm:$0xf]
    %v530 = vld [vmem:[%s1 + $0x33c] sm:$0xf]
    %v531 = vld [vmem:[%s1 + $0x340] sm:$0xf]
    %v532 = vld [vmem:[%s1 + $0x344] sm:$0xf]
    %v533 = vld [vmem:[%s1 + $0x348] sm:$0xf]
    %v534 = vld [vmem:[%s1 + $0x34c] sm:$0xf]
    %v535 = vld [vmem:[%s1 + $0x350] sm:$0xf]
    %v536 = vld [vmem:[%s1 + $0x354] sm:$0xf]
    %v537 = vld [vmem:[%s1 + $0x358] sm:$0xf]
    %v538 = vld [vmem:[%s1 + $0x35c] sm:$0xf]
    %v539 = vld [vmem:[%s1 + $0x360] sm:$0xf]
    %v540 = vld [vmem:[%s1 + $0x364] sm:$0xf]
    %v541 = vld [vmem:[%s1 + $0x368] sm:$0xf]
    %v542 = vld [vmem:[%s1 + $0x36c] sm:$0xf]
    %v543 = vld [vmem:[%s1 + $0x370] sm:$0xf]
    %v544 = vld [vmem:[%s1 + $0x374] sm:$0xf]
    %v545 = vld [vmem:[%s1 + $0x378] sm:$0xf]
    %v546 = vld [vmem:[%s1 + $0x37c] sm:$0xf]
    %v547 = vld [vmem:[%s1 + $0x380] sm:$0xf]
    %v548 = vld [vmem:[%s1 + $0x384] sm:$0xf]
    %v549 = vld [vmem:[%s1 + $0x388] sm:$0xf]
    %v550 = vld [vmem:[%s1 + $0x38c] sm:$0xf]
    %v551 = vld [vmem:[%s1 + $0x390] sm:$0xf]
    %v552 = vld [vmem:[%s1 + $0x394] sm:$0xf]
    %v553 = vld [vmem:[%s1 + $0x398] sm:$0xf]
    %v554 = vld [vmem:[%s1 + $0x39c] sm:$0xf]
    %v555 = vld [vmem:[%s1 + $0x3a0] sm:$0xf]
    %v556 = vld [vmem:[%s1 + $0x3a4] sm:$0xf]
    %v557 = vld [vmem:[%s1 + $0x3a8] sm:$0xf]
    %v558 = vld [vmem:[%s1 + $0x3ac] sm:$0xf]
    %v559 = vld [vmem:[%s1 + $0x3b0] sm:$0xf]
    %v560 = vld [vmem:[%s1 + $0x3b4] sm:$0xf]
    %v561 = vld [vmem:[%s1 + $0x3b8] sm:$0xf]
    %v562 = vld [vmem:[%s1 + $0x3bc] sm:$0xf]
    %v563 = vld [vmem:[%s1 + $0x3c0] sm:$0xf]
    %v564 = vld [vmem:[%s1 + $0x3c4] sm:$0xf]
    %v565 = vld [vmem:[%s1 + $0x3c8] sm:$0xf]
    %v566 = vld [vmem:[%s1 + $0x3cc] sm:$0xf]
    %v567 = vld [vmem:[%s1 + $0x3d0] sm:$0xf]
    %v568 = vld [vmem:[%s1 + $0x3d4] sm:$0xf]
    %v569 = vld [vmem:[%s1 + $0x3d8] sm:$0xf]
    %v570 = vld [vmem:[%s1 + $0x3dc] sm:$0xf]
    %v571 = vld [vmem:[%s1 + $0x3e0] sm:$0xf]
    %v572 = vld [vmem:[%s1 + $0x3e4] sm:$0xf]
    %v573 = vld [vmem:[%s1 + $0x3e8] sm:$0xf]
    %v574 = vld [vmem:[%s1 + $0x3ec] sm:$0xf]
    %v575 = vld [vmem:[%s1 + $0x3f0] sm:$0xf]
    %v576 = vld [vmem:[%s1 + $0x3f4] sm:$0xf]
    %v577 = vld [vmem:[%s1 + $0x3f8] sm:$0xf]
    %v578 = vld [vmem:[%s1 + $0x3fc] sm:$0xf]
    %v579 = vld [vmem:[%s1 + $0x400] sm:$0xf]
    %v580 = vld [vmem:[%s1 + $0x404] sm:$0xf]
    %v581 = vld [vmem:[%s1 + $0x408] sm:$0xf]
    %v582 = vld [vmem:[%s1 + $0x40c] sm:$0xf]
    %v583 = vld [vmem:[%s1 + $0x410] sm:$0xf]
    %v584 = vld [vmem:[%s1 + $0x414] sm:$0xf]
    %v585 = vld [vmem:[%s1 + $0x418] sm:$0xf]
    %v586 = vld [vmem:[%s1 + $0x41c] sm:$0xf]
    %v587 = vld [vmem:[%s1 + $0x420] sm:$0xf]
    %v588 = vld [vmem:[%s1 + $0x424] sm:$0xf]
    %v589 = vld [vmem:[%s1 + $0x428] sm:$0xf]
    %v590 = vld [vmem:[%s1 + $0x42c] sm:$0xf]
    %v591 = vld [vmem:[%s1 + $0x430] sm:$0xf]
    %v592 = vld [vmem:[%s1 + $0x434] sm:$0xf]
    %v593 = vld [vmem:[%s1 + $0x438] sm:$0xf]
    %v594 = vld [vmem:[%s1 + $0x43c] sm:$0xf]
    %v595 = vld [vmem:[%s1 + $0x440] sm:$0xf]
    %v596 = vld [vmem:[%s1 + $0x444] sm:$0xf]
    %v597 = vld [vmem:[%s1 + $0x448] sm:$0xf]
    %v598 = vld [vmem:[%s1 + $0x44c] sm:$0xf]
    %v599 = vld [vmem:[%s1 + $0x450] sm:$0xf]
    %v600 = vld [vmem:[%s1 + $0x454] sm:$0xf]
    %v601 = vld [vmem:[%s1 + $0x458] sm:$0xf]
    %v602 = vld [vmem:[%s1 + $0x45c] sm:$0xf]
    %v603 = vld [vmem:[%s1 + $0x460] sm:$0xf]
    %v604 = vld [vmem:[%s1 + $0x464] sm:$0xf]
    %v605 = vld [vmem:[%s1 + $0x468] sm:$0xf]
    %v606 = vld [vmem:[%s1 + $0x46c] sm:$0xf]
    %v607 = vld [vmem:[%s1 + $0x470] sm:$0xf]
    %v608 = vld [vmem:[%s1 + $0x474] sm:$0xf]
    %v609 = vld [vmem:[%s1 + $0x478] sm:$0xf]
    %v610 = vld [vmem:[%s1 + $0x47c] sm:$0xf]
    %v611 = vld [vmem:[%s1 + $0x480] sm:$0xf]
    %v612 = vld [vmem:[%s1 + $0x484] sm:$0xf]
    %v613 = vld [vmem:[%s1 + $0x488] sm:$0xf]
    %v614 = vld [vmem:[%s1 + $0x48c] sm:$0xf]
    %v615 = vld [vmem:[%s1 + $0x490] sm:$0xf]
    %v616 = vld [vmem:[%s1 + $0x494] sm:$0xf]
    %v617 = vld [vmem:[%s1 + $0x498] sm:$0xf]
    %v618 = vld [vmem:[%s1 + $0x49c] sm:$0xf]
    %v619 = vld [vmem:[%s1 + $0x4a0] sm:$0xf]
    %v620 = vld [vmem:[%s1 + $0x4a4] sm:$0xf]
    %v621 = vld [vmem:[%s1 + $0x4a8] sm:$0xf]
    %v622 = vld [vmem:[%s1 + $0x4ac] sm:$0xf]
    %v623 = vld [vmem:[%s1 + $0x4b0] sm:$0xf]
    %v624 = vld [vmem:[%s1 + $0x4b4] sm:$0xf]
    %v625 = vld [vmem:[%s1 + $0x4b8] sm:$0xf]
    %v626 = vld [vmem:[%s1 + $0x4bc] sm:$0xf]
    %v627 = vld [vmem:[%s1 + $0x4c0] sm:$0xf]
    %v628 = vld [vmem:[%s1 + $0x4c4] sm:$0xf]
    %v629 = vld [vmem:[%s1 + $0x4c8] sm:$0xf]
    %v630 = vld [vmem:[%s1 + $0x4cc] sm:$0xf]
    %v631 = vld [vmem:[%s1 + $0x4d0] sm:$0xf]
    %v632 = vld [vmem:[%s1 + $0x4d4] sm:$0xf]
    %v633 = vld [vmem:[%s1 + $0x4d8] sm:$0xf]
    %v634 = vld [vmem:[%s1 + $0x4dc] sm:$0xf]
    %v635 = vld [vmem:[%s1 + $0x4e0] sm:$0xf]
    %v636 = vld [vmem:[%s1 + $0x4e4] sm:$0xf]
    %v637 = vld [vmem:[%s1 + $0x4e8] sm:$0xf]
    %v638 = vld [vmem:[%s1 + $0x4ec] sm:$0xf]
    %v639 = vld [vmem:[%s1 + $0x4f0] sm:$0xf]
    %v640 = vld [vmem:[%s1 + $0x4f4] sm:$0xf]
    %v641 = vld [vmem:[%s1 + $0x4f8] sm:$0xf]
    %v642 = vld [vmem:[%s1 + $0x4fc] sm:$0xf]
    %v643 = vld [vmem:[%s1 + $0x500] sm:$0xf]
    %v644 = vld [vmem:[%s1 + $0x504] sm:$0xf]
    %v645 = vld [vmem:[%s1 + $0x508] sm:$0xf]
    %v646 = vld [vmem:[%s1 + $0x50c] sm:$0xf]
    %v647 = vld [vmem:[%s1 + $0x510] sm:$0xf]
    %v648 = vld [vmem:[%s1 + $0x514] sm:$0xf]
    %v649 = vld [vmem:[%s1 + $0x518] sm:$0xf]
    %v650 = vld [vmem:[%s1 + $0x51c] sm:$0xf]
    %v651 = vld [vmem:[%s1 + $0x520] sm:$0xf]
    %v652 = vld [vmem:[%s1 + $0x524] sm:$0xf]
    %v653 = vld [vmem:[%s1 + $0x528] sm:$0xf]
    %v654 = vld [vmem:[%s1 + $0x52c] sm:$0xf]
    %v655 = vld [vmem:[%s1 + $0x530] sm:$0xf]
    %v656 = vld [vmem:[%s1 + $0x534] sm:$0xf]
    %v657 = vld [vmem:[%s1 + $0x538] sm:$0xf]
    %v658 = vld [vmem:[%s1 + $0x53c] sm:$0xf]
    %v659 = vld [vmem:[%s1 + $0x540] sm:$0xf]
    %v660 = vld [vmem:[%s1 + $0x544] sm:$0xf]
    %v661 = vld [vmem:[%s1 + $0x548] sm:$0xf]
    %v662 = vld [vmem:[%s1 + $0x54c] sm:$0xf]
    %v663 = vld [vmem:[%s1 + $0x550] sm:$0xf]
    %v664 = vld [vmem:[%s1 + $0x554] sm:$0xf]
    %v665 = vld [vmem:[%s1 + $0x558] sm:$0xf]
    %v666 = vld [vmem:[%s1 + $0x55c] sm:$0xf]
    %v667 = vld [vmem:[%s1 + $0x560] sm:$0xf]
    %v668 = vld [vmem:[%s1 + $0x564] sm:$0xf]
    %v669 = vld [vmem:[%s1 + $0x568] sm:$0xf]
    %v670 = vld [vmem:[%s1 + $0x56c] sm:$0xf]
    %v671 = vld [vmem:[%s1 + $0x570] sm:$0xf]
    %v672 = vld [vmem:[%s1 + $0x574] sm:$0xf]
    %v673 = vld [vmem:[%s1 + $0x578] sm:$0xf]
    %v674 = vld [vmem:[%s1 + $0x57c] sm:$0xf]
    %v675 = vld [vmem:[%s1 + $0x580] sm:$0xf]
    %v676 = vld [vmem:[%s1 + $0x584] sm:$0xf]
    %v677 = vld [vmem:[%s1 + $0x588] sm:$0xf]
    %v678 = vld [vmem:[%s1 + $0x58c] sm:$0xf]
    %v679 = vld [vmem:[%s1 + $0x590] sm:$0xf]
    %v680 = vld [vmem:[%s1 + $0x594] sm:$0xf]
    %v681 = vld [vmem:[%s1 + $0x598] sm:$0xf]
    %v682 = vld [vmem:[%s1 + $0x59c] sm:$0xf]
    %v683 = vld [vmem:[%s1 + $0x5a0] sm:$0xf]
    %v684 = vld [vmem:[%s1 + $0x5a4] sm:$0xf]
    %v685 = vld [vmem:[%s1 + $0x5a8] sm:$0xf]
    %v686 = vld [vmem:[%s1 + $0x5ac] sm:$0xf]
    %v687 = vld [vmem:[%s1 + $0x5b0] sm:$0xf]
    %v688 = vld [vmem:[%s1 + $0x5b4] sm:$0xf]
    %v689 = vld [vmem:[%s1 + $0x5b8] sm:$0xf]
    %v690 = vld [vmem:[%s1 + $0x5bc] sm:$0xf]
    %v691 = vld [vmem:[%s1 + $0x5c0] sm:$0xf]
    %v692 = vld [vmem:[%s1 + $0x5c4] sm:$0xf]
    %v693 = vld [vmem:[%s1 + $0x5c8] sm:$0xf]
    %v694 = vld [vmem:[%s1 + $0x5cc] sm:$0xf]
    %v695 = vld [vmem:[%s1 + $0x5d0] sm:$0xf]
    %v696 = vld [vmem:[%s1 + $0x5d4] sm:$0xf]
    %v697 = vld [vmem:[%s1 + $0x5d8] sm:$0xf]
    %v698 = vld [vmem:[%s1 + $0x5dc] sm:$0xf]
    %v699 = vld [vmem:[%s1 + $0x5e0] sm:$0xf]
    %v700 = vld [vmem:[%s1 + $0x5e4] sm:$0xf]
    %v701 = vld [vmem:[%s1 + $0x5e8] sm:$0xf]
    %v702 = vld [vmem:[%s1 + $0x5ec] sm:$0xf]
    %v703 = vld [vmem:[%s1 + $0x5f0] sm:$0xf]
    %v704 = vld [vmem:[%s1 + $0x5f4] sm:$0xf]
    %v705 = vld [vmem:[%s1 + $0x5f8] sm:$0xf]
    %v706 = vld [vmem:[%s1 + $0x5fc] sm:$0xf]
    %v707 = vld [vmem:[%s1 + $0x600] sm:$0xf]
    %v708 = vld [vmem:[%s1 + $0x604] sm:$0xf]
    %v709 = vld [vmem:[%s1 + $0x608] sm:$0xf]
    %v710 = vld [vmem:[%s1 + $0x60c] sm:$0xf]
    %v711 = vld [vmem:[%s1 + $0x610] sm:$0xf]
    %v712 = vld [vmem:[%s1 + $0x614] sm:$0xf]
    %v713 = vld [vmem:[%s1 + $0x618] sm:$0xf]
    %v714 = vld [vmem:[%s1 + $0x61c] sm:$0xf]
    %v715 = vld [vmem:[%s2] sm:$0x1]
    %v717 = vperm.slane %v715, 0
    %v1111 = vunpack.c.l.b16 %v323
    %v1112 = vunpack.c.l.b16 %v324
    %v1113 = vunpack.c.l.b16 %v325
    %v1114 = vunpack.c.l.b16 %v326
    %v1115 = vunpack.c.l.b16 %v327
    %v1116 = vunpack.c.l.b16 %v328
    %v1117 = vunpack.c.l.b16 %v329
    %v1118 = vunpack.c.l.b16 %v330
    %v1119 = vunpack.c.l.b16 %v331
    %v1120 = vunpack.c.l.b16 %v332
    %v1121 = vunpack.c.l.b16 %v333
    %v1122 = vunpack.c.l.b16 %v334
    %v1123 = vunpack.c.l.b16 %v335
    %v1124 = vunpack.c.l.b16 %v336
    %v1125 = vunpack.c.l.b16 %v337
    %v1126 = vunpack.c.l.b16 %v338
    %v1127 = vunpack.c.l.b16 %v339
    %v1128 = vunpack.c.l.b16 %v340
    %v1129 = vunpack.c.l.b16 %v341
    %v1130 = vunpack.c.l.b16 %v342
    %v1131 = vunpack.c.l.b16 %v343
    %v1132 = vunpack.c.l.b16 %v344
    %v1133 = vunpack.c.l.b16 %v345
    %v1134 = vunpack.c.l.b16 %v346
    %v1135 = vunpack.c.l.b16 %v347
    %v1136 = vunpack.c.l.b16 %v348
    %v1137 = vunpack.c.l.b16 %v349
    %v1138 = vunpack.c.l.b16 %v350
    %v1139 = vunpack.c.l.b16 %v351
    %v1140 = vunpack.c.l.b16 %v352
    %v1141 = vunpack.c.l.b16 %v353
    %v1142 = vunpack.c.l.b16 %v354
    %v1143 = vunpack.c.l.b16 %v355
    %v1144 = vunpack.c.l.b16 %v356
    %v1145 = vunpack.c.l.b16 %v357
    %v1146 = vunpack.c.l.b16 %v358
    %v1147 = vunpack.c.l.b16 %v359
    %v1148 = vunpack.c.l.b16 %v360
    %v1149 = vunpack.c.l.b16 %v361
    %v1150 = vunpack.c.l.b16 %v362
    %v1151 = vunpack.c.l.b16 %v363
    %v1152 = vunpack.c.l.b16 %v364
    %v1153 = vunpack.c.l.b16 %v365
    %v1154 = vunpack.c.l.b16 %v366
    %v1155 = vunpack.c.l.b16 %v367
    %v1156 = vunpack.c.l.b16 %v368
    %v1157 = vunpack.c.l.b16 %v369
    %v1158 = vunpack.c.l.b16 %v370
    %v1159 = vunpack.c.l.b16 %v371
    %v1160 = vunpack.c.l.b16 %v372
    %v1161 = vunpack.c.l.b16 %v373
    %v1162 = vunpack.c.l.b16 %v374
    %v1163 = vunpack.c.l.b16 %v375
    %v1164 = vunpack.c.l.b16 %v376
    %v1165 = vunpack.c.l.b16 %v377
    %v1166 = vunpack.c.l.b16 %v378
    %v1167 = vunpack.c.l.b16 %v379
    %v1168 = vunpack.c.l.b16 %v380
    %v1169 = vunpack.c.l.b16 %v381
    %v1170 = vunpack.c.l.b16 %v382
    %v1171 = vunpack.c.l.b16 %v383
    %v1172 = vunpack.c.l.b16 %v384
    %v1173 = vunpack.c.l.b16 %v385
    %v1174 = vunpack.c.l.b16 %v386
    %v1175 = vunpack.c.l.b16 %v387
    %v1176 = vunpack.c.l.b16 %v388
    %v1177 = vunpack.c.l.b16 %v389
    %v1178 = vunpack.c.l.b16 %v390
    %v1179 = vunpack.c.l.b16 %v391
    %v1180 = vunpack.c.l.b16 %v392
    %v1181 = vunpack.c.l.b16 %v393
    %v1182 = vunpack.c.l.b16 %v394
    %v1183 = vunpack.c.l.b16 %v395
    %v1184 = vunpack.c.l.b16 %v396
    %v1185 = vunpack.c.l.b16 %v397
    %v1186 = vunpack.c.l.b16 %v398
    %v1187 = vunpack.c.l.b16 %v399
    %v1188 = vunpack.c.l.b16 %v400
    %v1189 = vunpack.c.l.b16 %v401
    %v1190 = vunpack.c.l.b16 %v402
    %v1191 = vunpack.c.l.b16 %v403
    %v1192 = vunpack.c.l.b16 %v404
    %v1193 = vunpack.c.l.b16 %v405
    %v1194 = vunpack.c.l.b16 %v406
    %v1195 = vunpack.c.l.b16 %v407
    %v1196 = vunpack.c.l.b16 %v408
    %v1197 = vunpack.c.l.b16 %v409
    %v1198 = vunpack.c.l.b16 %v410
    %v1199 = vunpack.c.l.b16 %v411
    %v1200 = vunpack.c.l.b16 %v412
    %v1201 = vunpack.c.l.b16 %v413
    %v1202 = vunpack.c.l.b16 %v414
    %v1203 = vunpack.c.l.b16 %v415
    %v1204 = vunpack.c.l.b16 %v416
    %v1205 = vunpack.c.l.b16 %v417
    %v1206 = vunpack.c.l.b16 %v418
    %v1207 = vunpack.c.l.b16 %v419
    %v1208 = vunpack.c.l.b16 %v420
    %v1209 = vunpack.c.l.b16 %v421
    %v1210 = vunpack.c.l.b16 %v422
    %v1211 = vunpack.c.l.b16 %v423
    %v1212 = vunpack.c.l.b16 %v424
    %v1213 = vunpack.c.l.b16 %v425
    %v1214 = vunpack.c.l.b16 %v426
    %v1215 = vunpack.c.l.b16 %v427
    %v1216 = vunpack.c.l.b16 %v428
    %v1217 = vunpack.c.l.b16 %v429
    %v1218 = vunpack.c.l.b16 %v430
    %v1219 = vunpack.c.l.b16 %v431
    %v1220 = vunpack.c.l.b16 %v432
    %v1221 = vunpack.c.l.b16 %v433
    %v1222 = vunpack.c.l.b16 %v434
    %v1223 = vunpack.c.l.b16 %v435
    %v1224 = vunpack.c.l.b16 %v436
    %v1225 = vunpack.c.l.b16 %v437
    %v1226 = vunpack.c.l.b16 %v438
    %v1227 = vunpack.c.l.b16 %v439
    %v1228 = vunpack.c.l.b16 %v440
    %v1229 = vunpack.c.l.b16 %v441
    %v1230 = vunpack.c.l.b16 %v442
    %v1231 = vunpack.c.l.b16 %v443
    %v1232 = vunpack.c.l.b16 %v444
    %v1233 = vunpack.c.l.b16 %v445
    %v1234 = vunpack.c.l.b16 %v446
    %v1235 = vunpack.c.l.b16 %v447
    %v1236 = vunpack.c.l.b16 %v448
    %v1237 = vunpack.c.l.b16 %v449
    %v1238 = vunpack.c.l.b16 %v450
    %v1239 = vunpack.c.l.b16 %v451
    %v1240 = vunpack.c.l.b16 %v452
    %v1241 = vunpack.c.l.b16 %v453
    %v1242 = vunpack.c.l.b16 %v454
    %v1243 = vunpack.c.l.b16 %v455
    %v1244 = vunpack.c.l.b16 %v456
    %v1245 = vunpack.c.l.b16 %v457
    %v1246 = vunpack.c.l.b16 %v458
    %v1247 = vunpack.c.l.b16 %v459
    %v1248 = vunpack.c.l.b16 %v460
    %v1249 = vunpack.c.l.b16 %v461
    %v1250 = vunpack.c.l.b16 %v462
    %v1251 = vunpack.c.l.b16 %v463
    %v1252 = vunpack.c.l.b16 %v464
    %v1253 = vunpack.c.l.b16 %v465
    %v1254 = vunpack.c.l.b16 %v466
    %v1255 = vunpack.c.l.b16 %v467
    %v1256 = vunpack.c.l.b16 %v468
    %v1257 = vunpack.c.l.b16 %v469
    %v1258 = vunpack.c.l.b16 %v470
    %v1259 = vunpack.c.l.b16 %v471
    %v1260 = vunpack.c.l.b16 %v472
    %v1261 = vunpack.c.l.b16 %v473
    %v1262 = vunpack.c.l.b16 %v474
    %v1263 = vunpack.c.l.b16 %v475
    %v1264 = vunpack.c.l.b16 %v476
    %v1265 = vunpack.c.l.b16 %v477
    %v1266 = vunpack.c.l.b16 %v478
    %v1267 = vunpack.c.l.b16 %v479
    %v1268 = vunpack.c.l.b16 %v480
    %v1269 = vunpack.c.l.b16 %v481
    %v1270 = vunpack.c.l.b16 %v482
    %v1271 = vunpack.c.l.b16 %v483
    %v1272 = vunpack.c.l.b16 %v484
    %v1273 = vunpack.c.l.b16 %v485
    %v1274 = vunpack.c.l.b16 %v486
    %v1275 = vunpack.c.l.b16 %v487
    %v1276 = vunpack.c.l.b16 %v488
    %v1277 = vunpack.c.l.b16 %v489
    %v1278 = vunpack.c.l.b16 %v490
    %v1279 = vunpack.c.l.b16 %v491
    %v1280 = vunpack.c.l.b16 %v492
    %v1281 = vunpack.c.l.b16 %v493
    %v1282 = vunpack.c.l.b16 %v494
    %v1283 = vunpack.c.l.b16 %v495
    %v1284 = vunpack.c.l.b16 %v496
    %v1285 = vunpack.c.l.b16 %v497
    %v1286 = vunpack.c.l.b16 %v498
    %v1287 = vunpack.c.l.b16 %v499
    %v1288 = vunpack.c.l.b16 %v500
    %v1289 = vunpack.c.l.b16 %v501
    %v1290 = vunpack.c.l.b16 %v502
    %v1291 = vunpack.c.l.b16 %v503
    %v1292 = vunpack.c.l.b16 %v504
    %v1293 = vunpack.c.l.b16 %v505
    %v1294 = vunpack.c.l.b16 %v506
    %v1295 = vunpack.c.l.b16 %v507
    %v1296 = vunpack.c.l.b16 %v508
    %v1297 = vunpack.c.l.b16 %v509
    %v1298 = vunpack.c.l.b16 %v510
    %v1299 = vunpack.c.l.b16 %v511
    %v1300 = vunpack.c.l.b16 %v512
    %v1301 = vunpack.c.l.b16 %v513
    %v1302 = vunpack.c.l.b16 %v514
    %v1303 = vunpack.c.l.b16 %v515
    %v1304 = vunpack.c.l.b16 %v516
    %v1305 = vunpack.c.l.b16 %v517
    %v1306 = vunpack.c.l.b16 %v518
    %v1307 = vunpack.c.l.b16 %v519
    %v1308 = vunpack.c.l.b16 %v520
    %v1309 = vunpack.c.l.b16 %v521
    %v1310 = vunpack.c.l.b16 %v522
    %v1311 = vunpack.c.l.b16 %v523
    %v1312 = vunpack.c.l.b16 %v524
    %v1313 = vunpack.c.l.b16 %v525
    %v1314 = vunpack.c.l.b16 %v526
    %v1315 = vunpack.c.l.b16 %v527
    %v1316 = vunpack.c.l.b16 %v528
    %v1317 = vunpack.c.l.b16 %v529
    %v1318 = vunpack.c.l.b16 %v530
    %v1319 = vunpack.c.l.b16 %v531
    %v1320 = vunpack.c.l.b16 %v532
    %v1321 = vunpack.c.l.b16 %v533
    %v1322 = vunpack.c.l.b16 %v534
    %v1323 = vunpack.c.l.b16 %v535
    %v1324 = vunpack.c.l.b16 %v536
    %v1325 = vunpack.c.l.b16 %v537
    %v1326 = vunpack.c.l.b16 %v538
    %v1327 = vunpack.c.l.b16 %v539
    %v1328 = vunpack.c.l.b16 %v540
    %v1329 = vunpack.c.l.b16 %v541
    %v1330 = vunpack.c.l.b16 %v542
    %v1331 = vunpack.c.l.b16 %v543
    %v1332 = vunpack.c.l.b16 %v544
    %v1333 = vunpack.c.l.b16 %v545
    %v1334 = vunpack.c.l.b16 %v546
    %v1335 = vunpack.c.l.b16 %v547
    %v1336 = vunpack.c.l.b16 %v548
    %v1337 = vunpack.c.l.b16 %v549
    %v1338 = vunpack.c.l.b16 %v550
    %v1339 = vunpack.c.l.b16 %v551
    %v1340 = vunpack.c.l.b16 %v552
    %v1341 = vunpack.c.l.b16 %v553
    %v1342 = vunpack.c.l.b16 %v554
    %v1343 = vunpack.c.l.b16 %v555
    %v1344 = vunpack.c.l.b16 %v556
    %v1345 = vunpack.c.l.b16 %v557
    %v1346 = vunpack.c.l.b16 %v558
    %v1347 = vunpack.c.l.b16 %v559
    %v1348 = vunpack.c.l.b16 %v560
    %v1349 = vunpack.c.l.b16 %v561
    %v1350 = vunpack.c.l.b16 %v562
    %v1351 = vunpack.c.l.b16 %v563
    %v1352 = vunpack.c.l.b16 %v564
    %v1353 = vunpack.c.l.b16 %v565
    %v1354 = vunpack.c.l.b16 %v566
    %v1355 = vunpack.c.l.b16 %v567
    %v1356 = vunpack.c.l.b16 %v568
    %v1357 = vunpack.c.l.b16 %v569
    %v1358 = vunpack.c.l.b16 %v570
    %v1359 = vunpack.c.l.b16 %v571
    %v1360 = vunpack.c.l.b16 %v572
    %v1361 = vunpack.c.l.b16 %v573
    %v1362 = vunpack.c.l.b16 %v574
    %v1363 = vunpack.c.l.b16 %v575
    %v1364 = vunpack.c.l.b16 %v576
    %v1365 = vunpack.c.l.b16 %v577
    %v1366 = vunpack.c.l.b16 %v578
    %v1367 = vunpack.c.l.b16 %v579
    %v1368 = vunpack.c.l.b16 %v580
    %v1369 = vunpack.c.l.b16 %v581
    %v1370 = vunpack.c.l.b16 %v582
    %v1371 = vunpack.c.l.b16 %v583
    %v1372 = vunpack.c.l.b16 %v584
    %v1373 = vunpack.c.l.b16 %v585
    %v1374 = vunpack.c.l.b16 %v586
    %v1375 = vunpack.c.l.b16 %v587
    %v1376 = vunpack.c.l.b16 %v588
    %v1377 = vunpack.c.l.b16 %v589
    %v1378 = vunpack.c.l.b16 %v590
    %v1379 = vunpack.c.l.b16 %v591
    %v1380 = vunpack.c.l.b16 %v592
    %v1381 = vunpack.c.l.b16 %v593
    %v1382 = vunpack.c.l.b16 %v594
    %v1383 = vunpack.c.l.b16 %v595
    %v1384 = vunpack.c.l.b16 %v596
    %v1385 = vunpack.c.l.b16 %v597
    %v1386 = vunpack.c.l.b16 %v598
    %v1387 = vunpack.c.l.b16 %v599
    %v1388 = vunpack.c.l.b16 %v600
    %v1389 = vunpack.c.l.b16 %v601
    %v1390 = vunpack.c.l.b16 %v602
    %v1391 = vunpack.c.l.b16 %v603
    %v1392 = vunpack.c.l.b16 %v604
    %v1393 = vunpack.c.l.b16 %v605
    %v1394 = vunpack.c.l.b16 %v606
    %v1395 = vunpack.c.l.b16 %v607
    %v1396 = vunpack.c.l.b16 %v608
    %v1397 = vunpack.c.l.b16 %v609
    %v1398 = vunpack.c.l.b16 %v610
    %v1399 = vunpack.c.l.b16 %v611
    %v1400 = vunpack.c.l.b16 %v612
    %v1401 = vunpack.c.l.b16 %v613
    %v1402 = vunpack.c.l.b16 %v614
    %v1403 = vunpack.c.l.b16 %v615
    %v1404 = vunpack.c.l.b16 %v616
    %v1405 = vunpack.c.l.b16 %v617
    %v1406 = vunpack.c.l.b16 %v618
    %v1407 = vunpack.c.l.b16 %v619
    %v1408 = vunpack.c.l.b16 %v620
    %v1409 = vunpack.c.l.b16 %v621
    %v1410 = vunpack.c.l.b16 %v622
    %v1411 = vunpack.c.l.b16 %v623
    %v1412 = vunpack.c.l.b16 %v624
    %v1413 = vunpack.c.l.b16 %v625
    %v1414 = vunpack.c.l.b16 %v626
    %v1415 = vunpack.c.l.b16 %v627
    %v1416 = vunpack.c.l.b16 %v628
    %v1417 = vunpack.c.l.b16 %v629
    %v1418 = vunpack.c.l.b16 %v630
    %v1419 = vunpack.c.l.b16 %v631
    %v1420 = vunpack.c.l.b16 %v632
    %v1421 = vunpack.c.l.b16 %v633
    %v1422 = vunpack.c.l.b16 %v634
    %v1423 = vunpack.c.l.b16 %v635
    %v1424 = vunpack.c.l.b16 %v636
    %v1425 = vunpack.c.l.b16 %v637
    %v1426 = vunpack.c.l.b16 %v638
    %v1427 = vunpack.c.l.b16 %v639
    %v1428 = vunpack.c.l.b16 %v640
    %v1429 = vunpack.c.l.b16 %v641
    %v1430 = vunpack.c.l.b16 %v642
    %v1431 = vunpack.c.l.b16 %v643
    %v1432 = vunpack.c.l.b16 %v644
    %v1433 = vunpack.c.l.b16 %v645
    %v1434 = vunpack.c.l.b16 %v646
    %v1435 = vunpack.c.l.b16 %v647
    %v1436 = vunpack.c.l.b16 %v648
    %v1437 = vunpack.c.l.b16 %v649
    %v1438 = vunpack.c.l.b16 %v650
    %v1439 = vunpack.c.l.b16 %v651
    %v1440 = vunpack.c.l.b16 %v652
    %v1441 = vunpack.c.l.b16 %v653
    %v1442 = vunpack.c.l.b16 %v654
    %v1443 = vunpack.c.l.b16 %v655
    %v1444 = vunpack.c.l.b16 %v656
    %v1445 = vunpack.c.l.b16 %v657
    %v1446 = vunpack.c.l.b16 %v658
    %v1447 = vunpack.c.l.b16 %v659
    %v1448 = vunpack.c.l.b16 %v660
    %v1449 = vunpack.c.l.b16 %v661
    %v1450 = vunpack.c.l.b16 %v662
    %v1451 = vunpack.c.l.b16 %v663
    %v1452 = vunpack.c.l.b16 %v664
    %v1453 = vunpack.c.l.b16 %v665
    %v1454 = vunpack.c.l.b16 %v666
    %v1455 = vunpack.c.l.b16 %v667
    %v1456 = vunpack.c.l.b16 %v668
    %v1457 = vunpack.c.l.b16 %v669
    %v1458 = vunpack.c.l.b16 %v670
    %v1459 = vunpack.c.l.b16 %v671
    %v1460 = vunpack.c.l.b16 %v672
    %v1461 = vunpack.c.l.b16 %v673
    %v1462 = vunpack.c.l.b16 %v674
    %v1463 = vunpack.c.l.b16 %v675
    %v1464 = vunpack.c.l.b16 %v676
    %v1465 = vunpack.c.l.b16 %v677
    %v1466 = vunpack.c.l.b16 %v678
    %v1467 = vunpack.c.l.b16 %v679
    %v1468 = vunpack.c.l.b16 %v680
    %v1469 = vunpack.c.l.b16 %v681
    %v1470 = vunpack.c.l.b16 %v682
    %v1471 = vunpack.c.l.b16 %v683
    %v1472 = vunpack.c.l.b16 %v684
    %v1473 = vunpack.c.l.b16 %v685
    %v1474 = vunpack.c.l.b16 %v686
    %v1475 = vunpack.c.l.b16 %v687
    %v1476 = vunpack.c.l.b16 %v688
    %v1477 = vunpack.c.l.b16 %v689
    %v1478 = vunpack.c.l.b16 %v690
    %v1479 = vunpack.c.l.b16 %v691
    %v1480 = vunpack.c.l.b16 %v692
    %v1481 = vunpack.c.l.b16 %v693
    %v1482 = vunpack.c.l.b16 %v694
    %v1483 = vunpack.c.l.b16 %v695
    %v1484 = vunpack.c.l.b16 %v696
    %v1485 = vunpack.c.l.b16 %v697
    %v1486 = vunpack.c.l.b16 %v698
    %v1487 = vunpack.c.l.b16 %v699
    %v1488 = vunpack.c.l.b16 %v700
    %v1489 = vunpack.c.l.b16 %v701
    %v1490 = vunpack.c.l.b16 %v702
    %v1491 = vunpack.c.l.b16 %v703
    %v1492 = vunpack.c.l.b16 %v704
    %v1493 = vunpack.c.l.b16 %v705
    %v1494 = vunpack.c.l.b16 %v706
    %v1495 = vunpack.c.l.b16 %v707
    %v1496 = vunpack.c.l.b16 %v708
    %v1497 = vunpack.c.l.b16 %v709
    %v1498 = vunpack.c.l.b16 %v710
    %v1499 = vunpack.c.l.b16 %v711
    %v1500 = vunpack.c.l.b16 %v712
    %v1501 = vunpack.c.l.b16 %v713
    %v1502 = vunpack.c.l.b16 %v714
    %v1503 = vpack.c.b16 %v1112, %v1111
    %v1504 = vpack.c.b16 %v1114, %v1113
    %v1505 = vpack.c.b16 %v1116, %v1115
    %v1506 = vpack.c.b16 %v1118, %v1117
    %v1507 = vpack.c.b16 %v1120, %v1119
    %v1508 = vpack.c.b16 %v1122, %v1121
    %v1509 = vpack.c.b16 %v1124, %v1123
    %v1510 = vpack.c.b16 %v1126, %v1125
    %v1511 = vpack.c.b16 %v1128, %v1127
    %v1512 = vpack.c.b16 %v1130, %v1129
    %v1513 = vpack.c.b16 %v1132, %v1131
    %v1514 = vpack.c.b16 %v1134, %v1133
    %v1515 = vpack.c.b16 %v1136, %v1135
    %v1516 = vpack.c.b16 %v1138, %v1137
    %v1517 = vpack.c.b16 %v1140, %v1139
    %v1518 = vpack.c.b16 %v1142, %v1141
    %v1519 = vpack.c.b16 %v1144, %v1143
    %v1520 = vpack.c.b16 %v1146, %v1145
    %v1521 = vpack.c.b16 %v1148, %v1147
    %v1522 = vpack.c.b16 %v1150, %v1149
    %v1523 = vpack.c.b16 %v1152, %v1151
    %v1524 = vpack.c.b16 %v1154, %v1153
    %v1525 = vpack.c.b16 %v1156, %v1155
    %v1526 = vpack.c.b16 %v1158, %v1157
    %v1527 = vpack.c.b16 %v1160, %v1159
    %v1528 = vpack.c.b16 %v1162, %v1161
    %v1529 = vpack.c.b16 %v1164, %v1163
    %v1530 = vpack.c.b16 %v1166, %v1165
    %v1531 = vpack.c.b16 %v1168, %v1167
    %v1532 = vpack.c.b16 %v1170, %v1169
    %v1533 = vpack.c.b16 %v1172, %v1171
    %v1534 = vpack.c.b16 %v1174, %v1173
    %v1535 = vpack.c.b16 %v1176, %v1175
    %v1536 = vpack.c.b16 %v1178, %v1177
    %v1537 = vpack.c.b16 %v1180, %v1179
    %v1538 = vpack.c.b16 %v1182, %v1181
    %v1539 = vpack.c.b16 %v1184, %v1183
    %v1540 = vpack.c.b16 %v1186, %v1185
    %v1541 = vpack.c.b16 %v1188, %v1187
    %v1542 = vpack.c.b16 %v1190, %v1189
    %v1543 = vpack.c.b16 %v1192, %v1191
    %v1544 = vpack.c.b16 %v1194, %v1193
    %v1545 = vpack.c.b16 %v1196, %v1195
    %v1546 = vpack.c.b16 %v1198, %v1197
    %v1547 = vpack.c.b16 %v1200, %v1199
    %v1548 = vpack.c.b16 %v1202, %v1201
    %v1549 = vpack.c.b16 %v1204, %v1203
    %v1550 = vpack.c.b16 %v1206, %v1205
    %v1551 = vpack.c.b16 %v1208, %v1207
    %v1552 = vpack.c.b16 %v1210, %v1209
    %v1553 = vpack.c.b16 %v1212, %v1211
    %v1554 = vpack.c.b16 %v1214, %v1213
    %v1555 = vpack.c.b16 %v1216, %v1215
    %v1556 = vpack.c.b16 %v1218, %v1217
    %v1557 = vpack.c.b16 %v1220, %v1219
    %v1558 = vpack.c.b16 %v1222, %v1221
    %v1559 = vpack.c.b16 %v1224, %v1223
    %v1560 = vpack.c.b16 %v1226, %v1225
    %v1561 = vpack.c.b16 %v1228, %v1227
    %v1562 = vpack.c.b16 %v1230, %v1229
    %v1563 = vpack.c.b16 %v1232, %v1231
    %v1564 = vpack.c.b16 %v1234, %v1233
    %v1565 = vpack.c.b16 %v1236, %v1235
    %v1566 = vpack.c.b16 %v1238, %v1237
    %v1567 = vpack.c.b16 %v1240, %v1239
    %v1568 = vpack.c.b16 %v1242, %v1241
    %v1569 = vpack.c.b16 %v1244, %v1243
    %v1570 = vpack.c.b16 %v1246, %v1245
    %v1571 = vpack.c.b16 %v1248, %v1247
    %v1572 = vpack.c.b16 %v1250, %v1249
    %v1573 = vpack.c.b16 %v1252, %v1251
    %v1574 = vpack.c.b16 %v1254, %v1253
    %v1575 = vpack.c.b16 %v1256, %v1255
    %v1576 = vpack.c.b16 %v1258, %v1257
    %v1577 = vpack.c.b16 %v1260, %v1259
    %v1578 = vpack.c.b16 %v1262, %v1261
    %v1579 = vpack.c.b16 %v1264, %v1263
    %v1580 = vpack.c.b16 %v1266, %v1265
    %v1581 = vpack.c.b16 %v1268, %v1267
    %v1582 = vpack.c.b16 %v1270, %v1269
    %v1583 = vpack.c.b16 %v1272, %v1271
    %v1584 = vpack.c.b16 %v1274, %v1273
    %v1585 = vpack.c.b16 %v1276, %v1275
    %v1586 = vpack.c.b16 %v1278, %v1277
    %v1587 = vpack.c.b16 %v1280, %v1279
    %v1588 = vpack.c.b16 %v1282, %v1281
    %v1589 = vpack.c.b16 %v1284, %v1283
    %v1590 = vpack.c.b16 %v1286, %v1285
    %v1591 = vpack.c.b16 %v1288, %v1287
    %v1592 = vpack.c.b16 %v1290, %v1289
    %v1593 = vpack.c.b16 %v1292, %v1291
    %v1594 = vpack.c.b16 %v1294, %v1293
    %v1595 = vpack.c.b16 %v1296, %v1295
    %v1596 = vpack.c.b16 %v1298, %v1297
    %v1597 = vpack.c.b16 %v1300, %v1299
    %v1598 = vpack.c.b16 %v1302, %v1301
    %v1599 = vpack.c.b16 %v1304, %v1303
    %v1600 = vpack.c.b16 %v1306, %v1305
    %v1601 = vpack.c.b16 %v1308, %v1307
    %v1602 = vpack.c.b16 %v1310, %v1309
    %v1603 = vpack.c.b16 %v1312, %v1311
    %v1604 = vpack.c.b16 %v1314, %v1313
    %v1605 = vpack.c.b16 %v1316, %v1315
    %v1606 = vpack.c.b16 %v1318, %v1317
    %v1607 = vpack.c.b16 %v1320, %v1319
    %v1608 = vpack.c.b16 %v1322, %v1321
    %v1609 = vpack.c.b16 %v1324, %v1323
    %v1610 = vpack.c.b16 %v1326, %v1325
    %v1611 = vpack.c.b16 %v1328, %v1327
    %v1612 = vpack.c.b16 %v1330, %v1329
    %v1613 = vpack.c.b16 %v1332, %v1331
    %v1614 = vpack.c.b16 %v1334, %v1333
    %v1615 = vpack.c.b16 %v1336, %v1335
    %v1616 = vpack.c.b16 %v1338, %v1337
    %v1617 = vpack.c.b16 %v1340, %v1339
    %v1618 = vpack.c.b16 %v1342, %v1341
    %v1619 = vpack.c.b16 %v1344, %v1343
    %v1620 = vpack.c.b16 %v1346, %v1345
    %v1621 = vpack.c.b16 %v1348, %v1347
    %v1622 = vpack.c.b16 %v1350, %v1349
    %v1623 = vpack.c.b16 %v1352, %v1351
    %v1624 = vpack.c.b16 %v1354, %v1353
    %v1625 = vpack.c.b16 %v1356, %v1355
    %v1626 = vpack.c.b16 %v1358, %v1357
    %v1627 = vpack.c.b16 %v1360, %v1359
    %v1628 = vpack.c.b16 %v1362, %v1361
    %v1629 = vpack.c.b16 %v1364, %v1363
    %v1630 = vpack.c.b16 %v1366, %v1365
    %v1631 = vpack.c.b16 %v1368, %v1367
    %v1632 = vpack.c.b16 %v1370, %v1369
    %v1633 = vpack.c.b16 %v1372, %v1371
    %v1634 = vpack.c.b16 %v1374, %v1373
    %v1635 = vpack.c.b16 %v1376, %v1375
    %v1636 = vpack.c.b16 %v1378, %v1377
    %v1637 = vpack.c.b16 %v1380, %v1379
    %v1638 = vpack.c.b16 %v1382, %v1381
    %v1639 = vpack.c.b16 %v1384, %v1383
    %v1640 = vpack.c.b16 %v1386, %v1385
    %v1641 = vpack.c.b16 %v1388, %v1387
    %v1642 = vpack.c.b16 %v1390, %v1389
    %v1643 = vpack.c.b16 %v1392, %v1391
    %v1644 = vpack.c.b16 %v1394, %v1393
    %v1645 = vpack.c.b16 %v1396, %v1395
    %v1646 = vpack.c.b16 %v1398, %v1397
    %v1647 = vpack.c.b16 %v1400, %v1399
    %v1648 = vpack.c.b16 %v1402, %v1401
    %v1649 = vpack.c.b16 %v1404, %v1403
    %v1650 = vpack.c.b16 %v1406, %v1405
    %v1651 = vpack.c.b16 %v1408, %v1407
    %v1652 = vpack.c.b16 %v1410, %v1409
    %v1653 = vpack.c.b16 %v1412, %v1411
    %v1654 = vpack.c.b16 %v1414, %v1413
    %v1655 = vpack.c.b16 %v1416, %v1415
    %v1656 = vpack.c.b16 %v1418, %v1417
    %v1657 = vpack.c.b16 %v1420, %v1419
    %v1658 = vpack.c.b16 %v1422, %v1421
    %v1659 = vpack.c.b16 %v1424, %v1423
    %v1660 = vpack.c.b16 %v1426, %v1425
    %v1661 = vpack.c.b16 %v1428, %v1427
    %v1662 = vpack.c.b16 %v1430, %v1429
    %v1663 = vpack.c.b16 %v1432, %v1431
    %v1664 = vpack.c.b16 %v1434, %v1433
    %v1665 = vpack.c.b16 %v1436, %v1435
    %v1666 = vpack.c.b16 %v1438, %v1437
    %v1667 = vpack.c.b16 %v1440, %v1439
    %v1668 = vpack.c.b16 %v1442, %v1441
    %v1669 = vpack.c.b16 %v1444, %v1443
    %v1670 = vpack.c.b16 %v1446, %v1445
    %v1671 = vpack.c.b16 %v1448, %v1447
    %v1672 = vpack.c.b16 %v1450, %v1449
    %v1673 = vpack.c.b16 %v1452, %v1451
    %v1674 = vpack.c.b16 %v1454, %v1453
    %v1675 = vpack.c.b16 %v1456, %v1455
    %v1676 = vpack.c.b16 %v1458, %v1457
    %v1677 = vpack.c.b16 %v1460, %v1459
    %v1678 = vpack.c.b16 %v1462, %v1461
    %v1679 = vpack.c.b16 %v1464, %v1463
    %v1680 = vpack.c.b16 %v1466, %v1465
    %v1681 = vpack.c.b16 %v1468, %v1467
    %v1682 = vpack.c.b16 %v1470, %v1469
    %v1683 = vpack.c.b16 %v1472, %v1471
    %v1684 = vpack.c.b16 %v1474, %v1473
    %v1685 = vpack.c.b16 %v1476, %v1475
    %v1686 = vpack.c.b16 %v1478, %v1477
    %v1687 = vpack.c.b16 %v1480, %v1479
    %v1688 = vpack.c.b16 %v1482, %v1481
    %v1689 = vpack.c.b16 %v1484, %v1483
    %v1690 = vpack.c.b16 %v1486, %v1485
    %v1691 = vpack.c.b16 %v1488, %v1487
    %v1692 = vpack.c.b16 %v1490, %v1489
    %v1693 = vpack.c.b16 %v1492, %v1491
    %v1694 = vpack.c.b16 %v1494, %v1493
    %v1695 = vpack.c.b16 %v1496, %v1495
    %v1696 = vpack.c.b16 %v1498, %v1497
    %v1697 = vpack.c.b16 %v1500, %v1499
    %v1698 = vpack.c.b16 %v1502, %v1501
    %vm1895 = vcmask 523264
    %v1897 = vsel %vm1895, %v322, 0
    %1899 = vmatpush.bf16.msra.mxu0 %v1510
    %1900 = vmatpush.bf16.msra.mxu0 %v1509
    %1901 = vmatpush.bf16.msra.mxu0 %v1508
    %1902 = vmatpush.bf16.msra.mxu0 %v1507
    %1903 = vmatpush.bf16.msra.mxu0 %v1506
    %1904 = vmatpush.bf16.msra.mxu0 %v1505
    %1905 = vmatpush.bf16.msra.mxu0 %v1504
    %1906 = vmatpush.bf16.msra.mxu0 %v1503
    %1907 = vmatmul.bf16.gmra.mxu0 %v298
    %v1908 = vpop.f32.mrf.mxu0
    %v1909 = vadd.f32 %v717, %v1908
    %v1910 = vpop.f32.mrf.mxu0
    %v1911 = vadd.f32 %v717, %v1910
    %1912 = vdwg.mxu0
    %1913 = vmatpush.bf16.msra.mxu0 %v1518
    %1914 = vmatpush.bf16.msra.mxu0 %v1517
    %1915 = vmatpush.bf16.msra.mxu0 %v1516
    %1916 = vmatpush.bf16.msra.mxu0 %v1515
    %1917 = vmatpush.bf16.msra.mxu0 %v1514
    %1918 = vmatpush.bf16.msra.mxu0 %v1513
    %1919 = vmatpush.bf16.msra.mxu0 %v1512
    %1920 = vmatpush.bf16.msra.mxu0 %v1511
    %1921 = vmatmul.bf16.gmra.mxu0 %v299
    %v1922 = vpop.f32.mrf.mxu0
    %v1923 = vadd.f32 %v1909, %v1922
    %v1924 = vpop.f32.mrf.mxu0
    %v1925 = vadd.f32 %v1911, %v1924
    %1926 = vdwg.mxu0
    %1927 = vmatpush.bf16.msra.mxu0 %v1526
    %1928 = vmatpush.bf16.msra.mxu0 %v1525
    %1929 = vmatpush.bf16.msra.mxu0 %v1524
    %1930 = vmatpush.bf16.msra.mxu0 %v1523
    %1931 = vmatpush.bf16.msra.mxu0 %v1522
    %1932 = vmatpush.bf16.msra.mxu0 %v1521
    %1933 = vmatpush.bf16.msra.mxu0 %v1520
    %1934 = vmatpush.bf16.msra.mxu0 %v1519
    %1935 = vmatmul.bf16.gmra.mxu0 %v300
    %v1936 = vpop.f32.mrf.mxu0
    %v1937 = vadd.f32 %v1923, %v1936
    %v1938 = vpop.f32.mrf.mxu0
    %v1939 = vadd.f32 %v1925, %v1938
    %1940 = vdwg.mxu0
    %1941 = vmatpush.bf16.msra.mxu0 %v1534
    %1942 = vmatpush.bf16.msra.mxu0 %v1533
    %1943 = vmatpush.bf16.msra.mxu0 %v1532
    %1944 = vmatpush.bf16.msra.mxu0 %v1531
    %1945 = vmatpush.bf16.msra.mxu0 %v1530
    %1946 = vmatpush.bf16.msra.mxu0 %v1529
    %1947 = vmatpush.bf16.msra.mxu0 %v1528
    %1948 = vmatpush.bf16.msra.mxu0 %v1527
    %1949 = vmatmul.bf16.gmra.mxu0 %v301
    %v1950 = vpop.f32.mrf.mxu0
    %v1951 = vadd.f32 %v1937, %v1950
    %v1952 = vpop.f32.mrf.mxu0
    %v1953 = vadd.f32 %v1939, %v1952
    %1954 = vdwg.mxu0
    %1955 = vmatpush.bf16.msra.mxu0 %v1542
    %1956 = vmatpush.bf16.msra.mxu0 %v1541
    %1957 = vmatpush.bf16.msra.mxu0 %v1540
    %1958 = vmatpush.bf16.msra.mxu0 %v1539
    %1959 = vmatpush.bf16.msra.mxu0 %v1538
    %1960 = vmatpush.bf16.msra.mxu0 %v1537
    %1961 = vmatpush.bf16.msra.mxu0 %v1536
    %1962 = vmatpush.bf16.msra.mxu0 %v1535
    %1963 = vmatmul.bf16.gmra.mxu0 %v302
    %v1964 = vpop.f32.mrf.mxu0
    %v1965 = vadd.f32 %v1951, %v1964
    %v1966 = vpop.f32.mrf.mxu0
    %v1967 = vadd.f32 %v1953, %v1966
    %1968 = vdwg.mxu0
    %1969 = vmatpush.bf16.msra.mxu0 %v1550
    %1970 = vmatpush.bf16.msra.mxu0 %v1549
    %1971 = vmatpush.bf16.msra.mxu0 %v1548
    %1972 = vmatpush.bf16.msra.mxu0 %v1547
    %1973 = vmatpush.bf16.msra.mxu0 %v1546
    %1974 = vmatpush.bf16.msra.mxu0 %v1545
    %1975 = vmatpush.bf16.msra.mxu0 %v1544
    %1976 = vmatpush.bf16.msra.mxu0 %v1543
    %1977 = vmatmul.bf16.gmra.mxu0 %v303
    %v1978 = vpop.f32.mrf.mxu0
    %v1979 = vadd.f32 %v1965, %v1978
    %v1980 = vpop.f32.mrf.mxu0
    %v1981 = vadd.f32 %v1967, %v1980
    %1982 = vdwg.mxu0
    %1983 = vmatpush.bf16.msra.mxu0 %v1558
    %1984 = vmatpush.bf16.msra.mxu0 %v1557
    %1985 = vmatpush.bf16.msra.mxu0 %v1556
    %1986 = vmatpush.bf16.msra.mxu0 %v1555
    %1987 = vmatpush.bf16.msra.mxu0 %v1554
    %1988 = vmatpush.bf16.msra.mxu0 %v1553
    %1989 = vmatpush.bf16.msra.mxu0 %v1552
    %1990 = vmatpush.bf16.msra.mxu0 %v1551
    %1991 = vmatmul.bf16.gmra.mxu0 %v304
    %v1992 = vpop.f32.mrf.mxu0
    %v1993 = vadd.f32 %v1979, %v1992
    %v1994 = vpop.f32.mrf.mxu0
    %v1995 = vadd.f32 %v1981, %v1994
    %1996 = vdwg.mxu0
    %1997 = vmatpush.bf16.msra.mxu0 %v1566
    %1998 = vmatpush.bf16.msra.mxu0 %v1565
    %1999 = vmatpush.bf16.msra.mxu0 %v1564
    %2000 = vmatpush.bf16.msra.mxu0 %v1563
    %2001 = vmatpush.bf16.msra.mxu0 %v1562
    %2002 = vmatpush.bf16.msra.mxu0 %v1561
    %2003 = vmatpush.bf16.msra.mxu0 %v1560
    %2004 = vmatpush.bf16.msra.mxu0 %v1559
    %2005 = vmatmul.bf16.gmra.mxu0 %v305
    %v2006 = vpop.f32.mrf.mxu0
    %v2007 = vadd.f32 %v1993, %v2006
    %v2008 = vpop.f32.mrf.mxu0
    %v2009 = vadd.f32 %v1995, %v2008
    %2010 = vdwg.mxu0
    %2011 = vmatpush.bf16.msra.mxu0 %v1574
    %2012 = vmatpush.bf16.msra.mxu0 %v1573
    %2013 = vmatpush.bf16.msra.mxu0 %v1572
    %2014 = vmatpush.bf16.msra.mxu0 %v1571
    %2015 = vmatpush.bf16.msra.mxu0 %v1570
    %2016 = vmatpush.bf16.msra.mxu0 %v1569
    %2017 = vmatpush.bf16.msra.mxu0 %v1568
    %2018 = vmatpush.bf16.msra.mxu0 %v1567
    %2019 = vmatmul.bf16.gmra.mxu0 %v306
    %v2020 = vpop.f32.mrf.mxu0
    %v2021 = vadd.f32 %v2007, %v2020
    %v2022 = vpop.f32.mrf.mxu0
    %v2023 = vadd.f32 %v2009, %v2022
    %2024 = vdwg.mxu0
    %2025 = vmatpush.bf16.msra.mxu0 %v1582
    %2026 = vmatpush.bf16.msra.mxu0 %v1581
    %2027 = vmatpush.bf16.msra.mxu0 %v1580
    %2028 = vmatpush.bf16.msra.mxu0 %v1579
    %2029 = vmatpush.bf16.msra.mxu0 %v1578
    %2030 = vmatpush.bf16.msra.mxu0 %v1577
    %2031 = vmatpush.bf16.msra.mxu0 %v1576
    %2032 = vmatpush.bf16.msra.mxu0 %v1575
    %2033 = vmatmul.bf16.gmra.mxu0 %v307
    %v2034 = vpop.f32.mrf.mxu0
    %v2035 = vadd.f32 %v2021, %v2034
    %v2036 = vpop.f32.mrf.mxu0
    %v2037 = vadd.f32 %v2023, %v2036
    %2038 = vdwg.mxu0
    %2039 = vmatpush.bf16.msra.mxu0 %v1590
    %2040 = vmatpush.bf16.msra.mxu0 %v1589
    %2041 = vmatpush.bf16.msra.mxu0 %v1588
    %2042 = vmatpush.bf16.msra.mxu0 %v1587
    %2043 = vmatpush.bf16.msra.mxu0 %v1586
    %2044 = vmatpush.bf16.msra.mxu0 %v1585
    %2045 = vmatpush.bf16.msra.mxu0 %v1584
    %2046 = vmatpush.bf16.msra.mxu0 %v1583
    %2047 = vmatmul.bf16.gmra.mxu0 %v308
    %v2048 = vpop.f32.mrf.mxu0
    %v2049 = vadd.f32 %v2035, %v2048
    %v2050 = vpop.f32.mrf.mxu0
    %v2051 = vadd.f32 %v2037, %v2050
    %2052 = vdwg.mxu0
    %2053 = vmatpush.bf16.msra.mxu0 %v1598
    %2054 = vmatpush.bf16.msra.mxu0 %v1597
    %2055 = vmatpush.bf16.msra.mxu0 %v1596
    %2056 = vmatpush.bf16.msra.mxu0 %v1595
    %2057 = vmatpush.bf16.msra.mxu0 %v1594
    %2058 = vmatpush.bf16.msra.mxu0 %v1593
    %2059 = vmatpush.bf16.msra.mxu0 %v1592
    %2060 = vmatpush.bf16.msra.mxu0 %v1591
    %2061 = vmatmul.bf16.gmra.mxu0 %v309
    %v2062 = vpop.f32.mrf.mxu0
    %v2063 = vadd.f32 %v2049, %v2062
    %v2064 = vpop.f32.mrf.mxu0
    %v2065 = vadd.f32 %v2051, %v2064
    %2066 = vdwg.mxu0
    %2067 = vmatpush.bf16.msra.mxu0 %v1606
    %2068 = vmatpush.bf16.msra.mxu0 %v1605
    %2069 = vmatpush.bf16.msra.mxu0 %v1604
    %2070 = vmatpush.bf16.msra.mxu0 %v1603
    %2071 = vmatpush.bf16.msra.mxu0 %v1602
    %2072 = vmatpush.bf16.msra.mxu0 %v1601
    %2073 = vmatpush.bf16.msra.mxu0 %v1600
    %2074 = vmatpush.bf16.msra.mxu0 %v1599
    %2075 = vmatmul.bf16.gmra.mxu0 %v310
    %v2076 = vpop.f32.mrf.mxu0
    %v2077 = vadd.f32 %v2063, %v2076
    %v2078 = vpop.f32.mrf.mxu0
    %v2079 = vadd.f32 %v2065, %v2078
    %2080 = vdwg.mxu0
    %2081 = vmatpush.bf16.msra.mxu0 %v1614
    %2082 = vmatpush.bf16.msra.mxu0 %v1613
    %2083 = vmatpush.bf16.msra.mxu0 %v1612
    %2084 = vmatpush.bf16.msra.mxu0 %v1611
    %2085 = vmatpush.bf16.msra.mxu0 %v1610
    %2086 = vmatpush.bf16.msra.mxu0 %v1609
    %2087 = vmatpush.bf16.msra.mxu0 %v1608
    %2088 = vmatpush.bf16.msra.mxu0 %v1607
    %2089 = vmatmul.bf16.gmra.mxu0 %v311
    %v2090 = vpop.f32.mrf.mxu0
    %v2091 = vadd.f32 %v2077, %v2090
    %v2092 = vpop.f32.mrf.mxu0
    %v2093 = vadd.f32 %v2079, %v2092
    %2094 = vdwg.mxu0
    %2095 = vmatpush.bf16.msra.mxu0 %v1622
    %2096 = vmatpush.bf16.msra.mxu0 %v1621
    %2097 = vmatpush.bf16.msra.mxu0 %v1620
    %2098 = vmatpush.bf16.msra.mxu0 %v1619
    %2099 = vmatpush.bf16.msra.mxu0 %v1618
    %2100 = vmatpush.bf16.msra.mxu0 %v1617
    %2101 = vmatpush.bf16.msra.mxu0 %v1616
    %2102 = vmatpush.bf16.msra.mxu0 %v1615
    %2103 = vmatmul.bf16.gmra.mxu0 %v312
    %v2104 = vpop.f32.mrf.mxu0
    %v2105 = vadd.f32 %v2091, %v2104
    %v2106 = vpop.f32.mrf.mxu0
    %v2107 = vadd.f32 %v2093, %v2106
    %2108 = vdwg.mxu0
    %2109 = vmatpush.bf16.msra.mxu0 %v1630
    %2110 = vmatpush.bf16.msra.mxu0 %v1629
    %2111 = vmatpush.bf16.msra.mxu0 %v1628
    %2112 = vmatpush.bf16.msra.mxu0 %v1627
    %2113 = vmatpush.bf16.msra.mxu0 %v1626
    %2114 = vmatpush.bf16.msra.mxu0 %v1625
    %2115 = vmatpush.bf16.msra.mxu0 %v1624
    %2116 = vmatpush.bf16.msra.mxu0 %v1623
    %2117 = vmatmul.bf16.gmra.mxu0 %v313
    %v2118 = vpop.f32.mrf.mxu0
    %v2119 = vadd.f32 %v2105, %v2118
    %v2120 = vpop.f32.mrf.mxu0
    %v2121 = vadd.f32 %v2107, %v2120
    %2122 = vdwg.mxu0
    %2123 = vmatpush.bf16.msra.mxu0 %v1638
    %2124 = vmatpush.bf16.msra.mxu0 %v1637
    %2125 = vmatpush.bf16.msra.mxu0 %v1636
    %2126 = vmatpush.bf16.msra.mxu0 %v1635
    %2127 = vmatpush.bf16.msra.mxu0 %v1634
    %2128 = vmatpush.bf16.msra.mxu0 %v1633
    %2129 = vmatpush.bf16.msra.mxu0 %v1632
    %2130 = vmatpush.bf16.msra.mxu0 %v1631
    %2131 = vmatmul.bf16.gmra.mxu0 %v314
    %v2132 = vpop.f32.mrf.mxu0
    %v2133 = vadd.f32 %v2119, %v2132
    %v2134 = vpop.f32.mrf.mxu0
    %v2135 = vadd.f32 %v2121, %v2134
    %2136 = vdwg.mxu0
    %2137 = vmatpush.bf16.msra.mxu0 %v1646
    %2138 = vmatpush.bf16.msra.mxu0 %v1645
    %2139 = vmatpush.bf16.msra.mxu0 %v1644
    %2140 = vmatpush.bf16.msra.mxu0 %v1643
    %2141 = vmatpush.bf16.msra.mxu0 %v1642
    %2142 = vmatpush.bf16.msra.mxu0 %v1641
    %2143 = vmatpush.bf16.msra.mxu0 %v1640
    %2144 = vmatpush.bf16.msra.mxu0 %v1639
    %2145 = vmatmul.bf16.gmra.mxu0 %v315
    %v2146 = vpop.f32.mrf.mxu0
    %v2147 = vadd.f32 %v2133, %v2146
    %v2148 = vpop.f32.mrf.mxu0
    %v2149 = vadd.f32 %v2135, %v2148
    %2150 = vdwg.mxu0
    %2151 = vmatpush.bf16.msra.mxu0 %v1654
    %2152 = vmatpush.bf16.msra.mxu0 %v1653
    %2153 = vmatpush.bf16.msra.mxu0 %v1652
    %2154 = vmatpush.bf16.msra.mxu0 %v1651
    %2155 = vmatpush.bf16.msra.mxu0 %v1650
    %2156 = vmatpush.bf16.msra.mxu0 %v1649
    %2157 = vmatpush.bf16.msra.mxu0 %v1648
    %2158 = vmatpush.bf16.msra.mxu0 %v1647
    %2159 = vmatmul.bf16.gmra.mxu0 %v316
    %v2160 = vpop.f32.mrf.mxu0
    %v2161 = vadd.f32 %v2147, %v2160
    %v2162 = vpop.f32.mrf.mxu0
    %v2163 = vadd.f32 %v2149, %v2162
    %2164 = vdwg.mxu0
    %2165 = vmatpush.bf16.msra.mxu0 %v1662
    %2166 = vmatpush.bf16.msra.mxu0 %v1661
    %2167 = vmatpush.bf16.msra.mxu0 %v1660
    %2168 = vmatpush.bf16.msra.mxu0 %v1659
    %2169 = vmatpush.bf16.msra.mxu0 %v1658
    %2170 = vmatpush.bf16.msra.mxu0 %v1657
    %2171 = vmatpush.bf16.msra.mxu0 %v1656
    %2172 = vmatpush.bf16.msra.mxu0 %v1655
    %2173 = vmatmul.bf16.gmra.mxu0 %v317
    %v2174 = vpop.f32.mrf.mxu0
    %v2175 = vadd.f32 %v2161, %v2174
    %v2176 = vpop.f32.mrf.mxu0
    %v2177 = vadd.f32 %v2163, %v2176
    %2178 = vdwg.mxu0
    %2179 = vmatpush.bf16.msra.mxu0 %v1670
    %2180 = vmatpush.bf16.msra.mxu0 %v1669
    %2181 = vmatpush.bf16.msra.mxu0 %v1668
    %2182 = vmatpush.bf16.msra.mxu0 %v1667
    %2183 = vmatpush.bf16.msra.mxu0 %v1666
    %2184 = vmatpush.bf16.msra.mxu0 %v1665
    %2185 = vmatpush.bf16.msra.mxu0 %v1664
    %2186 = vmatpush.bf16.msra.mxu0 %v1663
    %2187 = vmatmul.bf16.gmra.mxu0 %v318
    %v2188 = vpop.f32.mrf.mxu0
    %v2189 = vadd.f32 %v2175, %v2188
    %v2190 = vpop.f32.mrf.mxu0
    %v2191 = vadd.f32 %v2177, %v2190
    %2192 = vdwg.mxu0
    %2193 = vmatpush.bf16.msra.mxu0 %v1678
    %2194 = vmatpush.bf16.msra.mxu0 %v1677
    %2195 = vmatpush.bf16.msra.mxu0 %v1676
    %2196 = vmatpush.bf16.msra.mxu0 %v1675
    %2197 = vmatpush.bf16.msra.mxu0 %v1674
    %2198 = vmatpush.bf16.msra.mxu0 %v1673
    %2199 = vmatpush.bf16.msra.mxu0 %v1672
    %2200 = vmatpush.bf16.msra.mxu0 %v1671
    %2201 = vmatmul.bf16.gmra.mxu0 %v319
    %v2202 = vpop.f32.mrf.mxu0
    %v2203 = vadd.f32 %v2189, %v2202
    %v2204 = vpop.f32.mrf.mxu0
    %v2205 = vadd.f32 %v2191, %v2204
    %2206 = vdwg.mxu0
    %2207 = vmatpush.bf16.msra.mxu0 %v1686
    %2208 = vmatpush.bf16.msra.mxu0 %v1685
    %2209 = vmatpush.bf16.msra.mxu0 %v1684
    %2210 = vmatpush.bf16.msra.mxu0 %v1683
    %2211 = vmatpush.bf16.msra.mxu0 %v1682
    %2212 = vmatpush.bf16.msra.mxu0 %v1681
    %2213 = vmatpush.bf16.msra.mxu0 %v1680
    %2214 = vmatpush.bf16.msra.mxu0 %v1679
    %2215 = vmatmul.bf16.gmra.mxu0 %v320
    %v2216 = vpop.f32.mrf.mxu0
    %v2217 = vadd.f32 %v2203, %v2216
    %v2218 = vpop.f32.mrf.mxu0
    %v2219 = vadd.f32 %v2205, %v2218
    %2220 = vdwg.mxu0
    %2221 = vmatpush.bf16.msra.mxu0 %v1694
    %2222 = vmatpush.bf16.msra.mxu0 %v1693
    %2223 = vmatpush.bf16.msra.mxu0 %v1692
    %2224 = vmatpush.bf16.msra.mxu0 %v1691
    %2225 = vmatpush.bf16.msra.mxu0 %v1690
    %2226 = vmatpush.bf16.msra.mxu0 %v1689
    %2227 = vmatpush.bf16.msra.mxu0 %v1688
    %2228 = vmatpush.bf16.msra.mxu0 %v1687
    %2229 = vmatmul.bf16.gmra.mxu0 %v321
    %v2230 = vpop.f32.mrf.mxu0
    %v2231 = vadd.f32 %v2217, %v2230
    %v2232 = vpop.f32.mrf.mxu0
    %v2233 = vadd.f32 %v2219, %v2232
    %2234 = vdwg.mxu0
    %2235 = vmatpush.bf16.msra.mxu0 0
    %2236 = vmatpush.bf16.msra.mxu0 0
    %2237 = vmatpush.bf16.msra.mxu0 0
    %2238 = vmatpush.bf16.msra.mxu0 0
    %2239 = vmatpush.bf16.msra.mxu0 %v1698
    %2240 = vmatpush.bf16.msra.mxu0 %v1697
    %2241 = vmatpush.bf16.msra.mxu0 %v1696
    %2242 = vmatpush.bf16.msra.mxu0 %v1695
    %2243 = vmatmul.bf16.gmra.mxu0 %v1897
    %v2244 = vpop.f32.mrf.mxu0
    %v2245 = vadd.f32 %v2231, %v2244
    %v2246 = vpop.f32.mrf.mxu0
    %v2247 = vadd.f32 %v2233, %v2246
    %2248 = vdwg.mxu0
    %v2249 = vmax.f32 %v2245, 0.0
    %v2250 = vmax.f32 %v2247, 0.0
    %v2251 = vpack.c.bf16 %v2250, %v2249
    %v2252 = vld [vmem:[%s3] sm:$0xf]
    %v2253 = vld [vmem:[%s3 + $0x4] sm:$0xf]
    %v2254 = vld [vmem:[%s3 + $0x8] sm:$0xf]
    %v2255 = vld [vmem:[%s3 + $0xc] sm:$0xf]
    %v2256 = vld [vmem:[%s3 + $0x10] sm:$0xf]
    %v2257 = vld [vmem:[%s3 + $0x14] sm:$0xf]
    %v2258 = vld [vmem:[%s3 + $0x18] sm:$0xf]
    %v2259 = vld [vmem:[%s3 + $0x1c] sm:$0xf]
    %v2260 = vld [vmem:[%s3 + $0x20] sm:$0xf]
    %v2261 = vld [vmem:[%s3 + $0x24] sm:$0xf]
    %v2262 = vld [vmem:[%s3 + $0x28] sm:$0xf]
    %v2263 = vld [vmem:[%s3 + $0x2c] sm:$0xf]
    %v2264 = vld [vmem:[%s3 + $0x30] sm:$0xf]
    %v2265 = vld [vmem:[%s3 + $0x34] sm:$0xf]
    %v2266 = vld [vmem:[%s3 + $0x38] sm:$0xf]
    %v2267 = vld [vmem:[%s3 + $0x3c] sm:$0xf]
    %v2268 = vld [vmem:[#allocation2] sm:$0x1]
    %v2270 = vperm.slane %v2268, 0
    %v2288 = vunpack.c.l.b16 %v2252
    %v2289 = vunpack.c.l.b16 %v2253
    %v2290 = vunpack.c.l.b16 %v2254
    %v2291 = vunpack.c.l.b16 %v2255
    %v2292 = vunpack.c.l.b16 %v2256
    %v2293 = vunpack.c.l.b16 %v2257
    %v2294 = vunpack.c.l.b16 %v2258
    %v2295 = vunpack.c.l.b16 %v2259
    %v2296 = vunpack.c.l.b16 %v2260
    %v2297 = vunpack.c.l.b16 %v2261
    %v2298 = vunpack.c.l.b16 %v2262
    %v2299 = vunpack.c.l.b16 %v2263
    %v2300 = vunpack.c.l.b16 %v2264
    %v2301 = vunpack.c.l.b16 %v2265
    %v2302 = vunpack.c.l.b16 %v2266
    %v2303 = vunpack.c.l.b16 %v2267
    %v2304 = vpack.c.b16 %v2289, %v2288
    %v2305 = vpack.c.b16 %v2291, %v2290
    %v2306 = vpack.c.b16 %v2293, %v2292
    %v2307 = vpack.c.b16 %v2295, %v2294
    %v2308 = vpack.c.b16 %v2297, %v2296
    %v2309 = vpack.c.b16 %v2299, %v2298
    %v2310 = vpack.c.b16 %v2301, %v2300
    %v2311 = vpack.c.b16 %v2303, %v2302
    %2320 = vmatpush.bf16.msra.mxu0 %v2311
    %2321 = vmatpush.bf16.msra.mxu0 %v2310
    %2322 = vmatpush.bf16.msra.mxu0 %v2309
    %2323 = vmatpush.bf16.msra.mxu0 %v2308
    %2324 = vmatpush.bf16.msra.mxu0 %v2307
    %2325 = vmatpush.bf16.msra.mxu0 %v2306
    %2326 = vmatpush.bf16.msra.mxu0 %v2305
    %2327 = vmatpush.bf16.msra.mxu0 %v2304
    %2328 = vmatmul.bf16.gmra.mxu0 %v2251
    %v2329 = vpop.f32.mrf.mxu0
    %v2330 = vadd.f32 %v2270, %v2329
    %v2331 = vpop.f32.mrf.mxu0
    %v2332 = vadd.f32 %v2270, %v2331
    %2333 = vdwg.mxu0
    %v2334 = vxor.u32 %v2330, 2147483648
    %v2335 = vxor.u32 %v2332, 2147483648
    %v2336 = vmul.f32 %v2334, 1.442695
    %v2337 = vpow.pop %v2336
    %v2338 = vmul.f32 %v2335, 1.442695
    %v2339 = vpow.pop %v2338
    %v2340 = vadd.f32 %v2337, 1.0
    %v2341 = vadd.f32 %v2339, 1.0
    %v2342 = vrcp.pop %v2340
    %v2343 = vmul.f32 %v2340, %v2342
    %v2344 = vsub.f32 1.0, %v2343
    %v2345 = vmul.f32 %v2342, %v2344
    %v2346 = vadd.f32 %v2342, %v2345
    %vm2347 = vweird.f32 %v2340
    %vm2348 = vweird.f32 %v2342
    %vm2349 = vmor %vm2347, %vm2348
    %v2350 = vsel %vm2349, %v2342, %v2346
    %v2351 = vand.u32 2147483647, %v2340
    %vm2352 = vcmp.eq.f32.partialorder %v2351, 8.507059e+37
    %v2353 = vand.u32 %v2340, 2147483648
    %v2354 = vor.u32 1.1754944e-38, %v2353
    %v2355 = vsel %vm2352, %v2354, %v2350
    %v2356 = vmul.f32 1.0, %v2355
    %v2357 = vrcp.pop %v2341
    %v2358 = vmul.f32 %v2341, %v2357
    %v2359 = vsub.f32 1.0, %v2358
    %v2360 = vmul.f32 %v2357, %v2359
    %v2361 = vadd.f32 %v2357, %v2360
    %vm2362 = vweird.f32 %v2341
    %vm2363 = vweird.f32 %v2357
    %vm2364 = vmor %vm2362, %vm2363
    %v2365 = vsel %vm2364, %v2357, %v2361
    %v2366 = vand.u32 2147483647, %v2341
    %vm2367 = vcmp.eq.f32.partialorder %v2366, 8.507059e+37
    %v2368 = vand.u32 %v2341, 2147483648
    %v2369 = vor.u32 1.1754944e-38, %v2368
    %v2370 = vsel %vm2367, %v2369, %v2365
    %v2371 = vmul.f32 1.0, %v2370
    %vm2372 = vcmask 7168
    %2373 = vst.msk [vmem:[#allocation3] sm:$0xff] %vm2372, %v2356
    %2374 = vst.msk [vmem:[#allocation3 + $0x8] sm:$0xff] %vm2372, %v2371
    // Predicated region
    $region22: #{policy_network_forward.7} parent=1 // pred_check
      _
    $region23: #{policy_network_forward.7} parent=1 // pred_check_branch
      %2376 = sbr.rel (0) target = $region25
    $region24: #{policy_network_forward.7} parent=1 // pred_region
      // Predicated region
      $region26: #{policy_network_forward.7} parent=24 // pred_check
        _
      $region27: #{policy_network_forward.7} parent=24 // pred_check_branch
        %2378 = sbr.rel (0) target = $region29
      $region28: #{policy_network_forward.7} parent=24 // pred_region
        // Predicated region
        $region30: #{policy_network_forward.7} parent=28 // pred_check
          _
        $region31: #{policy_network_forward.7} parent=28 // pred_check_branch
          %2380 = sbr.rel target = $region33
        $region32: #{policy_network_forward.7} parent=28 // pred_region
          // Predicated region
          $region45: #{policy_network_forward.7} parent=32 // pred_check
            _
          $region46: #{policy_network_forward.7} parent=32 // pred_check_branch
            %2396 = sbr.rel (0) target = $region48
          $region47: #{policy_network_forward.7} parent=32 // pred_region
            %s2398 = ssub.s32 4, 1
            loop: start=0, step=1, limit=1
            $region49: #{policy_network_forward.7} parent=47 // loop_pre_header
              _
            $region50: #{policy_network_forward.7} parent=47 // loop_header
              %s2400 = sphi 0, %s2404
              %p2401 = scmp.ge.s32.totalorder %s2400, 1
              %s2405 = sphi [#allocation3], [#allocation3]
              %s2406 = sphi %s5, %s5
            $region51: #{policy_network_forward.7} parent=47 // loop_header_branch
              %2403 = sbr.rel (%p2401) target = $region55
            $region52: #{policy_network_forward.7} parent=47 // loop_body
              %v2407 = vld [vmem:[%s2405] sm:%s2398]
              %2408 = vst [vmem:[%s2406] sm:%s2398] %v2407
            $region53: #{policy_network_forward.7} parent=47 // loop_footer
              %s2404 = sadd.s32 1, %s2400
            $region54: #{policy_network_forward.7} parent=47 // loop_footer_branch
              %2399 = sbr.rel target = $region50
            $region55: #{policy_network_forward.7} parent=47 // loop_exit
              _
          $region48: #{policy_network_forward.7} parent=32 // pred_fallthru
            _
        $region33: #{policy_network_forward.7} parent=28 // pred_fallthru
          _
        // Predicated region
        $region34: #{policy_network_forward.7} parent=28 // pred_check
          _
        $region35: #{policy_network_forward.7} parent=28 // pred_check_branch
          %2382 = sbr.rel (0) target = $region37
        $region36: #{policy_network_forward.7} parent=28 // pred_region
          %s2384 = ssub.s32 4, 1
          loop: start=0, step=1, limit=1
          $region38: #{policy_network_forward.7} parent=36 // loop_pre_header
            _
          $region39: #{policy_network_forward.7} parent=36 // loop_header
            %s2386 = sphi 0, %s2390
            %p2387 = scmp.ge.s32.totalorder %s2386, 1
            %s2391 = sphi [#allocation3], [#allocation3]
            %s2392 = sphi %s5, %s5
          $region40: #{policy_network_forward.7} parent=36 // loop_header_branch
            %2389 = sbr.rel (%p2387) target = $region44
          $region41: #{policy_network_forward.7} parent=36 // loop_body
            %v2393 = vld [vmem:[%s2391] sm:%s2384]
            %2394 = vst [vmem:[%s2392] sm:%s2384] %v2393
          $region42: #{policy_network_forward.7} parent=36 // loop_footer
            %s2390 = sadd.s32 1, %s2386
          $region43: #{policy_network_forward.7} parent=36 // loop_footer_branch
            %2385 = sbr.rel target = $region39
          $region44: #{policy_network_forward.7} parent=36 // loop_exit
            _
        $region37: #{policy_network_forward.7} parent=28 // pred_fallthru
          _
      $region29: #{policy_network_forward.7} parent=24 // pred_fallthru
        _
      %2409 = vnop
    $region25: #{policy_network_forward.7} parent=1 // pred_fallthru
      _
    // Predicated region
    $region56: #{policy_network_forward.7} parent=1 // pred_check
      _
    $region57: #{policy_network_forward.7} parent=1 // pred_check_branch
      %2411 = sbr.rel (0) target = $region59
    $region58: #{policy_network_forward.7} parent=1 // pred_region
      _
    $region59: #{policy_network_forward.7} parent=1 // pred_fallthru
      _

</llo_original>
